<compile_context>
chip_gen: v7x
topology: tpu7x:2x2x1
jax: 0.10.0
libtpu: 0.0.40
codegen_flags: <defaults>
</compile_context>

<pallas_src>
import numpy as np
import jax
import jax.numpy as jnp
from jax.experimental import pallas as pl
from jax.experimental.pallas import tpu as pltpu


# ----------------------------------------------------------------------------
# Pallas kernel: one batch tile per grid step, everything batched & 2-D.
# ----------------------------------------------------------------------------
def _simple1dnn_kernel(x_ref,
                       w1_ref, b1_ref,
                       w2_ref, b2_ref,
                       w3_ref, b3_ref,
                       w5_ref, b5_ref,
                       w6_ref, b6_ref,
                       w7_ref, b7_ref,
                       out_ref):
    f32 = jnp.float32

    def matmul(a, w_ref, b_ref):
        return jnp.dot(a, w_ref[...], preferred_element_type=f32) + b_ref[...]

    def maxpool2(h, c):
        # Lanes of h are (position l, channel ch) flattened l-major: lane=l*c+ch.
        # m[:, i] = max(h[:, i], h[:, i+c]) pools adjacent positions in place.
        # Only even-l lanes of m are real pooled outputs; the next banded weight
        # matrix has zero rows elsewhere, so garbage lanes never contribute.
        w = h.shape[1]
        return jnp.maximum(h[:, : w - c], h[:, c:])

    x = x_ref[...].astype(f32)                        # (Bt, L0)
    h = maxpool2(matmul(x, w1_ref, b1_ref), 8)        # conv1 + pool -> (Bt, 560)
    h = maxpool2(matmul(h, w2_ref, b2_ref), 16)       # conv2 + pool -> (Bt, 544)
    h = maxpool2(matmul(h, w3_ref, b3_ref), 32)       # conv3 + pool -> (Bt, 480)
    h = jnp.maximum(matmul(h, w5_ref, b5_ref), 0.0)   # fc5 + relu   -> (Bt, 128)
    h = jnp.maximum(matmul(h, w6_ref, b6_ref), 0.0)   # fc6 + relu   -> (Bt, 64)
    logits = matmul(h, w7_ref, b7_ref)                # fc7          -> (Bt, 128pad)

    # softmax over class lanes; padded classes carry a -1e30 bias -> exp()==0.
    z = logits - jnp.max(logits, axis=-1, keepdims=True)
    e = jnp.exp(z)
    out_ref[...] = e / jnp.sum(e, axis=-1, keepdims=True)


# ----------------------------------------------------------------------------
# Parameter re-layout: convs (with zero padding) as dense banded matmuls.
# ----------------------------------------------------------------------------
def _build_kernel_params(p, input_size):
    w1 = np.asarray(p["w1"], np.float32)   # (8, 1, 2)   torch (Cout, Cin, K)
    w2 = np.asarray(p["w2"], np.float32)   # (16, 8, 3)
    w3 = np.asarray(p["w3"], np.float32)   # (32, 16, 4)
    w5 = np.asarray(p["w5"], np.float32)   # (128, 256)
    w6 = np.asarray(p["w6"], np.float32)   # (64, 128)
    w7 = np.asarray(p["w7"], np.float32)   # (nout, 64)
    b1, b2, b3 = (np.asarray(p[k], np.float32) for k in ("b1", "b2", "b3"))
    b5, b6, b7 = (np.asarray(p[k], np.float32) for k in ("b5", "b6", "b7"))

    L0 = input_size

    # conv1: Cin=1, Cout=8, k=2, pad=1  ->  (L0, L1*8)
    C1, K1 = 8, 2
    L1 = L0 + 2 - K1 + 1
    W1b = np.zeros((L0, L1 * C1), np.float32)
    for l in range(L1):
        for k in range(K1):
            xi = l + k - 1
            if 0 <= xi < L0:
                W1b[xi, l * C1:(l + 1) * C1] = w1[:, 0, k]
    b1b = np.tile(b1, L1)[None, :]

    # conv2: Cin=8, Cout=16, k=3, pad=1.  Input lanes = pooled conv1 output
    # (width L1*C1 - C1); pooled position jp lives at lane (2*jp)*C1 + c.
    P1 = L1 // 2
    C2, K2 = 16, 3
    L2 = P1 + 2 - K2 + 1
    W2b = np.zeros((L1 * C1 - C1, L2 * C2), np.float32)
    for l in range(L2):
        for k in range(K2):
            jp = l + k - 1
            if 0 <= jp < P1:
                r = 2 * jp * C1
                W2b[r:r + C1, l * C2:(l + 1) * C2] = w2[:, :, k].T   # (Cin, Cout)
    b2b = np.tile(b2, L2)[None, :]

    # conv3: Cin=16, Cout=32, k=4, pad=1.
    P2 = L2 // 2
    C3, K3 = 32, 4
    L3 = P2 + 2 - K3 + 1
    W3b = np.zeros((L2 * C2 - C2, L3 * C3), np.float32)
    for l in range(L3):
        for k in range(K3):
            jp = l + k - 1
            if 0 <= jp < P2:
                r = 2 * jp * C2
                W3b[r:r + C2, l * C3:(l + 1) * C3] = w3[:, :, k].T
    b3b = np.tile(b3, L3)[None, :]

    # fc5: torch flattens (C3, P3) channel-major (feature = c*P3 + j); the
    # kernel's pooled-conv3 lanes hold (j, c) at lane (2*j)*C3 + c.
    P3 = L3 // 2
    assert w5.shape[1] == C3 * P3, "fc5 expects 256 flattened conv features"
    W5b = np.zeros((L3 * C3 - C3, w5.shape[0]), np.float32)
    for j in range(P3):
        r = 2 * j * C3
        W5b[r:r + C3, :] = w5[:, j::P3].T
    b5b = b5[None, :]

    W6b = w6.T
    b6b = b6[None, :]

    # fc7: pad classes up to a multiple of 128 lanes (lane-dense output stores).
    nout = w7.shape[0]
    nout_pad = max(128, -(-nout // 128) * 128)
    W7b = np.zeros((w7.shape[1], nout_pad), np.float32)
    W7b[:, :nout] = w7.T
    b7b = np.full((1, nout_pad), -1e30, np.float32)   # padded classes -> prob 0
    b7b[0, :nout] = b7

    tensors = [W1b, b1b, W2b, b2b, W3b, b3b, W5b, b5b, W6b, b6b, W7b, b7b]
    return [jnp.asarray(t) for t in tensors], nout_pad


def _pick_block_b(batch):
    # Target ~128 rows per tile (fills the MXU M dim of the matmuls) while
    # keeping >=2 parallel grid steps when the batch allows (v7x has 2 TCs).
    if batch <= 8:
        return 8
    half = -(-batch // 2)
    return int(min(128, -(-half // 8) * 8))


# ----------------------------------------------------------------------------
# Wrapper: pallas_call with a 1-D parallel grid over batch tiles.
# ----------------------------------------------------------------------------
def simple1dnn_pallas(x, p, block_b=None):
    B, Lin = x.shape
    if block_b is None:
        block_b = _pick_block_b(B)
    nblocks = -(-B // block_b)
    Bp = nblocks * block_b

    xk = x.astype(jnp.float32)
    if Bp != B:
        xk = jnp.concatenate([xk, jnp.zeros((Bp - B, Lin), jnp.float32)], axis=0)

    weights, nout_pad = _build_kernel_params(p, Lin)
    nout = p["w7"].shape[0]

    def full_spec(t):
        nd = t.ndim
        return pl.BlockSpec(t.shape, lambda i, nd=nd: (0,) * nd)

    in_specs = [pl.BlockSpec((block_b, Lin), lambda i: (i, 0))]   # lane-dense x
    in_specs += [full_spec(t) for t in weights]

    out = pl.pallas_call(
        _simple1dnn_kernel,
        out_shape=jax.ShapeDtypeStruct((Bp, nout_pad), jnp.float32),
        grid_spec=pltpu.PrefetchScalarGridSpec(
            num_scalar_prefetch=0,
            grid=(nblocks,),
            in_specs=in_specs,
            out_specs=pl.BlockSpec((block_b, nout_pad), lambda i: (i, 0)),
        ),
        compiler_params=pltpu.CompilerParams(
            dimension_semantics=("parallel",),
            vmem_limit_bytes=32 * 1024 * 1024),
    )(xk, *weights)

    return out[:B, :nout]


# ----------------------------------------------------------------------------
# Deterministic parameter init (PyTorch-style uniform(-1/sqrt(fan_in), ...))
# ----------------------------------------------------------------------------
def init_params(key, output_size):
    ks = jax.random.split(key, 12)

    def u(k, shape, fan_in):
        bound = 1.0 / np.sqrt(fan_in)
        return jax.random.uniform(k, shape, jnp.float32, -bound, bound)

    return {
        "w1": u(ks[0], (8, 1, 2), 1 * 2),    "b1": u(ks[1], (8,), 1 * 2),
        "w2": u(ks[2], (16, 8, 3), 8 * 3),   "b2": u(ks[3], (16,), 8 * 3),
        "w3": u(ks[4], (32, 16, 4), 16 * 4), "b3": u(ks[5], (32,), 16 * 4),
        "w5": u(ks[6], (128, 256), 256),     "b5": u(ks[7], (128,), 256),
        "w6": u(ks[8], (64, 128), 128),      "b6": u(ks[9], (64,), 128),
        "w7": u(ks[10], (output_size, 64), 64),
        "b7": u(ks[11], (output_size,), 64),
    }


# ----------------------------------------------------------------------------
# Pure-JAX reference (mirrors the PyTorch forward exactly, NCL layout)
# ----------------------------------------------------------------------------
def reference_forward(x, p):
    B = x.shape[0]
    h = x.reshape(B, 1, x.shape[1])
    hi = jax.lax.Precision.HIGHEST

    def conv1d(h, w, b, pad):
        out = jax.lax.conv_general_dilated(
            h, w, window_strides=(1,), padding=[(pad, pad)],
            dimension_numbers=("NCH", "OIH", "NCH"), precision=hi)
        return out + b[None, :, None]

    def pool(h):
        L = h.shape[-1]
        lp = L // 2
        return h[..., :2 * lp].reshape(h.shape[0], h.shape[1], lp, 2).max(-1)

    h = pool(conv1d(h, p["w1"], p["b1"], 1))
    h = pool(conv1d(h, p["w2"], p["b2"], 1))
    h = pool(conv1d(h, p["w3"], p["b3"], 1))
    h = h.reshape(B, -1)                                   # (B, 256), c-major
    h = jnp.maximum(jnp.dot(h, p["w5"].T, precision=hi) + p["b5"], 0.0)
    h = jnp.maximum(jnp.dot(h, p["w6"].T, precision=hi) + p["b6"], 0.0)
    h = jnp.dot(h, p["w7"].T, precision=hi) + p["b7"]
    return jax.nn.softmax(h, axis=1)


if __name__ == "__main__":
    # input_size chosen so the flattened conv features equal fc5's input (256):
    # 70 -(conv k2 p1)-> 71 -pool-> 35 -(conv k3 p1)-> 35 -pool-> 17
    #    -(conv k4 p1)-> 16 -pool-> 8 ; 8 positions * 32 channels = 256
    INPUT_SIZE = 70
    OUTPUT_SIZE = 32
    BATCH = 16            # 2 batch tiles of 8 -> 2 parallel grid steps

    key = jax.random.PRNGKey(0)
    pkey, xkey = jax.random.split(key)
    params = init_params(pkey, OUTPUT_SIZE)
    x = jax.random.normal(xkey, (BATCH, INPUT_SIZE), jnp.float32)

    y = simple1dnn_pallas(x, params)
    y = jax.block_until_ready(y)

    y_ref = reference_forward(x, params)
    np.testing.assert_allclose(np.asarray(y), np.asarray(y_ref),
                               rtol=1e-3, atol=1e-3)
    assert y.shape == (BATCH, OUTPUT_SIZE)
    print("KERNEL_OK")
</pallas_src>

<mosaic_0001>
module attributes {stable_mosaic.version = 11 : i64} {
  func.func @_simple1dnn_kernel(%arg0: i32, %arg1: memref<8x70xf32, #tpu.memory_space<vmem>>, %arg2: memref<70x568xf32, #tpu.memory_space<vmem>>, %arg3: memref<1x568xf32, #tpu.memory_space<vmem>>, %arg4: memref<560x560xf32, #tpu.memory_space<vmem>>, %arg5: memref<1x560xf32, #tpu.memory_space<vmem>>, %arg6: memref<544x512xf32, #tpu.memory_space<vmem>>, %arg7: memref<1x512xf32, #tpu.memory_space<vmem>>, %arg8: memref<480x128xf32, #tpu.memory_space<vmem>>, %arg9: memref<1x128xf32, #tpu.memory_space<vmem>>, %arg10: memref<128x64xf32, #tpu.memory_space<vmem>>, %arg11: memref<1x64xf32, #tpu.memory_space<vmem>>, %arg12: memref<64x128xf32, #tpu.memory_space<vmem>>, %arg13: memref<1x128xf32, #tpu.memory_space<vmem>>, %arg14: memref<8x128xf32, #tpu.memory_space<vmem>>) attributes {dimension_semantics = [#tpu.dimension_semantics<parallel>], iteration_bounds = array<i64: 2>, scalar_prefetch = 0 : i64, scratch_operands = 0 : i64, tpu.core_type = #tpu.core_type<tc>, window_params = [{transform_indices = @transform_0, window_bounds = array<i64: 8, 70>}, {pipeline_mode = #tpu.pipeline_mode<synchronous>, transform_indices = @transform_1, window_bounds = array<i64: 70, 568>}, {pipeline_mode = #tpu.pipeline_mode<synchronous>, transform_indices = @transform_2, window_bounds = array<i64: 1, 568>}, {pipeline_mode = #tpu.pipeline_mode<synchronous>, transform_indices = @transform_3, window_bounds = array<i64: 560, 560>}, {pipeline_mode = #tpu.pipeline_mode<synchronous>, transform_indices = @transform_4, window_bounds = array<i64: 1, 560>}, {pipeline_mode = #tpu.pipeline_mode<synchronous>, transform_indices = @transform_5, window_bounds = array<i64: 544, 512>}, {pipeline_mode = #tpu.pipeline_mode<synchronous>, transform_indices = @transform_6, window_bounds = array<i64: 1, 512>}, {pipeline_mode = #tpu.pipeline_mode<synchronous>, transform_indices = @transform_7, window_bounds = array<i64: 480, 128>}, {pipeline_mode = #tpu.pipeline_mode<synchronous>, transform_indices = @transform_8, window_bounds = array<i64: 1, 128>}, {pipeline_mode = #tpu.pipeline_mode<synchronous>, transform_indices = @transform_9, window_bounds = array<i64: 128, 64>}, {pipeline_mode = #tpu.pipeline_mode<synchronous>, transform_indices = @transform_10, window_bounds = array<i64: 1, 64>}, {pipeline_mode = #tpu.pipeline_mode<synchronous>, transform_indices = @transform_11, window_bounds = array<i64: 64, 128>}, {pipeline_mode = #tpu.pipeline_mode<synchronous>, transform_indices = @transform_12, window_bounds = array<i64: 1, 128>}, {transform_indices = @transform_13, window_bounds = array<i64: 8, 128>}]} {
    %c0 = arith.constant 0 : index
    %c0_0 = arith.constant 0 : index
    %0 = vector.load %arg1[%c0, %c0_0] : memref<8x70xf32, #tpu.memory_space<vmem>>, vector<8x70xf32>
    %c0_1 = arith.constant 0 : index
    %c0_2 = arith.constant 0 : index
    %1 = vector.load %arg2[%c0_1, %c0_2] : memref<70x568xf32, #tpu.memory_space<vmem>>, vector<70x568xf32>
    %cst = arith.constant dense<0.000000e+00> : vector<8x568xf32>
    %2 = tpu.matmul %0, %1, %cst {dimension_numbers = #tpu.dot_dimension_numbers<[1], [0], [0], [1], [0, 0, 1, 1], [], []>} : vector<8x70xf32>, vector<70x568xf32>, vector<8x568xf32> -> vector<8x568xf32>
    %c0_3 = arith.constant 0 : index
    %c0_4 = arith.constant 0 : index
    %3 = vector.load %arg3[%c0_3, %c0_4] : memref<1x568xf32, #tpu.memory_space<vmem>>, vector<1x568xf32>
    %4 = vector.broadcast %3 : vector<1x568xf32> to vector<8x568xf32>
    %5 = arith.addf %2, %4 : vector<8x568xf32>
    %6 = vector.extract_strided_slice %5 {offsets = [0, 0], sizes = [8, 560], strides = [1, 1]} : vector<8x568xf32> to vector<8x560xf32>
    %7 = vector.extract_strided_slice %5 {offsets = [0, 8], sizes = [8, 560], strides = [1, 1]} : vector<8x568xf32> to vector<8x560xf32>
    %8 = arith.maximumf %6, %7 : vector<8x560xf32>
    %c0_5 = arith.constant 0 : index
    %c0_6 = arith.constant 0 : index
    %9 = vector.load %arg4[%c0_5, %c0_6] : memref<560x560xf32, #tpu.memory_space<vmem>>, vector<560x560xf32>
    %cst_7 = arith.constant dense<0.000000e+00> : vector<8x560xf32>
    %10 = tpu.matmul %8, %9, %cst_7 {dimension_numbers = #tpu.dot_dimension_numbers<[1], [0], [0], [1], [0, 0, 1, 1], [], []>} : vector<8x560xf32>, vector<560x560xf32>, vector<8x560xf32> -> vector<8x560xf32>
    %c0_8 = arith.constant 0 : index
    %c0_9 = arith.constant 0 : index
    %11 = vector.load %arg5[%c0_8, %c0_9] : memref<1x560xf32, #tpu.memory_space<vmem>>, vector<1x560xf32>
    %12 = vector.broadcast %11 : vector<1x560xf32> to vector<8x560xf32>
    %13 = arith.addf %10, %12 : vector<8x560xf32>
    %14 = vector.extract_strided_slice %13 {offsets = [0, 0], sizes = [8, 544], strides = [1, 1]} : vector<8x560xf32> to vector<8x544xf32>
    %15 = vector.extract_strided_slice %13 {offsets = [0, 16], sizes = [8, 544], strides = [1, 1]} : vector<8x560xf32> to vector<8x544xf32>
    %16 = arith.maximumf %14, %15 : vector<8x544xf32>
    %c0_10 = arith.constant 0 : index
    %c0_11 = arith.constant 0 : index
    %17 = vector.load %arg6[%c0_10, %c0_11] : memref<544x512xf32, #tpu.memory_space<vmem>>, vector<544x512xf32>
    %cst_12 = arith.constant dense<0.000000e+00> : vector<8x512xf32>
    %18 = tpu.matmul %16, %17, %cst_12 {dimension_numbers = #tpu.dot_dimension_numbers<[1], [0], [0], [1], [0, 0, 1, 1], [], []>} : vector<8x544xf32>, vector<544x512xf32>, vector<8x512xf32> -> vector<8x512xf32>
    %c0_13 = arith.constant 0 : index
    %c0_14 = arith.constant 0 : index
    %19 = vector.load %arg7[%c0_13, %c0_14] : memref<1x512xf32, #tpu.memory_space<vmem>>, vector<1x512xf32>
    %20 = vector.broadcast %19 : vector<1x512xf32> to vector<8x512xf32>
    %21 = arith.addf %18, %20 : vector<8x512xf32>
    %22 = vector.extract_strided_slice %21 {offsets = [0, 0], sizes = [8, 480], strides = [1, 1]} : vector<8x512xf32> to vector<8x480xf32>
    %23 = vector.extract_strided_slice %21 {offsets = [0, 32], sizes = [8, 480], strides = [1, 1]} : vector<8x512xf32> to vector<8x480xf32>
    %24 = arith.maximumf %22, %23 : vector<8x480xf32>
    %c0_15 = arith.constant 0 : index
    %c0_16 = arith.constant 0 : index
    %25 = vector.load %arg8[%c0_15, %c0_16] : memref<480x128xf32, #tpu.memory_space<vmem>>, vector<480x128xf32>
    %cst_17 = arith.constant dense<0.000000e+00> : vector<8x128xf32>
    %26 = tpu.matmul %24, %25, %cst_17 {dimension_numbers = #tpu.dot_dimension_numbers<[1], [0], [0], [1], [0, 0, 1, 1], [], []>} : vector<8x480xf32>, vector<480x128xf32>, vector<8x128xf32> -> vector<8x128xf32>
    %c0_18 = arith.constant 0 : index
    %c0_19 = arith.constant 0 : index
    %27 = vector.load %arg9[%c0_18, %c0_19] : memref<1x128xf32, #tpu.memory_space<vmem>>, vector<1x128xf32>
    %28 = vector.broadcast %27 : vector<1x128xf32> to vector<8x128xf32>
    %29 = arith.addf %26, %28 : vector<8x128xf32>
    %cst_20 = arith.constant 0.000000e+00 : f32
    %30 = vector.broadcast %cst_20 : f32 to vector<8x128xf32>
    %31 = arith.maximumf %29, %30 : vector<8x128xf32>
    %c0_21 = arith.constant 0 : index
    %c0_22 = arith.constant 0 : index
    %32 = vector.load %arg10[%c0_21, %c0_22] : memref<128x64xf32, #tpu.memory_space<vmem>>, vector<128x64xf32>
    %cst_23 = arith.constant dense<0.000000e+00> : vector<8x64xf32>
    %33 = tpu.matmul %31, %32, %cst_23 {dimension_numbers = #tpu.dot_dimension_numbers<[1], [0], [0], [1], [0, 0, 1, 1], [], []>} : vector<8x128xf32>, vector<128x64xf32>, vector<8x64xf32> -> vector<8x64xf32>
    %c0_24 = arith.constant 0 : index
    %c0_25 = arith.constant 0 : index
    %34 = vector.load %arg11[%c0_24, %c0_25] : memref<1x64xf32, #tpu.memory_space<vmem>>, vector<1x64xf32>
    %35 = vector.broadcast %34 : vector<1x64xf32> to vector<8x64xf32>
    %36 = arith.addf %33, %35 : vector<8x64xf32>
    %cst_26 = arith.constant 0.000000e+00 : f32
    %37 = vector.broadcast %cst_26 : f32 to vector<8x64xf32>
    %38 = arith.maximumf %36, %37 : vector<8x64xf32>
    %c0_27 = arith.constant 0 : index
    %c0_28 = arith.constant 0 : index
    %39 = vector.load %arg12[%c0_27, %c0_28] : memref<64x128xf32, #tpu.memory_space<vmem>>, vector<64x128xf32>
    %cst_29 = arith.constant dense<0.000000e+00> : vector<8x128xf32>
    %40 = tpu.matmul %38, %39, %cst_29 {dimension_numbers = #tpu.dot_dimension_numbers<[1], [0], [0], [1], [0, 0, 1, 1], [], []>} : vector<8x64xf32>, vector<64x128xf32>, vector<8x128xf32> -> vector<8x128xf32>
    %c0_30 = arith.constant 0 : index
    %c0_31 = arith.constant 0 : index
    %41 = vector.load %arg13[%c0_30, %c0_31] : memref<1x128xf32, #tpu.memory_space<vmem>>, vector<1x128xf32>
    %42 = vector.broadcast %41 : vector<1x128xf32> to vector<8x128xf32>
    %43 = arith.addf %40, %42 : vector<8x128xf32>
    %cst_32 = arith.constant dense<0xFF800000> : vector<8xf32>
    %44 = vector.multi_reduction <maximumf>, %43, %cst_32 [1] : vector<8x128xf32> to vector<8xf32>
    %45 = vector.shape_cast %44 : vector<8xf32> to vector<8x1xf32>
    %46 = vector.broadcast %45 : vector<8x1xf32> to vector<8x128xf32>
    %47 = arith.subf %43, %46 : vector<8x128xf32>
    %48 = math.exp %47 : vector<8x128xf32>
    %cst_33 = arith.constant dense<0.000000e+00> : vector<8xf32>
    %49 = vector.multi_reduction <add>, %48, %cst_33 [1] : vector<8x128xf32> to vector<8xf32>
    %50 = vector.shape_cast %49 : vector<8xf32> to vector<8x1xf32>
    %51 = vector.broadcast %50 : vector<8x1xf32> to vector<8x128xf32>
    %52 = arith.divf %48, %51 : vector<8x128xf32>
    %c0_34 = arith.constant 0 : index
    %c0_35 = arith.constant 0 : index
    %53 = vector.load %arg14[%c0_34, %c0_35] : memref<8x128xf32, #tpu.memory_space<vmem>>, vector<8x128xf32>
    tpu.vector_store %arg14[%c0_34, %c0_35], %52 {strides = array<i32>} : memref<8x128xf32, #tpu.memory_space<vmem>>, vector<8x128xf32>,
    return
  }
  func.func @transform_0(%arg0: i32) -> (i32, i32) {
    %c0_i32 = arith.constant 0 : i32
    %c0_i32_0 = arith.constant 0 : i32
    return %arg0, %c0_i32 : i32, i32
  }
  func.func @transform_1(%arg0: i32) -> (i32, i32) {
    %c0_i32 = arith.constant 0 : i32
    %c0_i32_0 = arith.constant 0 : i32
    %c0_i32_1 = arith.constant 0 : i32
    return %c0_i32, %c0_i32_0 : i32, i32
  }
  func.func @transform_2(%arg0: i32) -> (i32, i32) {
    %c0_i32 = arith.constant 0 : i32
    %c0_i32_0 = arith.constant 0 : i32
    %c0_i32_1 = arith.constant 0 : i32
    return %c0_i32, %c0_i32_0 : i32, i32
  }
  func.func @transform_3(%arg0: i32) -> (i32, i32) {
    %c0_i32 = arith.constant 0 : i32
    %c0_i32_0 = arith.constant 0 : i32
    %c0_i32_1 = arith.constant 0 : i32
    return %c0_i32, %c0_i32_0 : i32, i32
  }
  func.func @transform_4(%arg0: i32) -> (i32, i32) {
    %c0_i32 = arith.constant 0 : i32
    %c0_i32_0 = arith.constant 0 : i32
    %c0_i32_1 = arith.constant 0 : i32
    return %c0_i32, %c0_i32_0 : i32, i32
  }
  func.func @transform_5(%arg0: i32) -> (i32, i32) {
    %c0_i32 = arith.constant 0 : i32
    %c0_i32_0 = arith.constant 0 : i32
    %c0_i32_1 = arith.constant 0 : i32
    return %c0_i32, %c0_i32_0 : i32, i32
  }
  func.func @transform_6(%arg0: i32) -> (i32, i32) {
    %c0_i32 = arith.constant 0 : i32
    %c0_i32_0 = arith.constant 0 : i32
    %c0_i32_1 = arith.constant 0 : i32
    return %c0_i32, %c0_i32_0 : i32, i32
  }
  func.func @transform_7(%arg0: i32) -> (i32, i32) {
    %c0_i32 = arith.constant 0 : i32
    %c0_i32_0 = arith.constant 0 : i32
    %c0_i32_1 = arith.constant 0 : i32
    return %c0_i32, %c0_i32_0 : i32, i32
  }
  func.func @transform_8(%arg0: i32) -> (i32, i32) {
    %c0_i32 = arith.constant 0 : i32
    %c0_i32_0 = arith.constant 0 : i32
    %c0_i32_1 = arith.constant 0 : i32
    return %c0_i32, %c0_i32_0 : i32, i32
  }
  func.func @transform_9(%arg0: i32) -> (i32, i32) {
    %c0_i32 = arith.constant 0 : i32
    %c0_i32_0 = arith.constant 0 : i32
    %c0_i32_1 = arith.constant 0 : i32
    return %c0_i32, %c0_i32_0 : i32, i32
  }
  func.func @transform_10(%arg0: i32) -> (i32, i32) {
    %c0_i32 = arith.constant 0 : i32
    %c0_i32_0 = arith.constant 0 : i32
    %c0_i32_1 = arith.constant 0 : i32
    return %c0_i32, %c0_i32_0 : i32, i32
  }
  func.func @transform_11(%arg0: i32) -> (i32, i32) {
    %c0_i32 = arith.constant 0 : i32
    %c0_i32_0 = arith.constant 0 : i32
    %c0_i32_1 = arith.constant 0 : i32
    return %c0_i32, %c0_i32_0 : i32, i32
  }
  func.func @transform_12(%arg0: i32) -> (i32, i32) {
    %c0_i32 = arith.constant 0 : i32
    %c0_i32_0 = arith.constant 0 : i32
    %c0_i32_1 = arith.constant 0 : i32
    return %c0_i32, %c0_i32_0 : i32, i32
  }
  func.func @transform_13(%arg0: i32) -> (i32, i32) {
    %c0_i32 = arith.constant 0 : i32
    %c0_i32_0 = arith.constant 0 : i32
    return %arg0, %c0_i32 : i32, i32
  }
}

</mosaic_0001>

<llo_original>
// kernel: tpu_custom_call.1
$region0: #{tpu_custom_call.1}
  #allocation0 [shape = 'u32[]', space=smem, size = 0x4, offset = 0x4, fixed_abs, tag = 'smem constant byte address 0x4 - core index']
  #allocation1 [shape = 'u32[144,128]{1,0:T(1,128)}', space=vmem, size = 0x12000, scoped, tag = 'internal scratch']
  %s0 = inlined_call_operand.hbm [shape: f32[16,70], index: 0, kind: input, shape index: {}]
  %s1 = inlined_call_operand.hbm [shape: f32[70,568], index: 1, kind: input, shape index: {}]
  %s2 = inlined_call_operand.hbm [shape: f32[1,568], index: 2, kind: input, shape index: {}]
  %s3 = inlined_call_operand.hbm [shape: f32[560,560], index: 3, kind: input, shape index: {}]
  %s4 = inlined_call_operand.hbm [shape: f32[1,560], index: 4, kind: input, shape index: {}]
  %s5 = inlined_call_operand.hbm [shape: f32[544,512], index: 5, kind: input, shape index: {}]
  %s6 = inlined_call_operand.hbm [shape: f32[1,512], index: 6, kind: input, shape index: {}]
  %s7 = inlined_call_operand.hbm [shape: f32[480,128], index: 7, kind: input, shape index: {}]
  %s8 = inlined_call_operand.hbm [shape: f32[1,128], index: 8, kind: input, shape index: {}]
  %s9 = inlined_call_operand.vmem [shape: f32[128,64], index: 9, kind: input, shape index: {}]
  %s10 = inlined_call_operand.hbm [shape: f32[1,64], index: 10, kind: input, shape index: {}]
  %s11 = inlined_call_operand.hbm [shape: f32[64,128], index: 11, kind: input, shape index: {}]
  %s12 = inlined_call_operand.hbm [shape: f32[1,128], index: 12, kind: input, shape index: {}]
  %s13 = inlined_call_operand.hbm [shape: f32[16,128], index: 13, kind: output, shape index: {}]
  %s14 = sld [smem:[#allocation0]]
  $region133: #{tpu_custom_call.1} parent=0
    _
  %s16 = ssub.s32 1, %s14
  %s17 = scalar_select 0, %s16, %s14
  $region1: #{tpu_custom_call.1} parent=0
    #allocation2 [shape = 'u8[8192]{0}', space=vmem, size = 0x2000, scoped, tag = 'input window, operand 0']
    #allocation3 [shape = 's32[2]{0}', space=sflag, size = 0x8, scoped, tag = 'scoped memory for tpu_custom_call.1']
    #allocation4 [shape = 's32[2]{0}', space=sflag, size = 0x8, scoped, tag = 'scoped memory for tpu_custom_call.1']
    #allocation5 [shape = 'u8[184320]{0}', space=vmem, size = 0x2d000, scoped, tag = 'input window, operand 1, single buffered']
    #allocation6 [shape = 's32[1]{0}', space=sflag, size = 0x4, scoped, tag = 'scoped memory for tpu_custom_call.1']
    #allocation7 [shape = 'u8[2560]{0}', space=vmem, size = 0xc00, scoped, tag = 'input window, operand 2, single buffered']
    #allocation8 [shape = 'u8[1433600]{0}', space=vmem, size = 0x15e000, scoped, tag = 'input window, operand 3, single buffered']
    #allocation9 [shape = 's32[1]{0}', space=sflag, size = 0x4, scoped, tag = 'scoped memory for tpu_custom_call.1']
    #allocation10 [shape = 'u8[2560]{0}', space=vmem, size = 0xc00, scoped, tag = 'input window, operand 4, single buffered']
    #allocation11 [shape = 'u8[1114112]{0}', space=vmem, size = 0x110000, scoped, tag = 'input window, operand 5, single buffered']
    #allocation12 [shape = 's32[1]{0}', space=sflag, size = 0x4, scoped, tag = 'scoped memory for tpu_custom_call.1']
    #allocation13 [shape = 'u8[2048]{0}', space=vmem, size = 0x800, scoped, tag = 'input window, operand 6, single buffered']
    #allocation14 [shape = 'u8[245760]{0}', space=vmem, size = 0x3c000, scoped, tag = 'input window, operand 7, single buffered']
    #allocation15 [shape = 's32[1]{0}', space=sflag, size = 0x4, scoped, tag = 'scoped memory for tpu_custom_call.1']
    #allocation16 [shape = 'u8[512]{0}', space=vmem, size = 0x400, scoped, tag = 'input window, operand 8, single buffered']
    #allocation17 [shape = 'u8[512]{0}', space=vmem, size = 0x400, scoped, tag = 'input window, operand 10, single buffered']
    #allocation18 [shape = 's32[1]{0}', space=sflag, size = 0x4, scoped, tag = 'scoped memory for tpu_custom_call.1']
    #allocation19 [shape = 'u8[32768]{0}', space=vmem, size = 0x8000, scoped, tag = 'input window, operand 11, single buffered']
    #allocation20 [shape = 'u8[512]{0}', space=vmem, size = 0x400, scoped, tag = 'input window, operand 12, single buffered']
    #allocation21 [shape = 's32[1]{0}', space=sflag, size = 0x4, scoped, tag = 'scoped memory for tpu_custom_call.1']
    #allocation22 [shape = 'u8[8192]{0}', space=vmem, size = 0x2000, scoped, tag = 'output window, operand 0']
    %18 = vsyncpa [#allocation3], 0
    %s19 = scalar_lea.sflag [#allocation3], 1
    %20 = vsyncpa %s19, 0
    %21 = vsyncpa [#allocation6], 0
    %22 = vsyncpa [#allocation9], 0
    %23 = vsyncpa [#allocation12], 0
    %24 = vsyncpa [#allocation15], 0
    %25 = vsyncpa [#allocation18], 0
    %26 = vsyncpa [#allocation21], 0
    %27 = vsyncpa [#allocation4], 0
    %s28 = scalar_lea.sflag [#allocation4], 1
    %29 = vsyncpa %s28, 0
    loop: start=0, step=1, limit=4
    $region2: #{tpu_custom_call.1} parent=1 // loop_pre_header
      _
    $region3: #{tpu_custom_call.1} parent=1 // loop_header
      %s31 = sphi 0, %s35
      %p32 = scmp.ge.s32.totalorder %s31, 4
      %s41 = sphi 0, %s43
      %s44 = sphi 0, %s41
      %s45 = sphi 0, %s44
      %s61 = sphi 0, %s45
      %s65 = sphi 0, %s65
      %s67 = sphi 0, %s65
      %s68 = sphi 0, %s67
      %s82 = sphi 0, %s68
      %s86 = sphi 0, %s86
      %s88 = sphi 0, %s86
      %s89 = sphi 0, %s88
      %s103 = sphi 0, %s89
      %s107 = sphi 0, %s107
      %s109 = sphi 0, %s107
      %s110 = sphi 0, %s109
      %s124 = sphi 0, %s110
      %s128 = sphi 0, %s128
      %s130 = sphi 0, %s128
      %s131 = sphi 0, %s130
      %s145 = sphi 0, %s131
      %s149 = sphi 0, %s149
      %s151 = sphi 0, %s149
      %s152 = sphi 0, %s151
      %s166 = sphi 0, %s152
      %s170 = sphi 0, %s170
      %s172 = sphi 0, %s170
      %s173 = sphi 0, %s172
      %s187 = sphi 0, %s173
      %s191 = sphi 0, %s191
      %s193 = sphi 0, %s191
      %s194 = sphi 0, %s193
      %s208 = sphi 0, %s194
      %s212 = sphi 0, %s212
      %s214 = sphi 0, %s212
      %s215 = sphi 0, %s214
      %s229 = sphi 0, %s215
      %s233 = sphi 0, %s233
      %s235 = sphi 0, %s233
      %s236 = sphi 0, %s235
      %s250 = sphi 0, %s236
      %s254 = sphi 0, %s254
      %s256 = sphi 0, %s254
      %s257 = sphi 0, %s256
      %s271 = sphi 0, %s257
      %s275 = sphi 0, %s275
      %s277 = sphi 0, %s275
      %s278 = sphi 0, %s277
      %s292 = sphi 0, %s278
      %s296 = sphi 0, %s296
      %s298 = sphi 0, %s296
      %s299 = sphi 0, %s298
      %s313 = sphi 0, %s299
      %s319 = sphi 0, %s321
      %s322 = sphi 0, %s319
      %s323 = sphi 0, %s322
      %s339 = sphi 0, %s323
    $region4: #{tpu_custom_call.1} parent=1 // loop_header_branch
      %34 = sbr.rel (%p32) target = $region8
    $region5: #{tpu_custom_call.1} parent=1 // loop_body
      %s36 = ssub.s32 %s31, 1
      %s37 = ssub.s32 %s31, 2
      %s38 = sadd.s32 %s31, 1
      %s39 = ssub.s32 %s31, %s38
      %p40 = scmp.eq.s32.totalorder %s39, 0
      %s42 = sadd.s32 %s41, 1
      %s43 = scalar_select %p40, %s41, %s42
      %p46 = pneg %p40
      %p47 = scmp.eq.s32.totalorder %s31, 1
      %p48 = por %p46, %p47
      %p49 = scmp.ne.s32.totalorder %s41, %s44
      %p50 = scmp.eq.s32.totalorder %s31, 0
      %p51 = por %p49, %p50
      %p52 = scmp.ne.s32.totalorder %s41, %s44
      %p53 = scmp.eq.s32.totalorder %s36, 1
      %p54 = por %p52, %p53
      %p55 = scmp.ne.s32.totalorder %s44, %s45
      %p56 = scmp.eq.s32.totalorder %s36, 0
      %p57 = por %p55, %p56
      %p58 = scmp.ne.s32.totalorder %s44, %s45
      %p59 = scmp.eq.s32.totalorder %s37, 1
      %p60 = por %p58, %p59
      %p62 = scmp.ne.s32.totalorder %s45, %s61
      %p63 = scmp.eq.s32.totalorder %s37, 0
      %p64 = por %p62, %p63
      %s66 = sadd.s32 %s65, 1
      %p69 = scmp.eq.s32.totalorder %s31, 1
      %p70 = scmp.ne.s32.totalorder %s65, %s67
      %p71 = scmp.eq.s32.totalorder %s31, 0
      %p72 = por %p70, %p71
      %p73 = scmp.ne.s32.totalorder %s65, %s67
      %p74 = scmp.eq.s32.totalorder %s36, 1
      %p75 = por %p73, %p74
      %p76 = scmp.ne.s32.totalorder %s67, %s68
      %p77 = scmp.eq.s32.totalorder %s36, 0
      %p78 = por %p76, %p77
      %p79 = scmp.ne.s32.totalorder %s67, %s68
      %p80 = scmp.eq.s32.totalorder %s37, 1
      %p81 = por %p79, %p80
      %p83 = scmp.ne.s32.totalorder %s68, %s82
      %p84 = scmp.eq.s32.totalorder %s37, 0
      %p85 = por %p83, %p84
      %s87 = sadd.s32 %s86, 1
      %p90 = scmp.eq.s32.totalorder %s31, 1
      %p91 = scmp.ne.s32.totalorder %s86, %s88
      %p92 = scmp.eq.s32.totalorder %s31, 0
      %p93 = por %p91, %p92
      %p94 = scmp.ne.s32.totalorder %s86, %s88
      %p95 = scmp.eq.s32.totalorder %s36, 1
      %p96 = por %p94, %p95
      %p97 = scmp.ne.s32.totalorder %s88, %s89
      %p98 = scmp.eq.s32.totalorder %s36, 0
      %p99 = por %p97, %p98
      %p100 = scmp.ne.s32.totalorder %s88, %s89
      %p101 = scmp.eq.s32.totalorder %s37, 1
      %p102 = por %p100, %p101
      %p104 = scmp.ne.s32.totalorder %s89, %s103
      %p105 = scmp.eq.s32.totalorder %s37, 0
      %p106 = por %p104, %p105
      %s108 = sadd.s32 %s107, 1
      %p111 = scmp.eq.s32.totalorder %s31, 1
      %p112 = scmp.ne.s32.totalorder %s107, %s109
      %p113 = scmp.eq.s32.totalorder %s31, 0
      %p114 = por %p112, %p113
      %p115 = scmp.ne.s32.totalorder %s107, %s109
      %p116 = scmp.eq.s32.totalorder %s36, 1
      %p117 = por %p115, %p116
      %p118 = scmp.ne.s32.totalorder %s109, %s110
      %p119 = scmp.eq.s32.totalorder %s36, 0
      %p120 = por %p118, %p119
      %p121 = scmp.ne.s32.totalorder %s109, %s110
      %p122 = scmp.eq.s32.totalorder %s37, 1
      %p123 = por %p121, %p122
      %p125 = scmp.ne.s32.totalorder %s110, %s124
      %p126 = scmp.eq.s32.totalorder %s37, 0
      %p127 = por %p125, %p126
      %s129 = sadd.s32 %s128, 1
      %p132 = scmp.eq.s32.totalorder %s31, 1
      %p133 = scmp.ne.s32.totalorder %s128, %s130
      %p134 = scmp.eq.s32.totalorder %s31, 0
      %p135 = por %p133, %p134
      %p136 = scmp.ne.s32.totalorder %s128, %s130
      %p137 = scmp.eq.s32.totalorder %s36, 1
      %p138 = por %p136, %p137
      %p139 = scmp.ne.s32.totalorder %s130, %s131
      %p140 = scmp.eq.s32.totalorder %s36, 0
      %p141 = por %p139, %p140
      %p142 = scmp.ne.s32.totalorder %s130, %s131
      %p143 = scmp.eq.s32.totalorder %s37, 1
      %p144 = por %p142, %p143
      %p146 = scmp.ne.s32.totalorder %s131, %s145
      %p147 = scmp.eq.s32.totalorder %s37, 0
      %p148 = por %p146, %p147
      %s150 = sadd.s32 %s149, 1
      %p153 = scmp.eq.s32.totalorder %s31, 1
      %p154 = scmp.ne.s32.totalorder %s149, %s151
      %p155 = scmp.eq.s32.totalorder %s31, 0
      %p156 = por %p154, %p155
      %p157 = scmp.ne.s32.totalorder %s149, %s151
      %p158 = scmp.eq.s32.totalorder %s36, 1
      %p159 = por %p157, %p158
      %p160 = scmp.ne.s32.totalorder %s151, %s152
      %p161 = scmp.eq.s32.totalorder %s36, 0
      %p162 = por %p160, %p161
      %p163 = scmp.ne.s32.totalorder %s151, %s152
      %p164 = scmp.eq.s32.totalorder %s37, 1
      %p165 = por %p163, %p164
      %p167 = scmp.ne.s32.totalorder %s152, %s166
      %p168 = scmp.eq.s32.totalorder %s37, 0
      %p169 = por %p167, %p168
      %s171 = sadd.s32 %s170, 1
      %p174 = scmp.eq.s32.totalorder %s31, 1
      %p175 = scmp.ne.s32.totalorder %s170, %s172
      %p176 = scmp.eq.s32.totalorder %s31, 0
      %p177 = por %p175, %p176
      %p178 = scmp.ne.s32.totalorder %s170, %s172
      %p179 = scmp.eq.s32.totalorder %s36, 1
      %p180 = por %p178, %p179
      %p181 = scmp.ne.s32.totalorder %s172, %s173
      %p182 = scmp.eq.s32.totalorder %s36, 0
      %p183 = por %p181, %p182
      %p184 = scmp.ne.s32.totalorder %s172, %s173
      %p185 = scmp.eq.s32.totalorder %s37, 1
      %p186 = por %p184, %p185
      %p188 = scmp.ne.s32.totalorder %s173, %s187
      %p189 = scmp.eq.s32.totalorder %s37, 0
      %p190 = por %p188, %p189
      %s192 = sadd.s32 %s191, 1
      %p195 = scmp.eq.s32.totalorder %s31, 1
      %p196 = scmp.ne.s32.totalorder %s191, %s193
      %p197 = scmp.eq.s32.totalorder %s31, 0
      %p198 = por %p196, %p197
      %p199 = scmp.ne.s32.totalorder %s191, %s193
      %p200 = scmp.eq.s32.totalorder %s36, 1
      %p201 = por %p199, %p200
      %p202 = scmp.ne.s32.totalorder %s193, %s194
      %p203 = scmp.eq.s32.totalorder %s36, 0
      %p204 = por %p202, %p203
      %p205 = scmp.ne.s32.totalorder %s193, %s194
      %p206 = scmp.eq.s32.totalorder %s37, 1
      %p207 = por %p205, %p206
      %p209 = scmp.ne.s32.totalorder %s194, %s208
      %p210 = scmp.eq.s32.totalorder %s37, 0
      %p211 = por %p209, %p210
      %s213 = sadd.s32 %s212, 1
      %p216 = scmp.eq.s32.totalorder %s31, 1
      %p217 = scmp.ne.s32.totalorder %s212, %s214
      %p218 = scmp.eq.s32.totalorder %s31, 0
      %p219 = por %p217, %p218
      %p220 = scmp.ne.s32.totalorder %s212, %s214
      %p221 = scmp.eq.s32.totalorder %s36, 1
      %p222 = por %p220, %p221
      %p223 = scmp.ne.s32.totalorder %s214, %s215
      %p224 = scmp.eq.s32.totalorder %s36, 0
      %p225 = por %p223, %p224
      %p226 = scmp.ne.s32.totalorder %s214, %s215
      %p227 = scmp.eq.s32.totalorder %s37, 1
      %p228 = por %p226, %p227
      %p230 = scmp.ne.s32.totalorder %s215, %s229
      %p231 = scmp.eq.s32.totalorder %s37, 0
      %p232 = por %p230, %p231
      %s234 = sadd.s32 %s233, 1
      %p237 = scmp.eq.s32.totalorder %s31, 1
      %p238 = scmp.ne.s32.totalorder %s233, %s235
      %p239 = scmp.eq.s32.totalorder %s31, 0
      %p240 = por %p238, %p239
      %p241 = scmp.ne.s32.totalorder %s233, %s235
      %p242 = scmp.eq.s32.totalorder %s36, 1
      %p243 = por %p241, %p242
      %p244 = scmp.ne.s32.totalorder %s235, %s236
      %p245 = scmp.eq.s32.totalorder %s36, 0
      %p246 = por %p244, %p245
      %p247 = scmp.ne.s32.totalorder %s235, %s236
      %p248 = scmp.eq.s32.totalorder %s37, 1
      %p249 = por %p247, %p248
      %p251 = scmp.ne.s32.totalorder %s236, %s250
      %p252 = scmp.eq.s32.totalorder %s37, 0
      %p253 = por %p251, %p252
      %s255 = sadd.s32 %s254, 1
      %p258 = scmp.eq.s32.totalorder %s31, 1
      %p259 = scmp.ne.s32.totalorder %s254, %s256
      %p260 = scmp.eq.s32.totalorder %s31, 0
      %p261 = por %p259, %p260
      %p262 = scmp.ne.s32.totalorder %s254, %s256
      %p263 = scmp.eq.s32.totalorder %s36, 1
      %p264 = por %p262, %p263
      %p265 = scmp.ne.s32.totalorder %s256, %s257
      %p266 = scmp.eq.s32.totalorder %s36, 0
      %p267 = por %p265, %p266
      %p268 = scmp.ne.s32.totalorder %s256, %s257
      %p269 = scmp.eq.s32.totalorder %s37, 1
      %p270 = por %p268, %p269
      %p272 = scmp.ne.s32.totalorder %s257, %s271
      %p273 = scmp.eq.s32.totalorder %s37, 0
      %p274 = por %p272, %p273
      %s276 = sadd.s32 %s275, 1
      %p279 = scmp.eq.s32.totalorder %s31, 1
      %p280 = scmp.ne.s32.totalorder %s275, %s277
      %p281 = scmp.eq.s32.totalorder %s31, 0
      %p282 = por %p280, %p281
      %p283 = scmp.ne.s32.totalorder %s275, %s277
      %p284 = scmp.eq.s32.totalorder %s36, 1
      %p285 = por %p283, %p284
      %p286 = scmp.ne.s32.totalorder %s277, %s278
      %p287 = scmp.eq.s32.totalorder %s36, 0
      %p288 = por %p286, %p287
      %p289 = scmp.ne.s32.totalorder %s277, %s278
      %p290 = scmp.eq.s32.totalorder %s37, 1
      %p291 = por %p289, %p290
      %p293 = scmp.ne.s32.totalorder %s278, %s292
      %p294 = scmp.eq.s32.totalorder %s37, 0
      %p295 = por %p293, %p294
      %s297 = sadd.s32 %s296, 1
      %p300 = scmp.eq.s32.totalorder %s31, 1
      %p301 = scmp.ne.s32.totalorder %s296, %s298
      %p302 = scmp.eq.s32.totalorder %s31, 0
      %p303 = por %p301, %p302
      %p304 = scmp.ne.s32.totalorder %s296, %s298
      %p305 = scmp.eq.s32.totalorder %s36, 1
      %p306 = por %p304, %p305
      %p307 = scmp.ne.s32.totalorder %s298, %s299
      %p308 = scmp.eq.s32.totalorder %s36, 0
      %p309 = por %p307, %p308
      %p310 = scmp.ne.s32.totalorder %s298, %s299
      %p311 = scmp.eq.s32.totalorder %s37, 1
      %p312 = por %p310, %p311
      %p314 = scmp.ne.s32.totalorder %s299, %s313
      %p315 = scmp.eq.s32.totalorder %s37, 0
      %p316 = por %p314, %p315
      %s317 = ssub.s32 %s31, %s38
      %p318 = scmp.eq.s32.totalorder %s317, 0
      %s320 = sadd.s32 %s319, 1
      %s321 = scalar_select %p318, %s319, %s320
      %p324 = pneg %p318
      %p325 = scmp.eq.s32.totalorder %s31, 1
      %p326 = por %p324, %p325
      %p327 = scmp.ne.s32.totalorder %s319, %s322
      %p328 = scmp.eq.s32.totalorder %s31, 0
      %p329 = por %p327, %p328
      %p330 = scmp.ne.s32.totalorder %s319, %s322
      %p331 = scmp.eq.s32.totalorder %s36, 1
      %p332 = por %p330, %p331
      %p333 = scmp.ne.s32.totalorder %s322, %s323
      %p334 = scmp.eq.s32.totalorder %s36, 0
      %p335 = por %p333, %p334
      %p336 = scmp.ne.s32.totalorder %s322, %s323
      %p337 = scmp.eq.s32.totalorder %s37, 1
      %p338 = por %p336, %p337
      %p340 = scmp.ne.s32.totalorder %s323, %s339
      %p341 = scmp.eq.s32.totalorder %s37, 0
      %p342 = por %p340, %p341
      %p343 = scmp.le.s32.totalorder 1, %s31
      %p344 = scmp.lt.s32.totalorder %s31, 3
      %p345 = pnand %p343, %p344
      %p346 = pneg %p345
      // Predicated region
      $region9: #{tpu_custom_call.1} parent=5 // pred_check
        _
      $region10: #{tpu_custom_call.1} parent=5 // pred_check_branch
        %348 = sbr.rel (%p345) target = $region12
      $region11: #{tpu_custom_call.1} parent=5 // pred_region
        %s349 = ssub.s32 %s31, 1
        // Predicated region
        $region13: #{tpu_custom_call.1} parent=11 // pred_check
          %p350 = pneg %p78
        $region14: #{tpu_custom_call.1} parent=11 // pred_check_branch
          %352 = sbr.rel (%p350) target = $region16
        $region15: #{tpu_custom_call.1} parent=11 // pred_region
          %s354 = ssub.s32 5760, 5760
          %355 = vsyncadd [#allocation6], %s354
          %s356 = sshll.u32 [#allocation5], 4
          %s357 = int_to_ptr.vmem [resolvable:$true] %s356
          %362 = dma.hbm_to_vmem [thread:$0]  %s1, 5760, %s357, [#allocation6], 640, 640, 40
        $region16: #{tpu_custom_call.1} parent=11 // pred_fallthru
          _
        // Predicated region
        $region17: #{tpu_custom_call.1} parent=11 // pred_check
          %p363 = pneg %p99
        $region18: #{tpu_custom_call.1} parent=11 // pred_check_branch
          %365 = sbr.rel (%p363) target = $region20
        $region19: #{tpu_custom_call.1} parent=11 // pred_region
          %s367 = ssub.s32 80, 80
          %368 = vsyncadd [#allocation6], %s367
          %s370 = sshll.u32 [#allocation7], 4
          %s371 = int_to_ptr.vmem [resolvable:$true] %s370
          %373 = dma.hbm_to_vmem [thread:$0]  %s2, 80, %s371, [#allocation6]
        $region20: #{tpu_custom_call.1} parent=11 // pred_fallthru
          _
        // Predicated region
        $region21: #{tpu_custom_call.1} parent=11 // pred_check
          %p374 = pneg %p120
        $region22: #{tpu_custom_call.1} parent=11 // pred_check_branch
          %376 = sbr.rel (%p374) target = $region24
        $region23: #{tpu_custom_call.1} parent=11 // pred_region
          %s378 = ssub.s32 44800, 44800
          %379 = vsyncadd [#allocation9], %s378
          %s380 = sshll.u32 [#allocation8], 4
          %s381 = int_to_ptr.vmem [resolvable:$true] %s380
          %386 = dma.hbm_to_vmem [thread:$0]  %s3, 44800, %s381, [#allocation9], 640, 640, 40
        $region24: #{tpu_custom_call.1} parent=11 // pred_fallthru
          _
        // Predicated region
        $region25: #{tpu_custom_call.1} parent=11 // pred_check
          %p387 = pneg %p141
        $region26: #{tpu_custom_call.1} parent=11 // pred_check_branch
          %389 = sbr.rel (%p387) target = $region28
        $region27: #{tpu_custom_call.1} parent=11 // pred_region
          %s391 = ssub.s32 80, 80
          %392 = vsyncadd [#allocation9], %s391
          %s394 = sshll.u32 [#allocation10], 4
          %s395 = int_to_ptr.vmem [resolvable:$true] %s394
          %397 = dma.hbm_to_vmem [thread:$0]  %s4, 80, %s395, [#allocation9]
        $region28: #{tpu_custom_call.1} parent=11 // pred_fallthru
          _
        // Predicated region
        $region29: #{tpu_custom_call.1} parent=11 // pred_check
          %p398 = pneg %p162
        $region30: #{tpu_custom_call.1} parent=11 // pred_check_branch
          %400 = sbr.rel (%p398) target = $region32
        $region31: #{tpu_custom_call.1} parent=11 // pred_region
          %s402 = ssub.s32 34816, 34816
          %403 = vsyncadd [#allocation12], %s402
          %s404 = sshll.u32 [#allocation11], 4
          %s405 = int_to_ptr.vmem [resolvable:$true] %s404
          %410 = dma.hbm_to_vmem [thread:$0]  %s5, 34816, %s405, [#allocation12], 512, 512, 32
        $region32: #{tpu_custom_call.1} parent=11 // pred_fallthru
          _
        // Predicated region
        $region33: #{tpu_custom_call.1} parent=11 // pred_check
          %p411 = pneg %p183
        $region34: #{tpu_custom_call.1} parent=11 // pred_check_branch
          %413 = sbr.rel (%p411) target = $region36
        $region35: #{tpu_custom_call.1} parent=11 // pred_region
          %s415 = ssub.s32 64, 64
          %416 = vsyncadd [#allocation12], %s415
          %s418 = sshll.u32 [#allocation13], 4
          %s419 = int_to_ptr.vmem [resolvable:$true] %s418
          %421 = dma.hbm_to_vmem [thread:$0]  %s6, 64, %s419, [#allocation12]
        $region36: #{tpu_custom_call.1} parent=11 // pred_fallthru
          _
        // Predicated region
        $region37: #{tpu_custom_call.1} parent=11 // pred_check
          %p422 = pneg %p204
        $region38: #{tpu_custom_call.1} parent=11 // pred_check_branch
          %424 = sbr.rel (%p422) target = $region40
        $region39: #{tpu_custom_call.1} parent=11 // pred_region
          %s426 = ssub.s32 7680, 7680
          %427 = vsyncadd [#allocation15], %s426
          %s428 = sshll.u32 [#allocation14], 4
          %s429 = int_to_ptr.vmem [resolvable:$true] %s428
          %434 = dma.hbm_to_vmem [thread:$0]  %s7, 7680, %s429, [#allocation15], 128, 128, 8
        $region40: #{tpu_custom_call.1} parent=11 // pred_fallthru
          _
        // Predicated region
        $region41: #{tpu_custom_call.1} parent=11 // pred_check
          %p435 = pneg %p225
        $region42: #{tpu_custom_call.1} parent=11 // pred_check_branch
          %437 = sbr.rel (%p435) target = $region44
        $region43: #{tpu_custom_call.1} parent=11 // pred_region
          %s439 = ssub.s32 16, 16
          %440 = vsyncadd [#allocation15], %s439
          %s442 = sshll.u32 [#allocation16], 4
          %s443 = int_to_ptr.vmem [resolvable:$true] %s442
          %445 = dma.hbm_to_vmem [thread:$0]  %s8, 16, %s443, [#allocation15]
        $region44: #{tpu_custom_call.1} parent=11 // pred_fallthru
          _
        // Predicated region
        $region45: #{tpu_custom_call.1} parent=11 // pred_check
          %p446 = pneg %p246
        $region46: #{tpu_custom_call.1} parent=11 // pred_check_branch
          %448 = sbr.rel (%p446) target = $region48
        $region47: #{tpu_custom_call.1} parent=11 // pred_region
          _
        $region48: #{tpu_custom_call.1} parent=11 // pred_fallthru
          _
        // Predicated region
        $region49: #{tpu_custom_call.1} parent=11 // pred_check
          %p449 = pneg %p267
        $region50: #{tpu_custom_call.1} parent=11 // pred_check_branch
          %451 = sbr.rel (%p449) target = $region52
        $region51: #{tpu_custom_call.1} parent=11 // pred_region
          %s453 = ssub.s32 16, 16
          %454 = vsyncadd [#allocation18], %s453
          %s456 = sshll.u32 [#allocation17], 4
          %s457 = int_to_ptr.vmem [resolvable:$true] %s456
          %459 = dma.hbm_to_vmem [thread:$0]  %s10, 16, %s457, [#allocation18]
        $region52: #{tpu_custom_call.1} parent=11 // pred_fallthru
          _
        // Predicated region
        $region53: #{tpu_custom_call.1} parent=11 // pred_check
          %p460 = pneg %p288
        $region54: #{tpu_custom_call.1} parent=11 // pred_check_branch
          %462 = sbr.rel (%p460) target = $region56
        $region55: #{tpu_custom_call.1} parent=11 // pred_region
          %s464 = ssub.s32 1024, 1024
          %465 = vsyncadd [#allocation18], %s464
          %s466 = sshll.u32 [#allocation19], 4
          %s467 = int_to_ptr.vmem [resolvable:$true] %s466
          %472 = dma.hbm_to_vmem [thread:$0]  %s11, 1024, %s467, [#allocation18], 128, 128, 8
        $region56: #{tpu_custom_call.1} parent=11 // pred_fallthru
          _
        // Predicated region
        $region57: #{tpu_custom_call.1} parent=11 // pred_check
          %p473 = pneg %p309
        $region58: #{tpu_custom_call.1} parent=11 // pred_check_branch
          %475 = sbr.rel (%p473) target = $region60
        $region59: #{tpu_custom_call.1} parent=11 // pred_region
          %s477 = ssub.s32 16, 16
          %478 = vsyncadd [#allocation21], %s477
          %s480 = sshll.u32 [#allocation20], 4
          %s481 = int_to_ptr.vmem [resolvable:$true] %s480
          %483 = dma.hbm_to_vmem [thread:$0]  %s12, 16, %s481, [#allocation21]
        $region60: #{tpu_custom_call.1} parent=11 // pred_fallthru
          _
      $region12: #{tpu_custom_call.1} parent=5 // pred_fallthru
        _
      %p484 = scmp.lt.s32.totalorder %s31, 2
      // Predicated region
      $region61: #{tpu_custom_call.1} parent=5 // pred_check
        %p485 = pneg %p484
      $region62: #{tpu_custom_call.1} parent=5 // pred_check_branch
        %487 = sbr.rel (%p485) target = $region64
      $region63: #{tpu_custom_call.1} parent=5 // pred_region
        // Predicated region
        $region65: #{tpu_custom_call.1} parent=63 // pred_check
          %p488 = pneg %p51
        $region66: #{tpu_custom_call.1} parent=63 // pred_check_branch
          %490 = sbr.rel (%p488) target = $region68
        $region67: #{tpu_custom_call.1} parent=63 // pred_region
          %s491 = sand.u32 %s41, 1
          %s492 = scalar_lea.sflag [#allocation3], %s491
          %s493 = sand.u32 %s41, 1
          %s494 = smul.addr %s493, 8
          %s495 = scalar_lea.vmem [#allocation2], %s494
          %s497 = ssub.s32 128, 128
          %498 = vsyncadd %s492, %s497
          %s499 = smul.addr %s31, 128
          %s500 = scalar_lea.hbm %s0, %s499
          %s502 = sshll.u32 %s495, 4
          %s503 = int_to_ptr.vmem [resolvable:$true] %s502
          %505 = dma.hbm_to_vmem [thread:$0]  %s500, 128, %s503, %s492
        $region68: #{tpu_custom_call.1} parent=63 // pred_fallthru
          _
      $region64: #{tpu_custom_call.1} parent=5 // pred_fallthru
        _
      %p506 = scmp.le.s32.totalorder 1, %s31
      %p507 = scmp.lt.s32.totalorder %s31, 3
      %p508 = pnand %p506, %p507
      %p509 = pneg %p508
      // Predicated region
      $region69: #{tpu_custom_call.1} parent=5 // pred_check
        _
      $region70: #{tpu_custom_call.1} parent=5 // pred_check_branch
        %511 = sbr.rel (%p508) target = $region72
      $region71: #{tpu_custom_call.1} parent=5 // pred_region
        %s512 = ssub.s32 %s31, 1
        %s513 = sand.u32 %s44, 1
        %s514 = scalar_lea.sflag [#allocation3], %s513
        %s515 = sand.u32 %s44, 1
        %s516 = smul.addr %s515, 8
        %s517 = scalar_lea.vmem [#allocation2], %s516
        // Predicated region
        $region73: #{tpu_custom_call.1} parent=71 // pred_check
          %p518 = pneg %p57
        $region74: #{tpu_custom_call.1} parent=71 // pred_check_branch
          %520 = sbr.rel (%p518) target = $region76
        $region75: #{tpu_custom_call.1} parent=71 // pred_region
          %521 = dma.done %s514, 128
        $region76: #{tpu_custom_call.1} parent=71 // pred_fallthru
          _
        // Predicated region
        $region77: #{tpu_custom_call.1} parent=71 // pred_check
          %p522 = pneg %p78
        $region78: #{tpu_custom_call.1} parent=71 // pred_check_branch
          %524 = sbr.rel (%p522) target = $region80
        $region79: #{tpu_custom_call.1} parent=71 // pred_region
          %525 = dma.done [#allocation6], 5760
        $region80: #{tpu_custom_call.1} parent=71 // pred_fallthru
          _
        // Predicated region
        $region81: #{tpu_custom_call.1} parent=71 // pred_check
          %p526 = pneg %p99
        $region82: #{tpu_custom_call.1} parent=71 // pred_check_branch
          %528 = sbr.rel (%p526) target = $region84
        $region83: #{tpu_custom_call.1} parent=71 // pred_region
          %529 = dma.done [#allocation6], 80
        $region84: #{tpu_custom_call.1} parent=71 // pred_fallthru
          _
        // Predicated region
        $region85: #{tpu_custom_call.1} parent=71 // pred_check
          %p530 = pneg %p120
        $region86: #{tpu_custom_call.1} parent=71 // pred_check_branch
          %532 = sbr.rel (%p530) target = $region88
        $region87: #{tpu_custom_call.1} parent=71 // pred_region
          %533 = dma.done [#allocation9], 44800
        $region88: #{tpu_custom_call.1} parent=71 // pred_fallthru
          _
        // Predicated region
        $region89: #{tpu_custom_call.1} parent=71 // pred_check
          %p534 = pneg %p141
        $region90: #{tpu_custom_call.1} parent=71 // pred_check_branch
          %536 = sbr.rel (%p534) target = $region92
        $region91: #{tpu_custom_call.1} parent=71 // pred_region
          %537 = dma.done [#allocation9], 80
        $region92: #{tpu_custom_call.1} parent=71 // pred_fallthru
          _
        // Predicated region
        $region93: #{tpu_custom_call.1} parent=71 // pred_check
          %p538 = pneg %p162
        $region94: #{tpu_custom_call.1} parent=71 // pred_check_branch
          %540 = sbr.rel (%p538) target = $region96
        $region95: #{tpu_custom_call.1} parent=71 // pred_region
          %541 = dma.done [#allocation12], 34816
        $region96: #{tpu_custom_call.1} parent=71 // pred_fallthru
          _
        // Predicated region
        $region97: #{tpu_custom_call.1} parent=71 // pred_check
          %p542 = pneg %p183
        $region98: #{tpu_custom_call.1} parent=71 // pred_check_branch
          %544 = sbr.rel (%p542) target = $region100
        $region99: #{tpu_custom_call.1} parent=71 // pred_region
          %545 = dma.done [#allocation12], 64
        $region100: #{tpu_custom_call.1} parent=71 // pred_fallthru
          _
        // Predicated region
        $region101: #{tpu_custom_call.1} parent=71 // pred_check
          %p546 = pneg %p204
        $region102: #{tpu_custom_call.1} parent=71 // pred_check_branch
          %548 = sbr.rel (%p546) target = $region104
        $region103: #{tpu_custom_call.1} parent=71 // pred_region
          %549 = dma.done [#allocation15], 7680
        $region104: #{tpu_custom_call.1} parent=71 // pred_fallthru
          _
        // Predicated region
        $region105: #{tpu_custom_call.1} parent=71 // pred_check
          %p550 = pneg %p225
        $region106: #{tpu_custom_call.1} parent=71 // pred_check_branch
          %552 = sbr.rel (%p550) target = $region108
        $region107: #{tpu_custom_call.1} parent=71 // pred_region
          %553 = dma.done [#allocation15], 16
        $region108: #{tpu_custom_call.1} parent=71 // pred_fallthru
          _
        // Predicated region
        $region109: #{tpu_custom_call.1} parent=71 // pred_check
          %p554 = pneg %p267
        $region110: #{tpu_custom_call.1} parent=71 // pred_check_branch
          %556 = sbr.rel (%p554) target = $region112
        $region111: #{tpu_custom_call.1} parent=71 // pred_region
          %557 = dma.done [#allocation18], 16
        $region112: #{tpu_custom_call.1} parent=71 // pred_fallthru
          _
        // Predicated region
        $region113: #{tpu_custom_call.1} parent=71 // pred_check
          %p558 = pneg %p288
        $region114: #{tpu_custom_call.1} parent=71 // pred_check_branch
          %560 = sbr.rel (%p558) target = $region116
        $region115: #{tpu_custom_call.1} parent=71 // pred_region
          %561 = dma.done [#allocation18], 1024
        $region116: #{tpu_custom_call.1} parent=71 // pred_fallthru
          _
        // Predicated region
        $region117: #{tpu_custom_call.1} parent=71 // pred_check
          %p562 = pneg %p309
        $region118: #{tpu_custom_call.1} parent=71 // pred_check_branch
          %564 = sbr.rel (%p562) target = $region120
        $region119: #{tpu_custom_call.1} parent=71 // pred_region
          %565 = dma.done [#allocation21], 16
        $region120: #{tpu_custom_call.1} parent=71 // pred_fallthru
          _
        %s566 = sand.u32 %s44, 1
        %s567 = scalar_lea.sflag [#allocation3], %s566
        %s568 = sand.u32 %s44, 1
        %s569 = smul.addr %s568, 8
        %s570 = scalar_lea.vmem [#allocation2], %s569
        %p571 = pneg %p57
        %p572 = pneg %p54
        %p573 = pneg %p78
        %p574 = pneg %p75
        %p575 = pneg %p99
        %p576 = pneg %p96
        %p577 = pneg %p120
        %p578 = pneg %p117
        %p579 = pneg %p141
        %p580 = pneg %p138
        %p581 = pneg %p162
        %p582 = pneg %p159
        %p583 = pneg %p183
        %p584 = pneg %p180
        %p585 = pneg %p204
        %p586 = pneg %p201
        %p587 = pneg %p225
        %p588 = pneg %p222
        %p589 = pneg %p246
        %p590 = pneg %p243
        %p591 = pneg %p267
        %p592 = pneg %p264
        %p593 = pneg %p288
        %p594 = pneg %p285
        %p595 = pneg %p309
        %p596 = pneg %p306
        %p597 = pneg %p335
        %p598 = pneg %p332
        %s599 = sand.u32 %s322, 1
        %s600 = scalar_lea.sflag [#allocation4], %s599
        %s601 = sand.u32 %s322, 1
        %s602 = smul.addr %s601, 8
        %s603 = scalar_lea.vmem [#allocation22], %s602
        %v604 = vld [vmem:[%s517] sm:$0xff]
        %v605 = vld [vmem:[#allocation5] sm:$0xff]
        %v606 = vld [vmem:[#allocation5 + $0x8] sm:$0xff]
        %v607 = vld [vmem:[#allocation5 + $0x10] sm:$0xff]
        %v608 = vld [vmem:[#allocation5 + $0x18] sm:$0xff]
        %v609 = vld [vmem:[#allocation5 + $0x20] sm:$0xff]
        %v610 = vld [vmem:[#allocation5 + $0x28] sm:$0xff]
        %v611 = vld [vmem:[#allocation5 + $0x30] sm:$0xff]
        %v612 = vld [vmem:[#allocation5 + $0x38] sm:$0xff]
        %v613 = vld [vmem:[#allocation5 + $0x40] sm:$0xff]
        %v614 = vld [vmem:[#allocation5 + $0x48] sm:$0xff]
        %v615 = vld [vmem:[#allocation5 + $0x50] sm:$0xff]
        %v616 = vld [vmem:[#allocation5 + $0x58] sm:$0xff]
        %v617 = vld [vmem:[#allocation5 + $0x60] sm:$0xff]
        %v618 = vld [vmem:[#allocation5 + $0x68] sm:$0xff]
        %v619 = vld [vmem:[#allocation5 + $0x70] sm:$0xff]
        %v620 = vld [vmem:[#allocation5 + $0x78] sm:$0xff]
        %v621 = vld [vmem:[#allocation5 + $0x80] sm:$0xff]
        %v622 = vld [vmem:[#allocation5 + $0x88] sm:$0xff]
        %v623 = vld [vmem:[#allocation5 + $0x90] sm:$0xff]
        %v624 = vld [vmem:[#allocation5 + $0x98] sm:$0xff]
        %v625 = vld [vmem:[#allocation5 + $0xa0] sm:$0xff]
        %v626 = vld [vmem:[#allocation5 + $0xa8] sm:$0xff]
        %v627 = vld [vmem:[#allocation5 + $0xb0] sm:$0xff]
        %v628 = vld [vmem:[#allocation5 + $0xb8] sm:$0xff]
        %v629 = vld [vmem:[#allocation5 + $0xc0] sm:$0xff]
        %v630 = vld [vmem:[#allocation5 + $0xc8] sm:$0xff]
        %v631 = vld [vmem:[#allocation5 + $0xd0] sm:$0xff]
        %v632 = vld [vmem:[#allocation5 + $0xd8] sm:$0xff]
        %v633 = vld [vmem:[#allocation5 + $0xe0] sm:$0xff]
        %v634 = vld [vmem:[#allocation5 + $0xe8] sm:$0xff]
        %v635 = vld [vmem:[#allocation5 + $0xf0] sm:$0xff]
        %v636 = vld [vmem:[#allocation5 + $0xf8] sm:$0xff]
        %v637 = vld [vmem:[#allocation5 + $0x100] sm:$0xff]
        %v638 = vld [vmem:[#allocation5 + $0x108] sm:$0xff]
        %v639 = vld [vmem:[#allocation5 + $0x110] sm:$0xff]
        %v640 = vld [vmem:[#allocation5 + $0x118] sm:$0xff]
        %v641 = vld [vmem:[#allocation5 + $0x120] sm:$0xff]
        %v642 = vld [vmem:[#allocation5 + $0x128] sm:$0xff]
        %v643 = vld [vmem:[#allocation5 + $0x130] sm:$0xff]
        %v644 = vld [vmem:[#allocation5 + $0x138] sm:$0xff]
        %v645 = vld [vmem:[#allocation5 + $0x140] sm:$0x3f]
        %v646 = vld [vmem:[#allocation5 + $0x148] sm:$0x3f]
        %v647 = vld [vmem:[#allocation5 + $0x150] sm:$0x3f]
        %v648 = vld [vmem:[#allocation5 + $0x158] sm:$0x3f]
        %v649 = vld [vmem:[#allocation5 + $0x160] sm:$0x3f]
        %v650 = vld [vmem:[#allocation7] sm:$0x1f]
        %v652 = vlaneseq
        %v653 = vshrl.u32 %v652, 7
        %v654 = vsub.s32 0, %v653
        %v655 = vrot.slane %v650, %v654
        %v656 = vlaneseq
        %v657 = vshrl.u32 %v656, 7
        %v658 = vsub.s32 1, %v657
        %v659 = vrot.slane %v650, %v658
        %v660 = vlaneseq
        %v661 = vshrl.u32 %v660, 7
        %v662 = vsub.s32 2, %v661
        %v663 = vrot.slane %v650, %v662
        %v664 = vlaneseq
        %v665 = vshrl.u32 %v664, 7
        %v666 = vsub.s32 3, %v665
        %v667 = vrot.slane %v650, %v666
        %v668 = vlaneseq
        %v669 = vshrl.u32 %v668, 7
        %v670 = vsub.s32 4, %v669
        %v671 = vrot.slane %v650, %v670
        %vm677 = vcmask 572416
        %v679 = vsel %vm677, %v604, 0
        %vm681 = vcmask 1045504
        %v683 = vsel %vm681, %v645, 0
        %v686 = vsel %vm681, %v646, 0
        %v689 = vsel %vm681, %v647, 0
        %v692 = vsel %vm681, %v648, 0
        %v695 = vsel %vm681, %v649, 0
        %697 = vmatprep.subr.mxu0 %v606
        %698 = vmatpush1.msra.mxu0 %v605
        %699 = vmatprep.subr.mxu0 %v611
        %700 = vmatpush1.msra.mxu0 %v610
        %701 = vmatprep.subr.mxu0 %v616
        %702 = vmatpush1.msra.mxu0 %v615
        %703 = vmatprep.subr.mxu0 %v621
        %704 = vmatpush1.msra.mxu0 %v620
        %705 = vmatprep.subr.mxu0 %v626
        %706 = vmatpush1.msra.mxu0 %v625
        %707 = vmatprep.subr.mxu0 %v631
        %708 = vmatpush1.msra.mxu0 %v630
        %709 = vmatprep.subr.mxu0 %v636
        %710 = vmatpush1.msra.mxu0 %v635
        %711 = vmatprep.subr.mxu0 %v641
        %712 = vmatpush1.msra.mxu0 %v640
        %713 = vmatprep.subr.mxu0 %v686
        %714 = vmatpush1.msra.mxu0 %v683
        %715 = vmatprep.subr.mxu0 0.0
        %716 = vmatpush1.msra.mxu0 0.0
        %717 = vmatprep.subr.mxu0 0.0
        %718 = vmatpush1.msra.mxu0 0.0
        %719 = vmatprep.subr.mxu0 0.0
        %720 = vmatpush1.msra.mxu0 0.0
        %721 = vmatprep.subr.mxu0 0.0
        %722 = vmatpush1.msra.mxu0 0.0
        %723 = vmatprep.subr.mxu0 0.0
        %724 = vmatpush1.msra.mxu0 0.0
        %725 = vmatprep.subr.mxu0 0.0
        %726 = vmatpush1.msra.mxu0 0.0
        %727 = vmatprep.subr.mxu0 0.0
        %728 = vmatpush1.msra.mxu0 0.0
        %729 = vmatprep.subr.mxu0 0.0
        %730 = vmatpush1.msra.mxu0 0.0
        %731 = vmatprep.subr.mxu0 0.0
        %732 = vmatpush1.msra.mxu0 0.0
        %733 = vmatprep.subr.mxu0 0.0
        %734 = vmatpush1.msra.mxu0 0.0
        %735 = vmatprep.subr.mxu0 0.0
        %736 = vmatpush1.msra.mxu0 0.0
        %737 = vmatprep.subr.mxu0 0.0
        %738 = vmatpush1.msra.mxu0 0.0
        %739 = vmatprep.subr.mxu0 0.0
        %740 = vmatpush1.msra.mxu0 0.0
        %741 = vmatprep.subr.mxu0 0.0
        %742 = vmatpush1.msra.mxu0 0.0
        %743 = vmatprep.subr.mxu0 0.0
        %744 = vmatpush1.msra.mxu0 0.0
        %745 = vmatprep.subr.mxu0 0.0
        %746 = vmatpush1.msra.mxu0 0.0
        %747 = vmatprep.subr.mxu0 0.0
        %748 = vmatpush1.msra.mxu0 0.0
        %749 = vmatprep.subr.mxu0 0.0
        %750 = vmatpush1.msra.mxu0 0.0
        %751 = vmatprep.subr.mxu0 0.0
        %752 = vmatpush1.msra.mxu0 0.0
        %753 = vmatprep.subr.mxu0 0.0
        %754 = vmatpush1.msra.mxu0 0.0
        %755 = vmatprep.subr.mxu0 0.0
        %756 = vmatpush1.msra.mxu0 0.0
        %757 = vmatprep.subr.mxu0 0.0
        %758 = vmatpush1.msra.mxu0 0.0
        %759 = vmatprep.subr.mxu0 0.0
        %760 = vmatpush1.msra.mxu0 0.0
        %761 = vmatprep.mubr.f32.mxu0 0.0
        %762 = vmatmul.mubr.f32.gmra.mrb[0].mxu0 %v679
        %v763 = vpop.f32.mrb[0].mxu0
        %v764 = vadd.f32 %v655, %v763
        %v765 = vpop.f32.mrb[0].mxu0
        %v766 = vadd.f32 %v659, %v765
        %767 = vdwg.mxu0
        %768 = vmatprep.subr.mxu0 %v608
        %769 = vmatpush1.msra.mxu0 %v607
        %770 = vmatprep.subr.mxu0 %v613
        %771 = vmatpush1.msra.mxu0 %v612
        %772 = vmatprep.subr.mxu0 %v618
        %773 = vmatpush1.msra.mxu0 %v617
        %774 = vmatprep.subr.mxu0 %v623
        %775 = vmatpush1.msra.mxu0 %v622
        %776 = vmatprep.subr.mxu0 %v628
        %777 = vmatpush1.msra.mxu0 %v627
        %778 = vmatprep.subr.mxu0 %v633
        %779 = vmatpush1.msra.mxu0 %v632
        %780 = vmatprep.subr.mxu0 %v638
        %781 = vmatpush1.msra.mxu0 %v637
        %782 = vmatprep.subr.mxu0 %v643
        %783 = vmatpush1.msra.mxu0 %v642
        %784 = vmatprep.subr.mxu0 %v692
        %785 = vmatpush1.msra.mxu0 %v689
        %786 = vmatprep.subr.mxu0 0.0
        %787 = vmatpush1.msra.mxu0 0.0
        %788 = vmatprep.subr.mxu0 0.0
        %789 = vmatpush1.msra.mxu0 0.0
        %790 = vmatprep.subr.mxu0 0.0
        %791 = vmatpush1.msra.mxu0 0.0
        %792 = vmatprep.subr.mxu0 0.0
        %793 = vmatpush1.msra.mxu0 0.0
        %794 = vmatprep.subr.mxu0 0.0
        %795 = vmatpush1.msra.mxu0 0.0
        %796 = vmatprep.subr.mxu0 0.0
        %797 = vmatpush1.msra.mxu0 0.0
        %798 = vmatprep.subr.mxu0 0.0
        %799 = vmatpush1.msra.mxu0 0.0
        %800 = vmatprep.subr.mxu0 0.0
        %801 = vmatpush1.msra.mxu0 0.0
        %802 = vmatprep.subr.mxu0 0.0
        %803 = vmatpush1.msra.mxu0 0.0
        %804 = vmatprep.subr.mxu0 0.0
        %805 = vmatpush1.msra.mxu0 0.0
        %806 = vmatprep.subr.mxu0 0.0
        %807 = vmatpush1.msra.mxu0 0.0
        %808 = vmatprep.subr.mxu0 0.0
        %809 = vmatpush1.msra.mxu0 0.0
        %810 = vmatprep.subr.mxu0 0.0
        %811 = vmatpush1.msra.mxu0 0.0
        %812 = vmatprep.subr.mxu0 0.0
        %813 = vmatpush1.msra.mxu0 0.0
        %814 = vmatprep.subr.mxu0 0.0
        %815 = vmatpush1.msra.mxu0 0.0
        %816 = vmatprep.subr.mxu0 0.0
        %817 = vmatpush1.msra.mxu0 0.0
        %818 = vmatprep.subr.mxu0 0.0
        %819 = vmatpush1.msra.mxu0 0.0
        %820 = vmatprep.subr.mxu0 0.0
        %821 = vmatpush1.msra.mxu0 0.0
        %822 = vmatprep.subr.mxu0 0.0
        %823 = vmatpush1.msra.mxu0 0.0
        %824 = vmatprep.subr.mxu0 0.0
        %825 = vmatpush1.msra.mxu0 0.0
        %826 = vmatprep.subr.mxu0 0.0
        %827 = vmatpush1.msra.mxu0 0.0
        %828 = vmatprep.subr.mxu0 0.0
        %829 = vmatpush1.msra.mxu0 0.0
        %830 = vmatprep.subr.mxu0 0.0
        %831 = vmatpush1.msra.mxu0 0.0
        %832 = vmatprep.mubr.f32.mxu0 0.0
        %833 = vmatmul.mubr.f32.gmra.mrb[0].mxu0 %v679
        %v834 = vpop.f32.mrb[0].mxu0
        %v835 = vadd.f32 %v663, %v834
        %v836 = vpop.f32.mrb[0].mxu0
        %v837 = vadd.f32 %v667, %v836
        %838 = vdwg.mxu0
        %839 = vmatprep.subr.mxu0 0.0
        %840 = vmatpush1.msra.mxu0 %v609
        %841 = vmatprep.subr.mxu0 0.0
        %842 = vmatpush1.msra.mxu0 %v614
        %843 = vmatprep.subr.mxu0 0.0
        %844 = vmatpush1.msra.mxu0 %v619
        %845 = vmatprep.subr.mxu0 0.0
        %846 = vmatpush1.msra.mxu0 %v624
        %847 = vmatprep.subr.mxu0 0.0
        %848 = vmatpush1.msra.mxu0 %v629
        %849 = vmatprep.subr.mxu0 0.0
        %850 = vmatpush1.msra.mxu0 %v634
        %851 = vmatprep.subr.mxu0 0.0
        %852 = vmatpush1.msra.mxu0 %v639
        %853 = vmatprep.subr.mxu0 0.0
        %854 = vmatpush1.msra.mxu0 %v644
        %855 = vmatprep.subr.mxu0 0.0
        %856 = vmatpush1.msra.mxu0 %v695
        %857 = vmatprep.subr.mxu0 0.0
        %858 = vmatpush1.msra.mxu0 0.0
        %859 = vmatprep.subr.mxu0 0.0
        %860 = vmatpush1.msra.mxu0 0.0
        %861 = vmatprep.subr.mxu0 0.0
        %862 = vmatpush1.msra.mxu0 0.0
        %863 = vmatprep.subr.mxu0 0.0
        %864 = vmatpush1.msra.mxu0 0.0
        %865 = vmatprep.subr.mxu0 0.0
        %866 = vmatpush1.msra.mxu0 0.0
        %867 = vmatprep.subr.mxu0 0.0
        %868 = vmatpush1.msra.mxu0 0.0
        %869 = vmatprep.subr.mxu0 0.0
        %870 = vmatpush1.msra.mxu0 0.0
        %871 = vmatprep.subr.mxu0 0.0
        %872 = vmatpush1.msra.mxu0 0.0
        %873 = vmatprep.subr.mxu0 0.0
        %874 = vmatpush1.msra.mxu0 0.0
        %875 = vmatprep.subr.mxu0 0.0
        %876 = vmatpush1.msra.mxu0 0.0
        %877 = vmatprep.subr.mxu0 0.0
        %878 = vmatpush1.msra.mxu0 0.0
        %879 = vmatprep.subr.mxu0 0.0
        %880 = vmatpush1.msra.mxu0 0.0
        %881 = vmatprep.subr.mxu0 0.0
        %882 = vmatpush1.msra.mxu0 0.0
        %883 = vmatprep.subr.mxu0 0.0
        %884 = vmatpush1.msra.mxu0 0.0
        %885 = vmatprep.subr.mxu0 0.0
        %886 = vmatpush1.msra.mxu0 0.0
        %887 = vmatprep.subr.mxu0 0.0
        %888 = vmatpush1.msra.mxu0 0.0
        %889 = vmatprep.subr.mxu0 0.0
        %890 = vmatpush1.msra.mxu0 0.0
        %891 = vmatprep.subr.mxu0 0.0
        %892 = vmatpush1.msra.mxu0 0.0
        %893 = vmatprep.subr.mxu0 0.0
        %894 = vmatpush1.msra.mxu0 0.0
        %895 = vmatprep.subr.mxu0 0.0
        %896 = vmatpush1.msra.mxu0 0.0
        %897 = vmatprep.subr.mxu0 0.0
        %898 = vmatpush1.msra.mxu0 0.0
        %899 = vmatprep.subr.mxu0 0.0
        %900 = vmatpush1.msra.mxu0 0.0
        %901 = vmatprep.subr.mxu0 0.0
        %902 = vmatpush1.msra.mxu0 0.0
        %903 = vmatprep.mubr.f32.mxu0 0.0
        %904 = vmatmul.mubr.f32.gmra.mrb[0].mxu0 %v679
        %v905 = vpop.f32.mrb[0].mxu0
        %v906 = vadd.f32 %v671, %v905
        %v907 = vpop.f32.mrb[0].mxu0
        %908 = vdwg.mxu0
        %914 = vrot.lane.b32.xlu0 %v764, 120
        %v915 = vpop.permute.xlu0 %914
        %916 = vrot.lane.b32.xlu0 %v766, 120
        %v917 = vpop.permute.xlu0 %916
        %918 = vrot.lane.b32.xlu0 %v835, 120
        %v919 = vpop.permute.xlu0 %918
        %920 = vrot.lane.b32.xlu0 %v837, 120
        %v921 = vpop.permute.xlu0 %920
        %922 = vrot.lane.b32.xlu0 %v906, 120
        %v923 = vpop.permute.xlu0 %922
        %vm924 = vcmask 982016
        %v925 = vsel %vm924, %v915, %v917
        %v926 = vsel %vm924, %v917, %v919
        %v927 = vsel %vm924, %v919, %v921
        %v928 = vsel %vm924, %v921, %v923
        %v934 = vmax.f32 %v764, %v925
        %v935 = vmax.f32 %v766, %v926
        %v936 = vmax.f32 %v835, %v927
        %v937 = vmax.f32 %v837, %v928
        %v938 = vmax.f32 %v906, %v923
        %v939 = vld [vmem:[#allocation8] sm:$0xff]
        %v940 = vld [vmem:[#allocation8 + $0x8] sm:$0xff]
        %v941 = vld [vmem:[#allocation8 + $0x10] sm:$0xff]
        %v942 = vld [vmem:[#allocation8 + $0x18] sm:$0xff]
        %v943 = vld [vmem:[#allocation8 + $0x20] sm:$0xff]
        %v944 = vld [vmem:[#allocation8 + $0x28] sm:$0xff]
        %v945 = vld [vmem:[#allocation8 + $0x30] sm:$0xff]
        %v946 = vld [vmem:[#allocation8 + $0x38] sm:$0xff]
        %v947 = vld [vmem:[#allocation8 + $0x40] sm:$0xff]
        %v948 = vld [vmem:[#allocation8 + $0x48] sm:$0xff]
        %v949 = vld [vmem:[#allocation8 + $0x50] sm:$0xff]
        %v950 = vld [vmem:[#allocation8 + $0x58] sm:$0xff]
        %v951 = vld [vmem:[#allocation8 + $0x60] sm:$0xff]
        %v952 = vld [vmem:[#allocation8 + $0x68] sm:$0xff]
        %v953 = vld [vmem:[#allocation8 + $0x70] sm:$0xff]
        %v954 = vld [vmem:[#allocation8 + $0x78] sm:$0xff]
        %v955 = vld [vmem:[#allocation8 + $0x80] sm:$0xff]
        %v956 = vld [vmem:[#allocation8 + $0x88] sm:$0xff]
        %v957 = vld [vmem:[#allocation8 + $0x90] sm:$0xff]
        %v958 = vld [vmem:[#allocation8 + $0x98] sm:$0xff]
        %v959 = vld [vmem:[#allocation8 + $0xa0] sm:$0xff]
        %v960 = vld [vmem:[#allocation8 + $0xa8] sm:$0xff]
        %v961 = vld [vmem:[#allocation8 + $0xb0] sm:$0xff]
        %v962 = vld [vmem:[#allocation8 + $0xb8] sm:$0xff]
        %v963 = vld [vmem:[#allocation8 + $0xc0] sm:$0xff]
        %v964 = vld [vmem:[#allocation8 + $0xc8] sm:$0xff]
        %v965 = vld [vmem:[#allocation8 + $0xd0] sm:$0xff]
        %v966 = vld [vmem:[#allocation8 + $0xd8] sm:$0xff]
        %v967 = vld [vmem:[#allocation8 + $0xe0] sm:$0xff]
        %v968 = vld [vmem:[#allocation8 + $0xe8] sm:$0xff]
        %v969 = vld [vmem:[#allocation8 + $0xf0] sm:$0xff]
        %v970 = vld [vmem:[#allocation8 + $0xf8] sm:$0xff]
        %v971 = vld [vmem:[#allocation8 + $0x100] sm:$0xff]
        %v972 = vld [vmem:[#allocation8 + $0x108] sm:$0xff]
        %v973 = vld [vmem:[#allocation8 + $0x110] sm:$0xff]
        %v974 = vld [vmem:[#allocation8 + $0x118] sm:$0xff]
        %v975 = vld [vmem:[#allocation8 + $0x120] sm:$0xff]
        %v976 = vld [vmem:[#allocation8 + $0x128] sm:$0xff]
        %v977 = vld [vmem:[#allocation8 + $0x130] sm:$0xff]
        %v978 = vld [vmem:[#allocation8 + $0x138] sm:$0xff]
        %v979 = vld [vmem:[#allocation8 + $0x140] sm:$0xff]
        %v980 = vld [vmem:[#allocation8 + $0x148] sm:$0xff]
        %v981 = vld [vmem:[#allocation8 + $0x150] sm:$0xff]
        %v982 = vld [vmem:[#allocation8 + $0x158] sm:$0xff]
        %v983 = vld [vmem:[#allocation8 + $0x160] sm:$0xff]
        %v984 = vld [vmem:[#allocation8 + $0x168] sm:$0xff]
        %v985 = vld [vmem:[#allocation8 + $0x170] sm:$0xff]
        %v986 = vld [vmem:[#allocation8 + $0x178] sm:$0xff]
        %v987 = vld [vmem:[#allocation8 + $0x180] sm:$0xff]
        %v988 = vld [vmem:[#allocation8 + $0x188] sm:$0xff]
        %v989 = vld [vmem:[#allocation8 + $0x190] sm:$0xff]
        %v990 = vld [vmem:[#allocation8 + $0x198] sm:$0xff]
        %v991 = vld [vmem:[#allocation8 + $0x1a0] sm:$0xff]
        %v992 = vld [vmem:[#allocation8 + $0x1a8] sm:$0xff]
        %v993 = vld [vmem:[#allocation8 + $0x1b0] sm:$0xff]
        %v994 = vld [vmem:[#allocation8 + $0x1b8] sm:$0xff]
        %v995 = vld [vmem:[#allocation8 + $0x1c0] sm:$0xff]
        %v996 = vld [vmem:[#allocation8 + $0x1c8] sm:$0xff]
        %v997 = vld [vmem:[#allocation8 + $0x1d0] sm:$0xff]
        %v998 = vld [vmem:[#allocation8 + $0x1d8] sm:$0xff]
        %v999 = vld [vmem:[#allocation8 + $0x1e0] sm:$0xff]
        %v1000 = vld [vmem:[#allocation8 + $0x1e8] sm:$0xff]
        %v1001 = vld [vmem:[#allocation8 + $0x1f0] sm:$0xff]
        %v1002 = vld [vmem:[#allocation8 + $0x1f8] sm:$0xff]
        %v1003 = vld [vmem:[#allocation8 + $0x200] sm:$0xff]
        %v1004 = vld [vmem:[#allocation8 + $0x208] sm:$0xff]
        %v1005 = vld [vmem:[#allocation8 + $0x210] sm:$0xff]
        %v1006 = vld [vmem:[#allocation8 + $0x218] sm:$0xff]
        %v1007 = vld [vmem:[#allocation8 + $0x220] sm:$0xff]
        %v1008 = vld [vmem:[#allocation8 + $0x228] sm:$0xff]
        %v1009 = vld [vmem:[#allocation8 + $0x230] sm:$0xff]
        %v1010 = vld [vmem:[#allocation8 + $0x238] sm:$0xff]
        %v1011 = vld [vmem:[#allocation8 + $0x240] sm:$0xff]
        %v1012 = vld [vmem:[#allocation8 + $0x248] sm:$0xff]
        %v1013 = vld [vmem:[#allocation8 + $0x250] sm:$0xff]
        %v1014 = vld [vmem:[#allocation8 + $0x258] sm:$0xff]
        %v1015 = vld [vmem:[#allocation8 + $0x260] sm:$0xff]
        %v1016 = vld [vmem:[#allocation8 + $0x268] sm:$0xff]
        %v1017 = vld [vmem:[#allocation8 + $0x270] sm:$0xff]
        %v1018 = vld [vmem:[#allocation8 + $0x278] sm:$0xff]
        %v1019 = vld [vmem:[#allocation8 + $0x280] sm:$0xff]
        %v1020 = vld [vmem:[#allocation8 + $0x288] sm:$0xff]
        %v1021 = vld [vmem:[#allocation8 + $0x290] sm:$0xff]
        %v1022 = vld [vmem:[#allocation8 + $0x298] sm:$0xff]
        %v1023 = vld [vmem:[#allocation8 + $0x2a0] sm:$0xff]
        %v1024 = vld [vmem:[#allocation8 + $0x2a8] sm:$0xff]
        %v1025 = vld [vmem:[#allocation8 + $0x2b0] sm:$0xff]
        %v1026 = vld [vmem:[#allocation8 + $0x2b8] sm:$0xff]
        %v1027 = vld [vmem:[#allocation8 + $0x2c0] sm:$0xff]
        %v1028 = vld [vmem:[#allocation8 + $0x2c8] sm:$0xff]
        %v1029 = vld [vmem:[#allocation8 + $0x2d0] sm:$0xff]
        %v1030 = vld [vmem:[#allocation8 + $0x2d8] sm:$0xff]
        %v1031 = vld [vmem:[#allocation8 + $0x2e0] sm:$0xff]
        %v1032 = vld [vmem:[#allocation8 + $0x2e8] sm:$0xff]
        %v1033 = vld [vmem:[#allocation8 + $0x2f0] sm:$0xff]
        %v1034 = vld [vmem:[#allocation8 + $0x2f8] sm:$0xff]
        %v1035 = vld [vmem:[#allocation8 + $0x300] sm:$0xff]
        %v1036 = vld [vmem:[#allocation8 + $0x308] sm:$0xff]
        %v1037 = vld [vmem:[#allocation8 + $0x310] sm:$0xff]
        %v1038 = vld [vmem:[#allocation8 + $0x318] sm:$0xff]
        %v1039 = vld [vmem:[#allocation8 + $0x320] sm:$0xff]
        %v1040 = vld [vmem:[#allocation8 + $0x328] sm:$0xff]
        %v1041 = vld [vmem:[#allocation8 + $0x330] sm:$0xff]
        %v1042 = vld [vmem:[#allocation8 + $0x338] sm:$0xff]
        %v1043 = vld [vmem:[#allocation8 + $0x340] sm:$0xff]
        %v1044 = vld [vmem:[#allocation8 + $0x348] sm:$0xff]
        %v1045 = vld [vmem:[#allocation8 + $0x350] sm:$0xff]
        %v1046 = vld [vmem:[#allocation8 + $0x358] sm:$0xff]
        %v1047 = vld [vmem:[#allocation8 + $0x360] sm:$0xff]
        %v1048 = vld [vmem:[#allocation8 + $0x368] sm:$0xff]
        %v1049 = vld [vmem:[#allocation8 + $0x370] sm:$0xff]
        %v1050 = vld [vmem:[#allocation8 + $0x378] sm:$0xff]
        %v1051 = vld [vmem:[#allocation8 + $0x380] sm:$0xff]
        %v1052 = vld [vmem:[#allocation8 + $0x388] sm:$0xff]
        %v1053 = vld [vmem:[#allocation8 + $0x390] sm:$0xff]
        %v1054 = vld [vmem:[#allocation8 + $0x398] sm:$0xff]
        %v1055 = vld [vmem:[#allocation8 + $0x3a0] sm:$0xff]
        %v1056 = vld [vmem:[#allocation8 + $0x3a8] sm:$0xff]
        %v1057 = vld [vmem:[#allocation8 + $0x3b0] sm:$0xff]
        %v1058 = vld [vmem:[#allocation8 + $0x3b8] sm:$0xff]
        %v1059 = vld [vmem:[#allocation8 + $0x3c0] sm:$0xff]
        %v1060 = vld [vmem:[#allocation8 + $0x3c8] sm:$0xff]
        %v1061 = vld [vmem:[#allocation8 + $0x3d0] sm:$0xff]
        %v1062 = vld [vmem:[#allocation8 + $0x3d8] sm:$0xff]
        %v1063 = vld [vmem:[#allocation8 + $0x3e0] sm:$0xff]
        %v1064 = vld [vmem:[#allocation8 + $0x3e8] sm:$0xff]
        %v1065 = vld [vmem:[#allocation8 + $0x3f0] sm:$0xff]
        %v1066 = vld [vmem:[#allocation8 + $0x3f8] sm:$0xff]
        %v1067 = vld [vmem:[#allocation8 + $0x400] sm:$0xff]
        %v1068 = vld [vmem:[#allocation8 + $0x408] sm:$0xff]
        %v1069 = vld [vmem:[#allocation8 + $0x410] sm:$0xff]
        %v1070 = vld [vmem:[#allocation8 + $0x418] sm:$0xff]
        %v1071 = vld [vmem:[#allocation8 + $0x420] sm:$0xff]
        %v1072 = vld [vmem:[#allocation8 + $0x428] sm:$0xff]
        %v1073 = vld [vmem:[#allocation8 + $0x430] sm:$0xff]
        %v1074 = vld [vmem:[#allocation8 + $0x438] sm:$0xff]
        %v1075 = vld [vmem:[#allocation8 + $0x440] sm:$0xff]
        %v1076 = vld [vmem:[#allocation8 + $0x448] sm:$0xff]
        %v1077 = vld [vmem:[#allocation8 + $0x450] sm:$0xff]
        %v1078 = vld [vmem:[#allocation8 + $0x458] sm:$0xff]
        %v1079 = vld [vmem:[#allocation8 + $0x460] sm:$0xff]
        %v1080 = vld [vmem:[#allocation8 + $0x468] sm:$0xff]
        %v1081 = vld [vmem:[#allocation8 + $0x470] sm:$0xff]
        %v1082 = vld [vmem:[#allocation8 + $0x478] sm:$0xff]
        %v1083 = vld [vmem:[#allocation8 + $0x480] sm:$0xff]
        %v1084 = vld [vmem:[#allocation8 + $0x488] sm:$0xff]
        %v1085 = vld [vmem:[#allocation8 + $0x490] sm:$0xff]
        %v1086 = vld [vmem:[#allocation8 + $0x498] sm:$0xff]
        %v1087 = vld [vmem:[#allocation8 + $0x4a0] sm:$0xff]
        %v1088 = vld [vmem:[#allocation8 + $0x4a8] sm:$0xff]
        %v1089 = vld [vmem:[#allocation8 + $0x4b0] sm:$0xff]
        %v1090 = vld [vmem:[#allocation8 + $0x4b8] sm:$0xff]
        %v1091 = vld [vmem:[#allocation8 + $0x4c0] sm:$0xff]
        %v1092 = vld [vmem:[#allocation8 + $0x4c8] sm:$0xff]
        %v1093 = vld [vmem:[#allocation8 + $0x4d0] sm:$0xff]
        %v1094 = vld [vmem:[#allocation8 + $0x4d8] sm:$0xff]
        %v1095 = vld [vmem:[#allocation8 + $0x4e0] sm:$0xff]
        %v1096 = vld [vmem:[#allocation8 + $0x4e8] sm:$0xff]
        %v1097 = vld [vmem:[#allocation8 + $0x4f0] sm:$0xff]
        %v1098 = vld [vmem:[#allocation8 + $0x4f8] sm:$0xff]
        %v1099 = vld [vmem:[#allocation8 + $0x500] sm:$0xff]
        %v1100 = vld [vmem:[#allocation8 + $0x508] sm:$0xff]
        %v1101 = vld [vmem:[#allocation8 + $0x510] sm:$0xff]
        %v1102 = vld [vmem:[#allocation8 + $0x518] sm:$0xff]
        %v1103 = vld [vmem:[#allocation8 + $0x520] sm:$0xff]
        %v1104 = vld [vmem:[#allocation8 + $0x528] sm:$0xff]
        %v1105 = vld [vmem:[#allocation8 + $0x530] sm:$0xff]
        %v1106 = vld [vmem:[#allocation8 + $0x538] sm:$0xff]
        %v1107 = vld [vmem:[#allocation8 + $0x540] sm:$0xff]
        %v1108 = vld [vmem:[#allocation8 + $0x548] sm:$0xff]
        %v1109 = vld [vmem:[#allocation8 + $0x550] sm:$0xff]
        %v1110 = vld [vmem:[#allocation8 + $0x558] sm:$0xff]
        %v1111 = vld [vmem:[#allocation8 + $0x560] sm:$0xff]
        %v1112 = vld [vmem:[#allocation8 + $0x568] sm:$0xff]
        %v1113 = vld [vmem:[#allocation8 + $0x570] sm:$0xff]
        %v1114 = vld [vmem:[#allocation8 + $0x578] sm:$0xff]
        %v1115 = vld [vmem:[#allocation8 + $0x580] sm:$0xff]
        %v1116 = vld [vmem:[#allocation8 + $0x588] sm:$0xff]
        %v1117 = vld [vmem:[#allocation8 + $0x590] sm:$0xff]
        %v1118 = vld [vmem:[#allocation8 + $0x598] sm:$0xff]
        %v1119 = vld [vmem:[#allocation8 + $0x5a0] sm:$0xff]
        %v1120 = vld [vmem:[#allocation8 + $0x5a8] sm:$0xff]
        %v1121 = vld [vmem:[#allocation8 + $0x5b0] sm:$0xff]
        %v1122 = vld [vmem:[#allocation8 + $0x5b8] sm:$0xff]
        %v1123 = vld [vmem:[#allocation8 + $0x5c0] sm:$0xff]
        %v1124 = vld [vmem:[#allocation8 + $0x5c8] sm:$0xff]
        %v1125 = vld [vmem:[#allocation8 + $0x5d0] sm:$0xff]
        %v1126 = vld [vmem:[#allocation8 + $0x5d8] sm:$0xff]
        %v1127 = vld [vmem:[#allocation8 + $0x5e0] sm:$0xff]
        %v1128 = vld [vmem:[#allocation8 + $0x5e8] sm:$0xff]
        %v1129 = vld [vmem:[#allocation8 + $0x5f0] sm:$0xff]
        %v1130 = vld [vmem:[#allocation8 + $0x5f8] sm:$0xff]
        %v1131 = vld [vmem:[#allocation8 + $0x600] sm:$0xff]
        %v1132 = vld [vmem:[#allocation8 + $0x608] sm:$0xff]
        %v1133 = vld [vmem:[#allocation8 + $0x610] sm:$0xff]
        %v1134 = vld [vmem:[#allocation8 + $0x618] sm:$0xff]
        %v1135 = vld [vmem:[#allocation8 + $0x620] sm:$0xff]
        %v1136 = vld [vmem:[#allocation8 + $0x628] sm:$0xff]
        %v1137 = vld [vmem:[#allocation8 + $0x630] sm:$0xff]
        %v1138 = vld [vmem:[#allocation8 + $0x638] sm:$0xff]
        %v1139 = vld [vmem:[#allocation8 + $0x640] sm:$0xff]
        %v1140 = vld [vmem:[#allocation8 + $0x648] sm:$0xff]
        %v1141 = vld [vmem:[#allocation8 + $0x650] sm:$0xff]
        %v1142 = vld [vmem:[#allocation8 + $0x658] sm:$0xff]
        %v1143 = vld [vmem:[#allocation8 + $0x660] sm:$0xff]
        %v1144 = vld [vmem:[#allocation8 + $0x668] sm:$0xff]
        %v1145 = vld [vmem:[#allocation8 + $0x670] sm:$0xff]
        %v1146 = vld [vmem:[#allocation8 + $0x678] sm:$0xff]
        %v1147 = vld [vmem:[#allocation8 + $0x680] sm:$0xff]
        %v1148 = vld [vmem:[#allocation8 + $0x688] sm:$0xff]
        %v1149 = vld [vmem:[#allocation8 + $0x690] sm:$0xff]
        %v1150 = vld [vmem:[#allocation8 + $0x698] sm:$0xff]
        %v1151 = vld [vmem:[#allocation8 + $0x6a0] sm:$0xff]
        %v1152 = vld [vmem:[#allocation8 + $0x6a8] sm:$0xff]
        %v1153 = vld [vmem:[#allocation8 + $0x6b0] sm:$0xff]
        %v1154 = vld [vmem:[#allocation8 + $0x6b8] sm:$0xff]
        %v1155 = vld [vmem:[#allocation8 + $0x6c0] sm:$0xff]
        %v1156 = vld [vmem:[#allocation8 + $0x6c8] sm:$0xff]
        %v1157 = vld [vmem:[#allocation8 + $0x6d0] sm:$0xff]
        %v1158 = vld [vmem:[#allocation8 + $0x6d8] sm:$0xff]
        %v1159 = vld [vmem:[#allocation8 + $0x6e0] sm:$0xff]
        %v1160 = vld [vmem:[#allocation8 + $0x6e8] sm:$0xff]
        %v1161 = vld [vmem:[#allocation8 + $0x6f0] sm:$0xff]
        %v1162 = vld [vmem:[#allocation8 + $0x6f8] sm:$0xff]
        %v1163 = vld [vmem:[#allocation8 + $0x700] sm:$0xff]
        %v1164 = vld [vmem:[#allocation8 + $0x708] sm:$0xff]
        %v1165 = vld [vmem:[#allocation8 + $0x710] sm:$0xff]
        %v1166 = vld [vmem:[#allocation8 + $0x718] sm:$0xff]
        %v1167 = vld [vmem:[#allocation8 + $0x720] sm:$0xff]
        %v1168 = vld [vmem:[#allocation8 + $0x728] sm:$0xff]
        %v1169 = vld [vmem:[#allocation8 + $0x730] sm:$0xff]
        %v1170 = vld [vmem:[#allocation8 + $0x738] sm:$0xff]
        %v1171 = vld [vmem:[#allocation8 + $0x740] sm:$0xff]
        %v1172 = vld [vmem:[#allocation8 + $0x748] sm:$0xff]
        %v1173 = vld [vmem:[#allocation8 + $0x750] sm:$0xff]
        %v1174 = vld [vmem:[#allocation8 + $0x758] sm:$0xff]
        %v1175 = vld [vmem:[#allocation8 + $0x760] sm:$0xff]
        %v1176 = vld [vmem:[#allocation8 + $0x768] sm:$0xff]
        %v1177 = vld [vmem:[#allocation8 + $0x770] sm:$0xff]
        %v1178 = vld [vmem:[#allocation8 + $0x778] sm:$0xff]
        %v1179 = vld [vmem:[#allocation8 + $0x780] sm:$0xff]
        %v1180 = vld [vmem:[#allocation8 + $0x788] sm:$0xff]
        %v1181 = vld [vmem:[#allocation8 + $0x790] sm:$0xff]
        %v1182 = vld [vmem:[#allocation8 + $0x798] sm:$0xff]
        %v1183 = vld [vmem:[#allocation8 + $0x7a0] sm:$0xff]
        %v1184 = vld [vmem:[#allocation8 + $0x7a8] sm:$0xff]
        %v1185 = vld [vmem:[#allocation8 + $0x7b0] sm:$0xff]
        %v1186 = vld [vmem:[#allocation8 + $0x7b8] sm:$0xff]
        %v1187 = vld [vmem:[#allocation8 + $0x7c0] sm:$0xff]
        %v1188 = vld [vmem:[#allocation8 + $0x7c8] sm:$0xff]
        %v1189 = vld [vmem:[#allocation8 + $0x7d0] sm:$0xff]
        %v1190 = vld [vmem:[#allocation8 + $0x7d8] sm:$0xff]
        %v1191 = vld [vmem:[#allocation8 + $0x7e0] sm:$0xff]
        %v1192 = vld [vmem:[#allocation8 + $0x7e8] sm:$0xff]
        %v1193 = vld [vmem:[#allocation8 + $0x7f0] sm:$0xff]
        %v1194 = vld [vmem:[#allocation8 + $0x7f8] sm:$0xff]
        %v1195 = vld [vmem:[#allocation8 + $0x800] sm:$0xff]
        %v1196 = vld [vmem:[#allocation8 + $0x808] sm:$0xff]
        %v1197 = vld [vmem:[#allocation8 + $0x810] sm:$0xff]
        %v1198 = vld [vmem:[#allocation8 + $0x818] sm:$0xff]
        %v1199 = vld [vmem:[#allocation8 + $0x820] sm:$0xff]
        %v1200 = vld [vmem:[#allocation8 + $0x828] sm:$0xff]
        %v1201 = vld [vmem:[#allocation8 + $0x830] sm:$0xff]
        %v1202 = vld [vmem:[#allocation8 + $0x838] sm:$0xff]
        %v1203 = vld [vmem:[#allocation8 + $0x840] sm:$0xff]
        %v1204 = vld [vmem:[#allocation8 + $0x848] sm:$0xff]
        %v1205 = vld [vmem:[#allocation8 + $0x850] sm:$0xff]
        %v1206 = vld [vmem:[#allocation8 + $0x858] sm:$0xff]
        %v1207 = vld [vmem:[#allocation8 + $0x860] sm:$0xff]
        %v1208 = vld [vmem:[#allocation8 + $0x868] sm:$0xff]
        %v1209 = vld [vmem:[#allocation8 + $0x870] sm:$0xff]
        %v1210 = vld [vmem:[#allocation8 + $0x878] sm:$0xff]
        %v1211 = vld [vmem:[#allocation8 + $0x880] sm:$0xff]
        %v1212 = vld [vmem:[#allocation8 + $0x888] sm:$0xff]
        %v1213 = vld [vmem:[#allocation8 + $0x890] sm:$0xff]
        %v1214 = vld [vmem:[#allocation8 + $0x898] sm:$0xff]
        %v1215 = vld [vmem:[#allocation8 + $0x8a0] sm:$0xff]
        %v1216 = vld [vmem:[#allocation8 + $0x8a8] sm:$0xff]
        %v1217 = vld [vmem:[#allocation8 + $0x8b0] sm:$0xff]
        %v1218 = vld [vmem:[#allocation8 + $0x8b8] sm:$0xff]
        %v1219 = vld [vmem:[#allocation8 + $0x8c0] sm:$0xff]
        %v1220 = vld [vmem:[#allocation8 + $0x8c8] sm:$0xff]
        %v1221 = vld [vmem:[#allocation8 + $0x8d0] sm:$0xff]
        %v1222 = vld [vmem:[#allocation8 + $0x8d8] sm:$0xff]
        %v1223 = vld [vmem:[#allocation8 + $0x8e0] sm:$0xff]
        %v1224 = vld [vmem:[#allocation8 + $0x8e8] sm:$0xff]
        %v1225 = vld [vmem:[#allocation8 + $0x8f0] sm:$0xff]
        %v1226 = vld [vmem:[#allocation8 + $0x8f8] sm:$0xff]
        %v1227 = vld [vmem:[#allocation8 + $0x900] sm:$0xff]
        %v1228 = vld [vmem:[#allocation8 + $0x908] sm:$0xff]
        %v1229 = vld [vmem:[#allocation8 + $0x910] sm:$0xff]
        %v1230 = vld [vmem:[#allocation8 + $0x918] sm:$0xff]
        %v1231 = vld [vmem:[#allocation8 + $0x920] sm:$0xff]
        %v1232 = vld [vmem:[#allocation8 + $0x928] sm:$0xff]
        %v1233 = vld [vmem:[#allocation8 + $0x930] sm:$0xff]
        %v1234 = vld [vmem:[#allocation8 + $0x938] sm:$0xff]
        %v1235 = vld [vmem:[#allocation8 + $0x940] sm:$0xff]
        %v1236 = vld [vmem:[#allocation8 + $0x948] sm:$0xff]
        %v1237 = vld [vmem:[#allocation8 + $0x950] sm:$0xff]
        %v1238 = vld [vmem:[#allocation8 + $0x958] sm:$0xff]
        %v1239 = vld [vmem:[#allocation8 + $0x960] sm:$0xff]
        %v1240 = vld [vmem:[#allocation8 + $0x968] sm:$0xff]
        %v1241 = vld [vmem:[#allocation8 + $0x970] sm:$0xff]
        %v1242 = vld [vmem:[#allocation8 + $0x978] sm:$0xff]
        %v1243 = vld [vmem:[#allocation8 + $0x980] sm:$0xff]
        %v1244 = vld [vmem:[#allocation8 + $0x988] sm:$0xff]
        %v1245 = vld [vmem:[#allocation8 + $0x990] sm:$0xff]
        %v1246 = vld [vmem:[#allocation8 + $0x998] sm:$0xff]
        %v1247 = vld [vmem:[#allocation8 + $0x9a0] sm:$0xff]
        %v1248 = vld [vmem:[#allocation8 + $0x9a8] sm:$0xff]
        %v1249 = vld [vmem:[#allocation8 + $0x9b0] sm:$0xff]
        %v1250 = vld [vmem:[#allocation8 + $0x9b8] sm:$0xff]
        %v1251 = vld [vmem:[#allocation8 + $0x9c0] sm:$0xff]
        %v1252 = vld [vmem:[#allocation8 + $0x9c8] sm:$0xff]
        %v1253 = vld [vmem:[#allocation8 + $0x9d0] sm:$0xff]
        %v1254 = vld [vmem:[#allocation8 + $0x9d8] sm:$0xff]
        %v1255 = vld [vmem:[#allocation8 + $0x9e0] sm:$0xff]
        %v1256 = vld [vmem:[#allocation8 + $0x9e8] sm:$0xff]
        %v1257 = vld [vmem:[#allocation8 + $0x9f0] sm:$0xff]
        %v1258 = vld [vmem:[#allocation8 + $0x9f8] sm:$0xff]
        %v1259 = vld [vmem:[#allocation8 + $0xa00] sm:$0xff]
        %v1260 = vld [vmem:[#allocation8 + $0xa08] sm:$0xff]
        %v1261 = vld [vmem:[#allocation8 + $0xa10] sm:$0xff]
        %v1262 = vld [vmem:[#allocation8 + $0xa18] sm:$0xff]
        %v1263 = vld [vmem:[#allocation8 + $0xa20] sm:$0xff]
        %v1264 = vld [vmem:[#allocation8 + $0xa28] sm:$0xff]
        %v1265 = vld [vmem:[#allocation8 + $0xa30] sm:$0xff]
        %v1266 = vld [vmem:[#allocation8 + $0xa38] sm:$0xff]
        %v1267 = vld [vmem:[#allocation8 + $0xa40] sm:$0xff]
        %v1268 = vld [vmem:[#allocation8 + $0xa48] sm:$0xff]
        %v1269 = vld [vmem:[#allocation8 + $0xa50] sm:$0xff]
        %v1270 = vld [vmem:[#allocation8 + $0xa58] sm:$0xff]
        %v1271 = vld [vmem:[#allocation8 + $0xa60] sm:$0xff]
        %v1272 = vld [vmem:[#allocation8 + $0xa68] sm:$0xff]
        %v1273 = vld [vmem:[#allocation8 + $0xa70] sm:$0xff]
        %v1274 = vld [vmem:[#allocation8 + $0xa78] sm:$0xff]
        %v1275 = vld [vmem:[#allocation8 + $0xa80] sm:$0xff]
        %v1276 = vld [vmem:[#allocation8 + $0xa88] sm:$0xff]
        %v1277 = vld [vmem:[#allocation8 + $0xa90] sm:$0xff]
        %v1278 = vld [vmem:[#allocation8 + $0xa98] sm:$0xff]
        %v1279 = vld [vmem:[#allocation8 + $0xaa0] sm:$0xff]
        %v1280 = vld [vmem:[#allocation8 + $0xaa8] sm:$0xff]
        %v1281 = vld [vmem:[#allocation8 + $0xab0] sm:$0xff]
        %v1282 = vld [vmem:[#allocation8 + $0xab8] sm:$0xff]
        %v1283 = vld [vmem:[#allocation8 + $0xac0] sm:$0xff]
        %v1284 = vld [vmem:[#allocation8 + $0xac8] sm:$0xff]
        %v1285 = vld [vmem:[#allocation8 + $0xad0] sm:$0xff]
        %v1286 = vld [vmem:[#allocation8 + $0xad8] sm:$0xff]
        %v1287 = vld [vmem:[#allocation8 + $0xae0] sm:$0xff]
        %v1288 = vld [vmem:[#allocation8 + $0xae8] sm:$0xff]
        %v1289 = vld [vmem:[#allocation10] sm:$0x1f]
        %v1291 = vlaneseq
        %v1292 = vshrl.u32 %v1291, 7
        %v1293 = vsub.s32 0, %v1292
        %v1294 = vrot.slane %v1289, %v1293
        %v1295 = vlaneseq
        %v1296 = vshrl.u32 %v1295, 7
        %v1297 = vsub.s32 1, %v1296
        %v1298 = vrot.slane %v1289, %v1297
        %v1299 = vlaneseq
        %v1300 = vshrl.u32 %v1299, 7
        %v1301 = vsub.s32 2, %v1300
        %v1302 = vrot.slane %v1289, %v1301
        %v1303 = vlaneseq
        %v1304 = vshrl.u32 %v1303, 7
        %v1305 = vsub.s32 3, %v1304
        %v1306 = vrot.slane %v1289, %v1305
        %v1307 = vlaneseq
        %v1308 = vshrl.u32 %v1307, 7
        %v1309 = vsub.s32 4, %v1308
        %v1310 = vrot.slane %v1289, %v1309
        %vm1316 = vcmask 392192
        %v1318 = vsel %vm1316, %v938, 0
        %1320 = vmatprep.subr.mxu0 %v940
        %1321 = vmatpush1.msra.mxu0 %v939
        %1322 = vmatprep.subr.mxu0 %v945
        %1323 = vmatpush1.msra.mxu0 %v944
        %1324 = vmatprep.subr.mxu0 %v950
        %1325 = vmatpush1.msra.mxu0 %v949
        %1326 = vmatprep.subr.mxu0 %v955
        %1327 = vmatpush1.msra.mxu0 %v954
        %1328 = vmatprep.subr.mxu0 %v960
        %1329 = vmatpush1.msra.mxu0 %v959
        %1330 = vmatprep.subr.mxu0 %v965
        %1331 = vmatpush1.msra.mxu0 %v964
        %1332 = vmatprep.subr.mxu0 %v970
        %1333 = vmatpush1.msra.mxu0 %v969
        %1334 = vmatprep.subr.mxu0 %v975
        %1335 = vmatpush1.msra.mxu0 %v974
        %1336 = vmatprep.subr.mxu0 %v980
        %1337 = vmatpush1.msra.mxu0 %v979
        %1338 = vmatprep.subr.mxu0 %v985
        %1339 = vmatpush1.msra.mxu0 %v984
        %1340 = vmatprep.subr.mxu0 %v990
        %1341 = vmatpush1.msra.mxu0 %v989
        %1342 = vmatprep.subr.mxu0 %v995
        %1343 = vmatpush1.msra.mxu0 %v994
        %1344 = vmatprep.subr.mxu0 %v1000
        %1345 = vmatpush1.msra.mxu0 %v999
        %1346 = vmatprep.subr.mxu0 %v1005
        %1347 = vmatpush1.msra.mxu0 %v1004
        %1348 = vmatprep.subr.mxu0 %v1010
        %1349 = vmatpush1.msra.mxu0 %v1009
        %1350 = vmatprep.subr.mxu0 %v1015
        %1351 = vmatpush1.msra.mxu0 %v1014
        %1352 = vmatprep.subr.mxu0 %v1020
        %1353 = vmatpush1.msra.mxu0 %v1019
        %1354 = vmatprep.subr.mxu0 %v1025
        %1355 = vmatpush1.msra.mxu0 %v1024
        %1356 = vmatprep.subr.mxu0 %v1030
        %1357 = vmatpush1.msra.mxu0 %v1029
        %1358 = vmatprep.subr.mxu0 %v1035
        %1359 = vmatpush1.msra.mxu0 %v1034
        %1360 = vmatprep.subr.mxu0 %v1040
        %1361 = vmatpush1.msra.mxu0 %v1039
        %1362 = vmatprep.subr.mxu0 %v1045
        %1363 = vmatpush1.msra.mxu0 %v1044
        %1364 = vmatprep.subr.mxu0 %v1050
        %1365 = vmatpush1.msra.mxu0 %v1049
        %1366 = vmatprep.subr.mxu0 %v1055
        %1367 = vmatpush1.msra.mxu0 %v1054
        %1368 = vmatprep.subr.mxu0 %v1060
        %1369 = vmatpush1.msra.mxu0 %v1059
        %1370 = vmatprep.subr.mxu0 %v1065
        %1371 = vmatpush1.msra.mxu0 %v1064
        %1372 = vmatprep.subr.mxu0 %v1070
        %1373 = vmatpush1.msra.mxu0 %v1069
        %1374 = vmatprep.subr.mxu0 %v1075
        %1375 = vmatpush1.msra.mxu0 %v1074
        %1376 = vmatprep.subr.mxu0 %v1080
        %1377 = vmatpush1.msra.mxu0 %v1079
        %1378 = vmatprep.subr.mxu0 %v1085
        %1379 = vmatpush1.msra.mxu0 %v1084
        %1380 = vmatprep.subr.mxu0 %v1090
        %1381 = vmatpush1.msra.mxu0 %v1089
        %1382 = vmatprep.subr.mxu0 %v1095
        %1383 = vmatpush1.msra.mxu0 %v1094
        %1384 = vmatprep.mubr.f32.mxu0 %v935
        %1385 = vmatmul.mubr.f32.gmra.mrb[0].mxu0 %v934
        %v1386 = vpop.f32.mrb[0].mxu0
        %v1387 = vadd.f32 %v1294, %v1386
        %v1388 = vpop.f32.mrb[0].mxu0
        %v1389 = vadd.f32 %v1298, %v1388
        %1390 = vdwg.mxu0
        %1391 = vmatprep.subr.mxu0 %v1100
        %1392 = vmatpush1.msra.mxu0 %v1099
        %1393 = vmatprep.subr.mxu0 %v1105
        %1394 = vmatpush1.msra.mxu0 %v1104
        %1395 = vmatprep.subr.mxu0 %v1110
        %1396 = vmatpush1.msra.mxu0 %v1109
        %1397 = vmatprep.subr.mxu0 %v1115
        %1398 = vmatpush1.msra.mxu0 %v1114
        %1399 = vmatprep.subr.mxu0 %v1120
        %1400 = vmatpush1.msra.mxu0 %v1119
        %1401 = vmatprep.subr.mxu0 %v1125
        %1402 = vmatpush1.msra.mxu0 %v1124
        %1403 = vmatprep.subr.mxu0 %v1130
        %1404 = vmatpush1.msra.mxu0 %v1129
        %1405 = vmatprep.subr.mxu0 %v1135
        %1406 = vmatpush1.msra.mxu0 %v1134
        %1407 = vmatprep.subr.mxu0 %v1140
        %1408 = vmatpush1.msra.mxu0 %v1139
        %1409 = vmatprep.subr.mxu0 %v1145
        %1410 = vmatpush1.msra.mxu0 %v1144
        %1411 = vmatprep.subr.mxu0 %v1150
        %1412 = vmatpush1.msra.mxu0 %v1149
        %1413 = vmatprep.subr.mxu0 %v1155
        %1414 = vmatpush1.msra.mxu0 %v1154
        %1415 = vmatprep.subr.mxu0 %v1160
        %1416 = vmatpush1.msra.mxu0 %v1159
        %1417 = vmatprep.subr.mxu0 %v1165
        %1418 = vmatpush1.msra.mxu0 %v1164
        %1419 = vmatprep.subr.mxu0 %v1170
        %1420 = vmatpush1.msra.mxu0 %v1169
        %1421 = vmatprep.subr.mxu0 %v1175
        %1422 = vmatpush1.msra.mxu0 %v1174
        %1423 = vmatprep.subr.mxu0 %v1180
        %1424 = vmatpush1.msra.mxu0 %v1179
        %1425 = vmatprep.subr.mxu0 %v1185
        %1426 = vmatpush1.msra.mxu0 %v1184
        %1427 = vmatprep.subr.mxu0 %v1190
        %1428 = vmatpush1.msra.mxu0 %v1189
        %1429 = vmatprep.subr.mxu0 %v1195
        %1430 = vmatpush1.msra.mxu0 %v1194
        %1431 = vmatprep.subr.mxu0 %v1200
        %1432 = vmatpush1.msra.mxu0 %v1199
        %1433 = vmatprep.subr.mxu0 %v1205
        %1434 = vmatpush1.msra.mxu0 %v1204
        %1435 = vmatprep.subr.mxu0 %v1210
        %1436 = vmatpush1.msra.mxu0 %v1209
        %1437 = vmatprep.subr.mxu0 %v1215
        %1438 = vmatpush1.msra.mxu0 %v1214
        %1439 = vmatprep.subr.mxu0 %v1220
        %1440 = vmatpush1.msra.mxu0 %v1219
        %1441 = vmatprep.subr.mxu0 %v1225
        %1442 = vmatpush1.msra.mxu0 %v1224
        %1443 = vmatprep.subr.mxu0 %v1230
        %1444 = vmatpush1.msra.mxu0 %v1229
        %1445 = vmatprep.subr.mxu0 %v1235
        %1446 = vmatpush1.msra.mxu0 %v1234
        %1447 = vmatprep.subr.mxu0 %v1240
        %1448 = vmatpush1.msra.mxu0 %v1239
        %1449 = vmatprep.subr.mxu0 %v1245
        %1450 = vmatpush1.msra.mxu0 %v1244
        %1451 = vmatprep.subr.mxu0 %v1250
        %1452 = vmatpush1.msra.mxu0 %v1249
        %1453 = vmatprep.subr.mxu0 %v1255
        %1454 = vmatpush1.msra.mxu0 %v1254
        %1455 = vmatprep.mubr.f32.mxu0 %v937
        %1456 = vmatmul.mubr.f32.gmra.mrb[0].mxu0 %v936
        %v1457 = vpop.f32.mrb[0].mxu0
        %v1458 = vadd.f32 %v1387, %v1457
        %v1459 = vpop.f32.mrb[0].mxu0
        %v1460 = vadd.f32 %v1389, %v1459
        %1461 = vdwg.mxu0
        %1462 = vmatprep.subr.mxu0 %v1260
        %1463 = vmatpush1.msra.mxu0 %v1259
        %1464 = vmatprep.subr.mxu0 %v1265
        %1465 = vmatpush1.msra.mxu0 %v1264
        %1466 = vmatprep.subr.mxu0 %v1270
        %1467 = vmatpush1.msra.mxu0 %v1269
        %1468 = vmatprep.subr.mxu0 %v1275
        %1469 = vmatpush1.msra.mxu0 %v1274
        %1470 = vmatprep.subr.mxu0 %v1280
        %1471 = vmatpush1.msra.mxu0 %v1279
        %1472 = vmatprep.subr.mxu0 %v1285
        %1473 = vmatpush1.msra.mxu0 %v1284
        %1474 = vmatprep.subr.mxu0 0.0
        %1475 = vmatpush1.msra.mxu0 0.0
        %1476 = vmatprep.subr.mxu0 0.0
        %1477 = vmatpush1.msra.mxu0 0.0
        %1478 = vmatprep.subr.mxu0 0.0
        %1479 = vmatpush1.msra.mxu0 0.0
        %1480 = vmatprep.subr.mxu0 0.0
        %1481 = vmatpush1.msra.mxu0 0.0
        %1482 = vmatprep.subr.mxu0 0.0
        %1483 = vmatpush1.msra.mxu0 0.0
        %1484 = vmatprep.subr.mxu0 0.0
        %1485 = vmatpush1.msra.mxu0 0.0
        %1486 = vmatprep.subr.mxu0 0.0
        %1487 = vmatpush1.msra.mxu0 0.0
        %1488 = vmatprep.subr.mxu0 0.0
        %1489 = vmatpush1.msra.mxu0 0.0
        %1490 = vmatprep.subr.mxu0 0.0
        %1491 = vmatpush1.msra.mxu0 0.0
        %1492 = vmatprep.subr.mxu0 0.0
        %1493 = vmatpush1.msra.mxu0 0.0
        %1494 = vmatprep.subr.mxu0 0.0
        %1495 = vmatpush1.msra.mxu0 0.0
        %1496 = vmatprep.subr.mxu0 0.0
        %1497 = vmatpush1.msra.mxu0 0.0
        %1498 = vmatprep.subr.mxu0 0.0
        %1499 = vmatpush1.msra.mxu0 0.0
        %1500 = vmatprep.subr.mxu0 0.0
        %1501 = vmatpush1.msra.mxu0 0.0
        %1502 = vmatprep.subr.mxu0 0.0
        %1503 = vmatpush1.msra.mxu0 0.0
        %1504 = vmatprep.subr.mxu0 0.0
        %1505 = vmatpush1.msra.mxu0 0.0
        %1506 = vmatprep.subr.mxu0 0.0
        %1507 = vmatpush1.msra.mxu0 0.0
        %1508 = vmatprep.subr.mxu0 0.0
        %1509 = vmatpush1.msra.mxu0 0.0
        %1510 = vmatprep.subr.mxu0 0.0
        %1511 = vmatpush1.msra.mxu0 0.0
        %1512 = vmatprep.subr.mxu0 0.0
        %1513 = vmatpush1.msra.mxu0 0.0
        %1514 = vmatprep.subr.mxu0 0.0
        %1515 = vmatpush1.msra.mxu0 0.0
        %1516 = vmatprep.subr.mxu0 0.0
        %1517 = vmatpush1.msra.mxu0 0.0
        %1518 = vmatprep.subr.mxu0 0.0
        %1519 = vmatpush1.msra.mxu0 0.0
        %1520 = vmatprep.subr.mxu0 0.0
        %1521 = vmatpush1.msra.mxu0 0.0
        %1522 = vmatprep.subr.mxu0 0.0
        %1523 = vmatpush1.msra.mxu0 0.0
        %1524 = vmatprep.subr.mxu0 0.0
        %1525 = vmatpush1.msra.mxu0 0.0
        %1526 = vmatprep.mubr.f32.mxu0 0.0
        %1527 = vmatmul.mubr.f32.gmra.mrb[0].mxu0 %v1318
        %v1528 = vpop.f32.mrb[0].mxu0
        %v1529 = vadd.f32 %v1458, %v1528
        %v1530 = vpop.f32.mrb[0].mxu0
        %v1531 = vadd.f32 %v1460, %v1530
        %1532 = vdwg.mxu0
        %1533 = vmatprep.subr.mxu0 %v942
        %1534 = vmatpush1.msra.mxu0 %v941
        %1535 = vmatprep.subr.mxu0 %v947
        %1536 = vmatpush1.msra.mxu0 %v946
        %1537 = vmatprep.subr.mxu0 %v952
        %1538 = vmatpush1.msra.mxu0 %v951
        %1539 = vmatprep.subr.mxu0 %v957
        %1540 = vmatpush1.msra.mxu0 %v956
        %1541 = vmatprep.subr.mxu0 %v962
        %1542 = vmatpush1.msra.mxu0 %v961
        %1543 = vmatprep.subr.mxu0 %v967
        %1544 = vmatpush1.msra.mxu0 %v966
        %1545 = vmatprep.subr.mxu0 %v972
        %1546 = vmatpush1.msra.mxu0 %v971
        %1547 = vmatprep.subr.mxu0 %v977
        %1548 = vmatpush1.msra.mxu0 %v976
        %1549 = vmatprep.subr.mxu0 %v982
        %1550 = vmatpush1.msra.mxu0 %v981
        %1551 = vmatprep.subr.mxu0 %v987
        %1552 = vmatpush1.msra.mxu0 %v986
        %1553 = vmatprep.subr.mxu0 %v992
        %1554 = vmatpush1.msra.mxu0 %v991
        %1555 = vmatprep.subr.mxu0 %v997
        %1556 = vmatpush1.msra.mxu0 %v996
        %1557 = vmatprep.subr.mxu0 %v1002
        %1558 = vmatpush1.msra.mxu0 %v1001
        %1559 = vmatprep.subr.mxu0 %v1007
        %1560 = vmatpush1.msra.mxu0 %v1006
        %1561 = vmatprep.subr.mxu0 %v1012
        %1562 = vmatpush1.msra.mxu0 %v1011
        %1563 = vmatprep.subr.mxu0 %v1017
        %1564 = vmatpush1.msra.mxu0 %v1016
        %1565 = vmatprep.subr.mxu0 %v1022
        %1566 = vmatpush1.msra.mxu0 %v1021
        %1567 = vmatprep.subr.mxu0 %v1027
        %1568 = vmatpush1.msra.mxu0 %v1026
        %1569 = vmatprep.subr.mxu0 %v1032
        %1570 = vmatpush1.msra.mxu0 %v1031
        %1571 = vmatprep.subr.mxu0 %v1037
        %1572 = vmatpush1.msra.mxu0 %v1036
        %1573 = vmatprep.subr.mxu0 %v1042
        %1574 = vmatpush1.msra.mxu0 %v1041
        %1575 = vmatprep.subr.mxu0 %v1047
        %1576 = vmatpush1.msra.mxu0 %v1046
        %1577 = vmatprep.subr.mxu0 %v1052
        %1578 = vmatpush1.msra.mxu0 %v1051
        %1579 = vmatprep.subr.mxu0 %v1057
        %1580 = vmatpush1.msra.mxu0 %v1056
        %1581 = vmatprep.subr.mxu0 %v1062
        %1582 = vmatpush1.msra.mxu0 %v1061
        %1583 = vmatprep.subr.mxu0 %v1067
        %1584 = vmatpush1.msra.mxu0 %v1066
        %1585 = vmatprep.subr.mxu0 %v1072
        %1586 = vmatpush1.msra.mxu0 %v1071
        %1587 = vmatprep.subr.mxu0 %v1077
        %1588 = vmatpush1.msra.mxu0 %v1076
        %1589 = vmatprep.subr.mxu0 %v1082
        %1590 = vmatpush1.msra.mxu0 %v1081
        %1591 = vmatprep.subr.mxu0 %v1087
        %1592 = vmatpush1.msra.mxu0 %v1086
        %1593 = vmatprep.subr.mxu0 %v1092
        %1594 = vmatpush1.msra.mxu0 %v1091
        %1595 = vmatprep.subr.mxu0 %v1097
        %1596 = vmatpush1.msra.mxu0 %v1096
        %1597 = vmatprep.mubr.f32.mxu0 %v935
        %1598 = vmatmul.mubr.f32.gmra.mrb[0].mxu0 %v934
        %v1599 = vpop.f32.mrb[0].mxu0
        %v1600 = vadd.f32 %v1302, %v1599
        %v1601 = vpop.f32.mrb[0].mxu0
        %v1602 = vadd.f32 %v1306, %v1601
        %1603 = vdwg.mxu0
        %1604 = vmatprep.subr.mxu0 %v1102
        %1605 = vmatpush1.msra.mxu0 %v1101
        %1606 = vmatprep.subr.mxu0 %v1107
        %1607 = vmatpush1.msra.mxu0 %v1106
        %1608 = vmatprep.subr.mxu0 %v1112
        %1609 = vmatpush1.msra.mxu0 %v1111
        %1610 = vmatprep.subr.mxu0 %v1117
        %1611 = vmatpush1.msra.mxu0 %v1116
        %1612 = vmatprep.subr.mxu0 %v1122
        %1613 = vmatpush1.msra.mxu0 %v1121
        %1614 = vmatprep.subr.mxu0 %v1127
        %1615 = vmatpush1.msra.mxu0 %v1126
        %1616 = vmatprep.subr.mxu0 %v1132
        %1617 = vmatpush1.msra.mxu0 %v1131
        %1618 = vmatprep.subr.mxu0 %v1137
        %1619 = vmatpush1.msra.mxu0 %v1136
        %1620 = vmatprep.subr.mxu0 %v1142
        %1621 = vmatpush1.msra.mxu0 %v1141
        %1622 = vmatprep.subr.mxu0 %v1147
        %1623 = vmatpush1.msra.mxu0 %v1146
        %1624 = vmatprep.subr.mxu0 %v1152
        %1625 = vmatpush1.msra.mxu0 %v1151
        %1626 = vmatprep.subr.mxu0 %v1157
        %1627 = vmatpush1.msra.mxu0 %v1156
        %1628 = vmatprep.subr.mxu0 %v1162
        %1629 = vmatpush1.msra.mxu0 %v1161
        %1630 = vmatprep.subr.mxu0 %v1167
        %1631 = vmatpush1.msra.mxu0 %v1166
        %1632 = vmatprep.subr.mxu0 %v1172
        %1633 = vmatpush1.msra.mxu0 %v1171
        %1634 = vmatprep.subr.mxu0 %v1177
        %1635 = vmatpush1.msra.mxu0 %v1176
        %1636 = vmatprep.subr.mxu0 %v1182
        %1637 = vmatpush1.msra.mxu0 %v1181
        %1638 = vmatprep.subr.mxu0 %v1187
        %1639 = vmatpush1.msra.mxu0 %v1186
        %1640 = vmatprep.subr.mxu0 %v1192
        %1641 = vmatpush1.msra.mxu0 %v1191
        %1642 = vmatprep.subr.mxu0 %v1197
        %1643 = vmatpush1.msra.mxu0 %v1196
        %1644 = vmatprep.subr.mxu0 %v1202
        %1645 = vmatpush1.msra.mxu0 %v1201
        %1646 = vmatprep.subr.mxu0 %v1207
        %1647 = vmatpush1.msra.mxu0 %v1206
        %1648 = vmatprep.subr.mxu0 %v1212
        %1649 = vmatpush1.msra.mxu0 %v1211
        %1650 = vmatprep.subr.mxu0 %v1217
        %1651 = vmatpush1.msra.mxu0 %v1216
        %1652 = vmatprep.subr.mxu0 %v1222
        %1653 = vmatpush1.msra.mxu0 %v1221
        %1654 = vmatprep.subr.mxu0 %v1227
        %1655 = vmatpush1.msra.mxu0 %v1226
        %1656 = vmatprep.subr.mxu0 %v1232
        %1657 = vmatpush1.msra.mxu0 %v1231
        %1658 = vmatprep.subr.mxu0 %v1237
        %1659 = vmatpush1.msra.mxu0 %v1236
        %1660 = vmatprep.subr.mxu0 %v1242
        %1661 = vmatpush1.msra.mxu0 %v1241
        %1662 = vmatprep.subr.mxu0 %v1247
        %1663 = vmatpush1.msra.mxu0 %v1246
        %1664 = vmatprep.subr.mxu0 %v1252
        %1665 = vmatpush1.msra.mxu0 %v1251
        %1666 = vmatprep.subr.mxu0 %v1257
        %1667 = vmatpush1.msra.mxu0 %v1256
        %1668 = vmatprep.mubr.f32.mxu0 %v937
        %1669 = vmatmul.mubr.f32.gmra.mrb[0].mxu0 %v936
        %v1670 = vpop.f32.mrb[0].mxu0
        %v1671 = vadd.f32 %v1600, %v1670
        %v1672 = vpop.f32.mrb[0].mxu0
        %v1673 = vadd.f32 %v1602, %v1672
        %1674 = vdwg.mxu0
        %1675 = vmatprep.subr.mxu0 %v1262
        %1676 = vmatpush1.msra.mxu0 %v1261
        %1677 = vmatprep.subr.mxu0 %v1267
        %1678 = vmatpush1.msra.mxu0 %v1266
        %1679 = vmatprep.subr.mxu0 %v1272
        %1680 = vmatpush1.msra.mxu0 %v1271
        %1681 = vmatprep.subr.mxu0 %v1277
        %1682 = vmatpush1.msra.mxu0 %v1276
        %1683 = vmatprep.subr.mxu0 %v1282
        %1684 = vmatpush1.msra.mxu0 %v1281
        %1685 = vmatprep.subr.mxu0 %v1287
        %1686 = vmatpush1.msra.mxu0 %v1286
        %1687 = vmatprep.subr.mxu0 0.0
        %1688 = vmatpush1.msra.mxu0 0.0
        %1689 = vmatprep.subr.mxu0 0.0
        %1690 = vmatpush1.msra.mxu0 0.0
        %1691 = vmatprep.subr.mxu0 0.0
        %1692 = vmatpush1.msra.mxu0 0.0
        %1693 = vmatprep.subr.mxu0 0.0
        %1694 = vmatpush1.msra.mxu0 0.0
        %1695 = vmatprep.subr.mxu0 0.0
        %1696 = vmatpush1.msra.mxu0 0.0
        %1697 = vmatprep.subr.mxu0 0.0
        %1698 = vmatpush1.msra.mxu0 0.0
        %1699 = vmatprep.subr.mxu0 0.0
        %1700 = vmatpush1.msra.mxu0 0.0
        %1701 = vmatprep.subr.mxu0 0.0
        %1702 = vmatpush1.msra.mxu0 0.0
        %1703 = vmatprep.subr.mxu0 0.0
        %1704 = vmatpush1.msra.mxu0 0.0
        %1705 = vmatprep.subr.mxu0 0.0
        %1706 = vmatpush1.msra.mxu0 0.0
        %1707 = vmatprep.subr.mxu0 0.0
        %1708 = vmatpush1.msra.mxu0 0.0
        %1709 = vmatprep.subr.mxu0 0.0
        %1710 = vmatpush1.msra.mxu0 0.0
        %1711 = vmatprep.subr.mxu0 0.0
        %1712 = vmatpush1.msra.mxu0 0.0
        %1713 = vmatprep.subr.mxu0 0.0
        %1714 = vmatpush1.msra.mxu0 0.0
        %1715 = vmatprep.subr.mxu0 0.0
        %1716 = vmatpush1.msra.mxu0 0.0
        %1717 = vmatprep.subr.mxu0 0.0
        %1718 = vmatpush1.msra.mxu0 0.0
        %1719 = vmatprep.subr.mxu0 0.0
        %1720 = vmatpush1.msra.mxu0 0.0
        %1721 = vmatprep.subr.mxu0 0.0
        %1722 = vmatpush1.msra.mxu0 0.0
        %1723 = vmatprep.subr.mxu0 0.0
        %1724 = vmatpush1.msra.mxu0 0.0
        %1725 = vmatprep.subr.mxu0 0.0
        %1726 = vmatpush1.msra.mxu0 0.0
        %1727 = vmatprep.subr.mxu0 0.0
        %1728 = vmatpush1.msra.mxu0 0.0
        %1729 = vmatprep.subr.mxu0 0.0
        %1730 = vmatpush1.msra.mxu0 0.0
        %1731 = vmatprep.subr.mxu0 0.0
        %1732 = vmatpush1.msra.mxu0 0.0
        %1733 = vmatprep.subr.mxu0 0.0
        %1734 = vmatpush1.msra.mxu0 0.0
        %1735 = vmatprep.subr.mxu0 0.0
        %1736 = vmatpush1.msra.mxu0 0.0
        %1737 = vmatprep.subr.mxu0 0.0
        %1738 = vmatpush1.msra.mxu0 0.0
        %1739 = vmatprep.mubr.f32.mxu0 0.0
        %1740 = vmatmul.mubr.f32.gmra.mrb[0].mxu0 %v1318
        %v1741 = vpop.f32.mrb[0].mxu0
        %v1742 = vadd.f32 %v1671, %v1741
        %v1743 = vpop.f32.mrb[0].mxu0
        %v1744 = vadd.f32 %v1673, %v1743
        %1745 = vdwg.mxu0
        %1746 = vmatprep.subr.mxu0 0.0
        %1747 = vmatpush1.msra.mxu0 %v943
        %1748 = vmatprep.subr.mxu0 0.0
        %1749 = vmatpush1.msra.mxu0 %v948
        %1750 = vmatprep.subr.mxu0 0.0
        %1751 = vmatpush1.msra.mxu0 %v953
        %1752 = vmatprep.subr.mxu0 0.0
        %1753 = vmatpush1.msra.mxu0 %v958
        %1754 = vmatprep.subr.mxu0 0.0
        %1755 = vmatpush1.msra.mxu0 %v963
        %1756 = vmatprep.subr.mxu0 0.0
        %1757 = vmatpush1.msra.mxu0 %v968
        %1758 = vmatprep.subr.mxu0 0.0
        %1759 = vmatpush1.msra.mxu0 %v973
        %1760 = vmatprep.subr.mxu0 0.0
        %1761 = vmatpush1.msra.mxu0 %v978
        %1762 = vmatprep.subr.mxu0 0.0
        %1763 = vmatpush1.msra.mxu0 %v983
        %1764 = vmatprep.subr.mxu0 0.0
        %1765 = vmatpush1.msra.mxu0 %v988
        %1766 = vmatprep.subr.mxu0 0.0
        %1767 = vmatpush1.msra.mxu0 %v993
        %1768 = vmatprep.subr.mxu0 0.0
        %1769 = vmatpush1.msra.mxu0 %v998
        %1770 = vmatprep.subr.mxu0 0.0
        %1771 = vmatpush1.msra.mxu0 %v1003
        %1772 = vmatprep.subr.mxu0 0.0
        %1773 = vmatpush1.msra.mxu0 %v1008
        %1774 = vmatprep.subr.mxu0 0.0
        %1775 = vmatpush1.msra.mxu0 %v1013
        %1776 = vmatprep.subr.mxu0 0.0
        %1777 = vmatpush1.msra.mxu0 %v1018
        %1778 = vmatprep.subr.mxu0 0.0
        %1779 = vmatpush1.msra.mxu0 %v1023
        %1780 = vmatprep.subr.mxu0 0.0
        %1781 = vmatpush1.msra.mxu0 %v1028
        %1782 = vmatprep.subr.mxu0 0.0
        %1783 = vmatpush1.msra.mxu0 %v1033
        %1784 = vmatprep.subr.mxu0 0.0
        %1785 = vmatpush1.msra.mxu0 %v1038
        %1786 = vmatprep.subr.mxu0 0.0
        %1787 = vmatpush1.msra.mxu0 %v1043
        %1788 = vmatprep.subr.mxu0 0.0
        %1789 = vmatpush1.msra.mxu0 %v1048
        %1790 = vmatprep.subr.mxu0 0.0
        %1791 = vmatpush1.msra.mxu0 %v1053
        %1792 = vmatprep.subr.mxu0 0.0
        %1793 = vmatpush1.msra.mxu0 %v1058
        %1794 = vmatprep.subr.mxu0 0.0
        %1795 = vmatpush1.msra.mxu0 %v1063
        %1796 = vmatprep.subr.mxu0 0.0
        %1797 = vmatpush1.msra.mxu0 %v1068
        %1798 = vmatprep.subr.mxu0 0.0
        %1799 = vmatpush1.msra.mxu0 %v1073
        %1800 = vmatprep.subr.mxu0 0.0
        %1801 = vmatpush1.msra.mxu0 %v1078
        %1802 = vmatprep.subr.mxu0 0.0
        %1803 = vmatpush1.msra.mxu0 %v1083
        %1804 = vmatprep.subr.mxu0 0.0
        %1805 = vmatpush1.msra.mxu0 %v1088
        %1806 = vmatprep.subr.mxu0 0.0
        %1807 = vmatpush1.msra.mxu0 %v1093
        %1808 = vmatprep.subr.mxu0 0.0
        %1809 = vmatpush1.msra.mxu0 %v1098
        %1810 = vmatprep.mubr.f32.mxu0 %v935
        %1811 = vmatmul.mubr.f32.gmra.mrb[0].mxu0 %v934
        %v1812 = vpop.f32.mrb[0].mxu0
        %v1813 = vadd.f32 %v1310, %v1812
        %v1814 = vpop.f32.mrb[0].mxu0
        %1815 = vdwg.mxu0
        %1816 = vmatprep.subr.mxu0 0.0
        %1817 = vmatpush1.msra.mxu0 %v1103
        %1818 = vmatprep.subr.mxu0 0.0
        %1819 = vmatpush1.msra.mxu0 %v1108
        %1820 = vmatprep.subr.mxu0 0.0
        %1821 = vmatpush1.msra.mxu0 %v1113
        %1822 = vmatprep.subr.mxu0 0.0
        %1823 = vmatpush1.msra.mxu0 %v1118
        %1824 = vmatprep.subr.mxu0 0.0
        %1825 = vmatpush1.msra.mxu0 %v1123
        %1826 = vmatprep.subr.mxu0 0.0
        %1827 = vmatpush1.msra.mxu0 %v1128
        %1828 = vmatprep.subr.mxu0 0.0
        %1829 = vmatpush1.msra.mxu0 %v1133
        %1830 = vmatprep.subr.mxu0 0.0
        %1831 = vmatpush1.msra.mxu0 %v1138
        %1832 = vmatprep.subr.mxu0 0.0
        %1833 = vmatpush1.msra.mxu0 %v1143
        %1834 = vmatprep.subr.mxu0 0.0
        %1835 = vmatpush1.msra.mxu0 %v1148
        %1836 = vmatprep.subr.mxu0 0.0
        %1837 = vmatpush1.msra.mxu0 %v1153
        %1838 = vmatprep.subr.mxu0 0.0
        %1839 = vmatpush1.msra.mxu0 %v1158
        %1840 = vmatprep.subr.mxu0 0.0
        %1841 = vmatpush1.msra.mxu0 %v1163
        %1842 = vmatprep.subr.mxu0 0.0
        %1843 = vmatpush1.msra.mxu0 %v1168
        %1844 = vmatprep.subr.mxu0 0.0
        %1845 = vmatpush1.msra.mxu0 %v1173
        %1846 = vmatprep.subr.mxu0 0.0
        %1847 = vmatpush1.msra.mxu0 %v1178
        %1848 = vmatprep.subr.mxu0 0.0
        %1849 = vmatpush1.msra.mxu0 %v1183
        %1850 = vmatprep.subr.mxu0 0.0
        %1851 = vmatpush1.msra.mxu0 %v1188
        %1852 = vmatprep.subr.mxu0 0.0
        %1853 = vmatpush1.msra.mxu0 %v1193
        %1854 = vmatprep.subr.mxu0 0.0
        %1855 = vmatpush1.msra.mxu0 %v1198
        %1856 = vmatprep.subr.mxu0 0.0
        %1857 = vmatpush1.msra.mxu0 %v1203
        %1858 = vmatprep.subr.mxu0 0.0
        %1859 = vmatpush1.msra.mxu0 %v1208
        %1860 = vmatprep.subr.mxu0 0.0
        %1861 = vmatpush1.msra.mxu0 %v1213
        %1862 = vmatprep.subr.mxu0 0.0
        %1863 = vmatpush1.msra.mxu0 %v1218
        %1864 = vmatprep.subr.mxu0 0.0
        %1865 = vmatpush1.msra.mxu0 %v1223
        %1866 = vmatprep.subr.mxu0 0.0
        %1867 = vmatpush1.msra.mxu0 %v1228
        %1868 = vmatprep.subr.mxu0 0.0
        %1869 = vmatpush1.msra.mxu0 %v1233
        %1870 = vmatprep.subr.mxu0 0.0
        %1871 = vmatpush1.msra.mxu0 %v1238
        %1872 = vmatprep.subr.mxu0 0.0
        %1873 = vmatpush1.msra.mxu0 %v1243
        %1874 = vmatprep.subr.mxu0 0.0
        %1875 = vmatpush1.msra.mxu0 %v1248
        %1876 = vmatprep.subr.mxu0 0.0
        %1877 = vmatpush1.msra.mxu0 %v1253
        %1878 = vmatprep.subr.mxu0 0.0
        %1879 = vmatpush1.msra.mxu0 %v1258
        %1880 = vmatprep.mubr.f32.mxu0 %v937
        %1881 = vmatmul.mubr.f32.gmra.mrb[0].mxu0 %v936
        %v1882 = vpop.f32.mrb[0].mxu0
        %v1883 = vadd.f32 %v1813, %v1882
        %v1884 = vpop.f32.mrb[0].mxu0
        %1885 = vdwg.mxu0
        %1886 = vmatprep.subr.mxu0 0.0
        %1887 = vmatpush1.msra.mxu0 %v1263
        %1888 = vmatprep.subr.mxu0 0.0
        %1889 = vmatpush1.msra.mxu0 %v1268
        %1890 = vmatprep.subr.mxu0 0.0
        %1891 = vmatpush1.msra.mxu0 %v1273
        %1892 = vmatprep.subr.mxu0 0.0
        %1893 = vmatpush1.msra.mxu0 %v1278
        %1894 = vmatprep.subr.mxu0 0.0
        %1895 = vmatpush1.msra.mxu0 %v1283
        %1896 = vmatprep.subr.mxu0 0.0
        %1897 = vmatpush1.msra.mxu0 %v1288
        %1898 = vmatprep.subr.mxu0 0.0
        %1899 = vmatpush1.msra.mxu0 0.0
        %1900 = vmatprep.subr.mxu0 0.0
        %1901 = vmatpush1.msra.mxu0 0.0
        %1902 = vmatprep.subr.mxu0 0.0
        %1903 = vmatpush1.msra.mxu0 0.0
        %1904 = vmatprep.subr.mxu0 0.0
        %1905 = vmatpush1.msra.mxu0 0.0
        %1906 = vmatprep.subr.mxu0 0.0
        %1907 = vmatpush1.msra.mxu0 0.0
        %1908 = vmatprep.subr.mxu0 0.0
        %1909 = vmatpush1.msra.mxu0 0.0
        %1910 = vmatprep.subr.mxu0 0.0
        %1911 = vmatpush1.msra.mxu0 0.0
        %1912 = vmatprep.subr.mxu0 0.0
        %1913 = vmatpush1.msra.mxu0 0.0
        %1914 = vmatprep.subr.mxu0 0.0
        %1915 = vmatpush1.msra.mxu0 0.0
        %1916 = vmatprep.subr.mxu0 0.0
        %1917 = vmatpush1.msra.mxu0 0.0
        %1918 = vmatprep.subr.mxu0 0.0
        %1919 = vmatpush1.msra.mxu0 0.0
        %1920 = vmatprep.subr.mxu0 0.0
        %1921 = vmatpush1.msra.mxu0 0.0
        %1922 = vmatprep.subr.mxu0 0.0
        %1923 = vmatpush1.msra.mxu0 0.0
        %1924 = vmatprep.subr.mxu0 0.0
        %1925 = vmatpush1.msra.mxu0 0.0
        %1926 = vmatprep.subr.mxu0 0.0
        %1927 = vmatpush1.msra.mxu0 0.0
        %1928 = vmatprep.subr.mxu0 0.0
        %1929 = vmatpush1.msra.mxu0 0.0
        %1930 = vmatprep.subr.mxu0 0.0
        %1931 = vmatpush1.msra.mxu0 0.0
        %1932 = vmatprep.subr.mxu0 0.0
        %1933 = vmatpush1.msra.mxu0 0.0
        %1934 = vmatprep.subr.mxu0 0.0
        %1935 = vmatpush1.msra.mxu0 0.0
        %1936 = vmatprep.subr.mxu0 0.0
        %1937 = vmatpush1.msra.mxu0 0.0
        %1938 = vmatprep.subr.mxu0 0.0
        %1939 = vmatpush1.msra.mxu0 0.0
        %1940 = vmatprep.subr.mxu0 0.0
        %1941 = vmatpush1.msra.mxu0 0.0
        %1942 = vmatprep.subr.mxu0 0.0
        %1943 = vmatpush1.msra.mxu0 0.0
        %1944 = vmatprep.subr.mxu0 0.0
        %1945 = vmatpush1.msra.mxu0 0.0
        %1946 = vmatprep.subr.mxu0 0.0
        %1947 = vmatpush1.msra.mxu0 0.0
        %1948 = vmatprep.subr.mxu0 0.0
        %1949 = vmatpush1.msra.mxu0 0.0
        %1950 = vmatprep.mubr.f32.mxu0 0.0
        %1951 = vmatmul.mubr.f32.gmra.mrb[0].mxu0 %v1318
        %v1952 = vpop.f32.mrb[0].mxu0
        %v1953 = vadd.f32 %v1883, %v1952
        %v1954 = vpop.f32.mrb[0].mxu0
        %1955 = vdwg.mxu0
        %1961 = vrot.lane.b32.xlu0 %v1529, 112
        %v1962 = vpop.permute.xlu0 %1961
        %1963 = vrot.lane.b32.xlu0 %v1531, 112
        %v1964 = vpop.permute.xlu0 %1963
        %1965 = vrot.lane.b32.xlu0 %v1742, 112
        %v1966 = vpop.permute.xlu0 %1965
        %1967 = vrot.lane.b32.xlu0 %v1744, 112
        %v1968 = vpop.permute.xlu0 %1967
        %1969 = vrot.lane.b32.xlu0 %v1953, 112
        %v1970 = vpop.permute.xlu0 %1969
        %vm1971 = vcmask 916480
        %v1972 = vsel %vm1971, %v1962, %v1964
        %v1973 = vsel %vm1971, %v1964, %v1966
        %v1974 = vsel %vm1971, %v1966, %v1968
        %v1975 = vsel %vm1971, %v1968, %v1970
        %v1981 = vmax.f32 %v1529, %v1972
        %v1982 = vmax.f32 %v1531, %v1973
        %v1983 = vmax.f32 %v1742, %v1974
        %v1984 = vmax.f32 %v1744, %v1975
        %v1985 = vmax.f32 %v1953, %v1970
        %v1986 = vld [vmem:[#allocation11] sm:$0xff]
        %v1987 = vld [vmem:[#allocation11 + $0x8] sm:$0xff]
        %v1988 = vld [vmem:[#allocation11 + $0x10] sm:$0xff]
        %v1989 = vld [vmem:[#allocation11 + $0x18] sm:$0xff]
        %v1990 = vld [vmem:[#allocation11 + $0x20] sm:$0xff]
        %v1991 = vld [vmem:[#allocation11 + $0x28] sm:$0xff]
        %v1992 = vld [vmem:[#allocation11 + $0x30] sm:$0xff]
        %v1993 = vld [vmem:[#allocation11 + $0x38] sm:$0xff]
        %v1994 = vld [vmem:[#allocation11 + $0x40] sm:$0xff]
        %v1995 = vld [vmem:[#allocation11 + $0x48] sm:$0xff]
        %v1996 = vld [vmem:[#allocation11 + $0x50] sm:$0xff]
        %v1997 = vld [vmem:[#allocation11 + $0x58] sm:$0xff]
        %v1998 = vld [vmem:[#allocation11 + $0x60] sm:$0xff]
        %v1999 = vld [vmem:[#allocation11 + $0x68] sm:$0xff]
        %v2000 = vld [vmem:[#allocation11 + $0x70] sm:$0xff]
        %v2001 = vld [vmem:[#allocation11 + $0x78] sm:$0xff]
        %v2002 = vld [vmem:[#allocation11 + $0x80] sm:$0xff]
        %v2003 = vld [vmem:[#allocation11 + $0x88] sm:$0xff]
        %v2004 = vld [vmem:[#allocation11 + $0x90] sm:$0xff]
        %v2005 = vld [vmem:[#allocation11 + $0x98] sm:$0xff]
        %v2006 = vld [vmem:[#allocation11 + $0xa0] sm:$0xff]
        %v2007 = vld [vmem:[#allocation11 + $0xa8] sm:$0xff]
        %v2008 = vld [vmem:[#allocation11 + $0xb0] sm:$0xff]
        %v2009 = vld [vmem:[#allocation11 + $0xb8] sm:$0xff]
        %v2010 = vld [vmem:[#allocation11 + $0xc0] sm:$0xff]
        %v2011 = vld [vmem:[#allocation11 + $0xc8] sm:$0xff]
        %v2012 = vld [vmem:[#allocation11 + $0xd0] sm:$0xff]
        %v2013 = vld [vmem:[#allocation11 + $0xd8] sm:$0xff]
        %v2014 = vld [vmem:[#allocation11 + $0xe0] sm:$0xff]
        %v2015 = vld [vmem:[#allocation11 + $0xe8] sm:$0xff]
        %v2016 = vld [vmem:[#allocation11 + $0xf0] sm:$0xff]
        %v2017 = vld [vmem:[#allocation11 + $0xf8] sm:$0xff]
        %v2018 = vld [vmem:[#allocation11 + $0x100] sm:$0xff]
        %v2019 = vld [vmem:[#allocation11 + $0x108] sm:$0xff]
        %v2020 = vld [vmem:[#allocation11 + $0x110] sm:$0xff]
        %v2021 = vld [vmem:[#allocation11 + $0x118] sm:$0xff]
        %v2022 = vld [vmem:[#allocation11 + $0x120] sm:$0xff]
        %v2023 = vld [vmem:[#allocation11 + $0x128] sm:$0xff]
        %v2024 = vld [vmem:[#allocation11 + $0x130] sm:$0xff]
        %v2025 = vld [vmem:[#allocation11 + $0x138] sm:$0xff]
        %v2026 = vld [vmem:[#allocation11 + $0x140] sm:$0xff]
        %v2027 = vld [vmem:[#allocation11 + $0x148] sm:$0xff]
        %v2028 = vld [vmem:[#allocation11 + $0x150] sm:$0xff]
        %v2029 = vld [vmem:[#allocation11 + $0x158] sm:$0xff]
        %v2030 = vld [vmem:[#allocation11 + $0x160] sm:$0xff]
        %v2031 = vld [vmem:[#allocation11 + $0x168] sm:$0xff]
        %v2032 = vld [vmem:[#allocation11 + $0x170] sm:$0xff]
        %v2033 = vld [vmem:[#allocation11 + $0x178] sm:$0xff]
        %v2034 = vld [vmem:[#allocation11 + $0x180] sm:$0xff]
        %v2035 = vld [vmem:[#allocation11 + $0x188] sm:$0xff]
        %v2036 = vld [vmem:[#allocation11 + $0x190] sm:$0xff]
        %v2037 = vld [vmem:[#allocation11 + $0x198] sm:$0xff]
        %v2038 = vld [vmem:[#allocation11 + $0x1a0] sm:$0xff]
        %v2039 = vld [vmem:[#allocation11 + $0x1a8] sm:$0xff]
        %v2040 = vld [vmem:[#allocation11 + $0x1b0] sm:$0xff]
        %v2041 = vld [vmem:[#allocation11 + $0x1b8] sm:$0xff]
        %v2042 = vld [vmem:[#allocation11 + $0x1c0] sm:$0xff]
        %v2043 = vld [vmem:[#allocation11 + $0x1c8] sm:$0xff]
        %v2044 = vld [vmem:[#allocation11 + $0x1d0] sm:$0xff]
        %v2045 = vld [vmem:[#allocation11 + $0x1d8] sm:$0xff]
        %v2046 = vld [vmem:[#allocation11 + $0x1e0] sm:$0xff]
        %v2047 = vld [vmem:[#allocation11 + $0x1e8] sm:$0xff]
        %v2048 = vld [vmem:[#allocation11 + $0x1f0] sm:$0xff]
        %v2049 = vld [vmem:[#allocation11 + $0x1f8] sm:$0xff]
        %v2050 = vld [vmem:[#allocation11 + $0x200] sm:$0xff]
        %v2051 = vld [vmem:[#allocation11 + $0x208] sm:$0xff]
        %v2052 = vld [vmem:[#allocation11 + $0x210] sm:$0xff]
        %v2053 = vld [vmem:[#allocation11 + $0x218] sm:$0xff]
        %v2054 = vld [vmem:[#allocation11 + $0x220] sm:$0xff]
        %v2055 = vld [vmem:[#allocation11 + $0x228] sm:$0xff]
        %v2056 = vld [vmem:[#allocation11 + $0x230] sm:$0xff]
        %v2057 = vld [vmem:[#allocation11 + $0x238] sm:$0xff]
        %v2058 = vld [vmem:[#allocation11 + $0x240] sm:$0xff]
        %v2059 = vld [vmem:[#allocation11 + $0x248] sm:$0xff]
        %v2060 = vld [vmem:[#allocation11 + $0x250] sm:$0xff]
        %v2061 = vld [vmem:[#allocation11 + $0x258] sm:$0xff]
        %v2062 = vld [vmem:[#allocation11 + $0x260] sm:$0xff]
        %v2063 = vld [vmem:[#allocation11 + $0x268] sm:$0xff]
        %v2064 = vld [vmem:[#allocation11 + $0x270] sm:$0xff]
        %v2065 = vld [vmem:[#allocation11 + $0x278] sm:$0xff]
        %v2066 = vld [vmem:[#allocation11 + $0x280] sm:$0xff]
        %v2067 = vld [vmem:[#allocation11 + $0x288] sm:$0xff]
        %v2068 = vld [vmem:[#allocation11 + $0x290] sm:$0xff]
        %v2069 = vld [vmem:[#allocation11 + $0x298] sm:$0xff]
        %v2070 = vld [vmem:[#allocation11 + $0x2a0] sm:$0xff]
        %v2071 = vld [vmem:[#allocation11 + $0x2a8] sm:$0xff]
        %v2072 = vld [vmem:[#allocation11 + $0x2b0] sm:$0xff]
        %v2073 = vld [vmem:[#allocation11 + $0x2b8] sm:$0xff]
        %v2074 = vld [vmem:[#allocation11 + $0x2c0] sm:$0xff]
        %v2075 = vld [vmem:[#allocation11 + $0x2c8] sm:$0xff]
        %v2076 = vld [vmem:[#allocation11 + $0x2d0] sm:$0xff]
        %v2077 = vld [vmem:[#allocation11 + $0x2d8] sm:$0xff]
        %v2078 = vld [vmem:[#allocation11 + $0x2e0] sm:$0xff]
        %v2079 = vld [vmem:[#allocation11 + $0x2e8] sm:$0xff]
        %v2080 = vld [vmem:[#allocation11 + $0x2f0] sm:$0xff]
        %v2081 = vld [vmem:[#allocation11 + $0x2f8] sm:$0xff]
        %v2082 = vld [vmem:[#allocation11 + $0x300] sm:$0xff]
        %v2083 = vld [vmem:[#allocation11 + $0x308] sm:$0xff]
        %v2084 = vld [vmem:[#allocation11 + $0x310] sm:$0xff]
        %v2085 = vld [vmem:[#allocation11 + $0x318] sm:$0xff]
        %v2086 = vld [vmem:[#allocation11 + $0x320] sm:$0xff]
        %v2087 = vld [vmem:[#allocation11 + $0x328] sm:$0xff]
        %v2088 = vld [vmem:[#allocation11 + $0x330] sm:$0xff]
        %v2089 = vld [vmem:[#allocation11 + $0x338] sm:$0xff]
        %v2090 = vld [vmem:[#allocation11 + $0x340] sm:$0xff]
        %v2091 = vld [vmem:[#allocation11 + $0x348] sm:$0xff]
        %v2092 = vld [vmem:[#allocation11 + $0x350] sm:$0xff]
        %v2093 = vld [vmem:[#allocation11 + $0x358] sm:$0xff]
        %v2094 = vld [vmem:[#allocation11 + $0x360] sm:$0xff]
        %v2095 = vld [vmem:[#allocation11 + $0x368] sm:$0xff]
        %v2096 = vld [vmem:[#allocation11 + $0x370] sm:$0xff]
        %v2097 = vld [vmem:[#allocation11 + $0x378] sm:$0xff]
        %v2098 = vld [vmem:[#allocation11 + $0x380] sm:$0xff]
        %v2099 = vld [vmem:[#allocation11 + $0x388] sm:$0xff]
        %v2100 = vld [vmem:[#allocation11 + $0x390] sm:$0xff]
        %v2101 = vld [vmem:[#allocation11 + $0x398] sm:$0xff]
        %v2102 = vld [vmem:[#allocation11 + $0x3a0] sm:$0xff]
        %v2103 = vld [vmem:[#allocation11 + $0x3a8] sm:$0xff]
        %v2104 = vld [vmem:[#allocation11 + $0x3b0] sm:$0xff]
        %v2105 = vld [vmem:[#allocation11 + $0x3b8] sm:$0xff]
        %v2106 = vld [vmem:[#allocation11 + $0x3c0] sm:$0xff]
        %v2107 = vld [vmem:[#allocation11 + $0x3c8] sm:$0xff]
        %v2108 = vld [vmem:[#allocation11 + $0x3d0] sm:$0xff]
        %v2109 = vld [vmem:[#allocation11 + $0x3d8] sm:$0xff]
        %v2110 = vld [vmem:[#allocation11 + $0x3e0] sm:$0xff]
        %v2111 = vld [vmem:[#allocation11 + $0x3e8] sm:$0xff]
        %v2112 = vld [vmem:[#allocation11 + $0x3f0] sm:$0xff]
        %v2113 = vld [vmem:[#allocation11 + $0x3f8] sm:$0xff]
        %v2114 = vld [vmem:[#allocation11 + $0x400] sm:$0xff]
        %v2115 = vld [vmem:[#allocation11 + $0x408] sm:$0xff]
        %v2116 = vld [vmem:[#allocation11 + $0x410] sm:$0xff]
        %v2117 = vld [vmem:[#allocation11 + $0x418] sm:$0xff]
        %v2118 = vld [vmem:[#allocation11 + $0x420] sm:$0xff]
        %v2119 = vld [vmem:[#allocation11 + $0x428] sm:$0xff]
        %v2120 = vld [vmem:[#allocation11 + $0x430] sm:$0xff]
        %v2121 = vld [vmem:[#allocation11 + $0x438] sm:$0xff]
        %v2122 = vld [vmem:[#allocation11 + $0x440] sm:$0xff]
        %v2123 = vld [vmem:[#allocation11 + $0x448] sm:$0xff]
        %v2124 = vld [vmem:[#allocation11 + $0x450] sm:$0xff]
        %v2125 = vld [vmem:[#allocation11 + $0x458] sm:$0xff]
        %v2126 = vld [vmem:[#allocation11 + $0x460] sm:$0xff]
        %v2127 = vld [vmem:[#allocation11 + $0x468] sm:$0xff]
        %v2128 = vld [vmem:[#allocation11 + $0x470] sm:$0xff]
        %v2129 = vld [vmem:[#allocation11 + $0x478] sm:$0xff]
        %v2130 = vld [vmem:[#allocation11 + $0x480] sm:$0xff]
        %v2131 = vld [vmem:[#allocation11 + $0x488] sm:$0xff]
        %v2132 = vld [vmem:[#allocation11 + $0x490] sm:$0xff]
        %v2133 = vld [vmem:[#allocation11 + $0x498] sm:$0xff]
        %v2134 = vld [vmem:[#allocation11 + $0x4a0] sm:$0xff]
        %v2135 = vld [vmem:[#allocation11 + $0x4a8] sm:$0xff]
        %v2136 = vld [vmem:[#allocation11 + $0x4b0] sm:$0xff]
        %v2137 = vld [vmem:[#allocation11 + $0x4b8] sm:$0xff]
        %v2138 = vld [vmem:[#allocation11 + $0x4c0] sm:$0xff]
        %v2139 = vld [vmem:[#allocation11 + $0x4c8] sm:$0xff]
        %v2140 = vld [vmem:[#allocation11 + $0x4d0] sm:$0xff]
        %v2141 = vld [vmem:[#allocation11 + $0x4d8] sm:$0xff]
        %v2142 = vld [vmem:[#allocation11 + $0x4e0] sm:$0xff]
        %v2143 = vld [vmem:[#allocation11 + $0x4e8] sm:$0xff]
        %v2144 = vld [vmem:[#allocation11 + $0x4f0] sm:$0xff]
        %v2145 = vld [vmem:[#allocation11 + $0x4f8] sm:$0xff]
        %v2146 = vld [vmem:[#allocation11 + $0x500] sm:$0xff]
        %v2147 = vld [vmem:[#allocation11 + $0x508] sm:$0xff]
        %v2148 = vld [vmem:[#allocation11 + $0x510] sm:$0xff]
        %v2149 = vld [vmem:[#allocation11 + $0x518] sm:$0xff]
        %v2150 = vld [vmem:[#allocation11 + $0x520] sm:$0xff]
        %v2151 = vld [vmem:[#allocation11 + $0x528] sm:$0xff]
        %v2152 = vld [vmem:[#allocation11 + $0x530] sm:$0xff]
        %v2153 = vld [vmem:[#allocation11 + $0x538] sm:$0xff]
        %v2154 = vld [vmem:[#allocation11 + $0x540] sm:$0xff]
        %v2155 = vld [vmem:[#allocation11 + $0x548] sm:$0xff]
        %v2156 = vld [vmem:[#allocation11 + $0x550] sm:$0xff]
        %v2157 = vld [vmem:[#allocation11 + $0x558] sm:$0xff]
        %v2158 = vld [vmem:[#allocation11 + $0x560] sm:$0xff]
        %v2159 = vld [vmem:[#allocation11 + $0x568] sm:$0xff]
        %v2160 = vld [vmem:[#allocation11 + $0x570] sm:$0xff]
        %v2161 = vld [vmem:[#allocation11 + $0x578] sm:$0xff]
        %v2162 = vld [vmem:[#allocation11 + $0x580] sm:$0xff]
        %v2163 = vld [vmem:[#allocation11 + $0x588] sm:$0xff]
        %v2164 = vld [vmem:[#allocation11 + $0x590] sm:$0xff]
        %v2165 = vld [vmem:[#allocation11 + $0x598] sm:$0xff]
        %v2166 = vld [vmem:[#allocation11 + $0x5a0] sm:$0xff]
        %v2167 = vld [vmem:[#allocation11 + $0x5a8] sm:$0xff]
        %v2168 = vld [vmem:[#allocation11 + $0x5b0] sm:$0xff]
        %v2169 = vld [vmem:[#allocation11 + $0x5b8] sm:$0xff]
        %v2170 = vld [vmem:[#allocation11 + $0x5c0] sm:$0xff]
        %v2171 = vld [vmem:[#allocation11 + $0x5c8] sm:$0xff]
        %v2172 = vld [vmem:[#allocation11 + $0x5d0] sm:$0xff]
        %v2173 = vld [vmem:[#allocation11 + $0x5d8] sm:$0xff]
        %v2174 = vld [vmem:[#allocation11 + $0x5e0] sm:$0xff]
        %v2175 = vld [vmem:[#allocation11 + $0x5e8] sm:$0xff]
        %v2176 = vld [vmem:[#allocation11 + $0x5f0] sm:$0xff]
        %v2177 = vld [vmem:[#allocation11 + $0x5f8] sm:$0xff]
        %v2178 = vld [vmem:[#allocation11 + $0x600] sm:$0xff]
        %v2179 = vld [vmem:[#allocation11 + $0x608] sm:$0xff]
        %v2180 = vld [vmem:[#allocation11 + $0x610] sm:$0xff]
        %v2181 = vld [vmem:[#allocation11 + $0x618] sm:$0xff]
        %v2182 = vld [vmem:[#allocation11 + $0x620] sm:$0xff]
        %v2183 = vld [vmem:[#allocation11 + $0x628] sm:$0xff]
        %v2184 = vld [vmem:[#allocation11 + $0x630] sm:$0xff]
        %v2185 = vld [vmem:[#allocation11 + $0x638] sm:$0xff]
        %v2186 = vld [vmem:[#allocation11 + $0x640] sm:$0xff]
        %v2187 = vld [vmem:[#allocation11 + $0x648] sm:$0xff]
        %v2188 = vld [vmem:[#allocation11 + $0x650] sm:$0xff]
        %v2189 = vld [vmem:[#allocation11 + $0x658] sm:$0xff]
        %v2190 = vld [vmem:[#allocation11 + $0x660] sm:$0xff]
        %v2191 = vld [vmem:[#allocation11 + $0x668] sm:$0xff]
        %v2192 = vld [vmem:[#allocation11 + $0x670] sm:$0xff]
        %v2193 = vld [vmem:[#allocation11 + $0x678] sm:$0xff]
        %v2194 = vld [vmem:[#allocation11 + $0x680] sm:$0xff]
        %v2195 = vld [vmem:[#allocation11 + $0x688] sm:$0xff]
        %v2196 = vld [vmem:[#allocation11 + $0x690] sm:$0xff]
        %v2197 = vld [vmem:[#allocation11 + $0x698] sm:$0xff]
        %v2198 = vld [vmem:[#allocation11 + $0x6a0] sm:$0xff]
        %v2199 = vld [vmem:[#allocation11 + $0x6a8] sm:$0xff]
        %v2200 = vld [vmem:[#allocation11 + $0x6b0] sm:$0xff]
        %v2201 = vld [vmem:[#allocation11 + $0x6b8] sm:$0xff]
        %v2202 = vld [vmem:[#allocation11 + $0x6c0] sm:$0xff]
        %v2203 = vld [vmem:[#allocation11 + $0x6c8] sm:$0xff]
        %v2204 = vld [vmem:[#allocation11 + $0x6d0] sm:$0xff]
        %v2205 = vld [vmem:[#allocation11 + $0x6d8] sm:$0xff]
        %v2206 = vld [vmem:[#allocation11 + $0x6e0] sm:$0xff]
        %v2207 = vld [vmem:[#allocation11 + $0x6e8] sm:$0xff]
        %v2208 = vld [vmem:[#allocation11 + $0x6f0] sm:$0xff]
        %v2209 = vld [vmem:[#allocation11 + $0x6f8] sm:$0xff]
        %v2210 = vld [vmem:[#allocation11 + $0x700] sm:$0xff]
        %v2211 = vld [vmem:[#allocation11 + $0x708] sm:$0xff]
        %v2212 = vld [vmem:[#allocation11 + $0x710] sm:$0xff]
        %v2213 = vld [vmem:[#allocation11 + $0x718] sm:$0xff]
        %v2214 = vld [vmem:[#allocation11 + $0x720] sm:$0xff]
        %v2215 = vld [vmem:[#allocation11 + $0x728] sm:$0xff]
        %v2216 = vld [vmem:[#allocation11 + $0x730] sm:$0xff]
        %v2217 = vld [vmem:[#allocation11 + $0x738] sm:$0xff]
        %v2218 = vld [vmem:[#allocation11 + $0x740] sm:$0xff]
        %v2219 = vld [vmem:[#allocation11 + $0x748] sm:$0xff]
        %v2220 = vld [vmem:[#allocation11 + $0x750] sm:$0xff]
        %v2221 = vld [vmem:[#allocation11 + $0x758] sm:$0xff]
        %v2222 = vld [vmem:[#allocation11 + $0x760] sm:$0xff]
        %v2223 = vld [vmem:[#allocation11 + $0x768] sm:$0xff]
        %v2224 = vld [vmem:[#allocation11 + $0x770] sm:$0xff]
        %v2225 = vld [vmem:[#allocation11 + $0x778] sm:$0xff]
        %v2226 = vld [vmem:[#allocation11 + $0x780] sm:$0xff]
        %v2227 = vld [vmem:[#allocation11 + $0x788] sm:$0xff]
        %v2228 = vld [vmem:[#allocation11 + $0x790] sm:$0xff]
        %v2229 = vld [vmem:[#allocation11 + $0x798] sm:$0xff]
        %v2230 = vld [vmem:[#allocation11 + $0x7a0] sm:$0xff]
        %v2231 = vld [vmem:[#allocation11 + $0x7a8] sm:$0xff]
        %v2232 = vld [vmem:[#allocation11 + $0x7b0] sm:$0xff]
        %v2233 = vld [vmem:[#allocation11 + $0x7b8] sm:$0xff]
        %v2234 = vld [vmem:[#allocation11 + $0x7c0] sm:$0xff]
        %v2235 = vld [vmem:[#allocation11 + $0x7c8] sm:$0xff]
        %v2236 = vld [vmem:[#allocation11 + $0x7d0] sm:$0xff]
        %v2237 = vld [vmem:[#allocation11 + $0x7d8] sm:$0xff]
        %v2238 = vld [vmem:[#allocation11 + $0x7e0] sm:$0xff]
        %v2239 = vld [vmem:[#allocation11 + $0x7e8] sm:$0xff]
        %v2240 = vld [vmem:[#allocation11 + $0x7f0] sm:$0xff]
        %v2241 = vld [vmem:[#allocation11 + $0x7f8] sm:$0xff]
        %v2242 = vld [vmem:[#allocation11 + $0x800] sm:$0xff]
        %v2243 = vld [vmem:[#allocation11 + $0x808] sm:$0xff]
        %v2244 = vld [vmem:[#allocation11 + $0x810] sm:$0xff]
        %v2245 = vld [vmem:[#allocation11 + $0x818] sm:$0xff]
        %v2246 = vld [vmem:[#allocation11 + $0x820] sm:$0xff]
        %v2247 = vld [vmem:[#allocation11 + $0x828] sm:$0xff]
        %v2248 = vld [vmem:[#allocation11 + $0x830] sm:$0xff]
        %v2249 = vld [vmem:[#allocation11 + $0x838] sm:$0xff]
        %v2250 = vld [vmem:[#allocation11 + $0x840] sm:$0xff]
        %v2251 = vld [vmem:[#allocation11 + $0x848] sm:$0xff]
        %v2252 = vld [vmem:[#allocation11 + $0x850] sm:$0xff]
        %v2253 = vld [vmem:[#allocation11 + $0x858] sm:$0xff]
        %v2254 = vld [vmem:[#allocation11 + $0x860] sm:$0xff]
        %v2255 = vld [vmem:[#allocation11 + $0x868] sm:$0xff]
        %v2256 = vld [vmem:[#allocation11 + $0x870] sm:$0xff]
        %v2257 = vld [vmem:[#allocation11 + $0x878] sm:$0xff]
        %v2258 = vld [vmem:[#allocation13] sm:$0xf]
        %v2260 = vlaneseq
        %v2261 = vshrl.u32 %v2260, 7
        %v2262 = vsub.s32 0, %v2261
        %v2263 = vrot.slane %v2258, %v2262
        %v2264 = vlaneseq
        %v2265 = vshrl.u32 %v2264, 7
        %v2266 = vsub.s32 1, %v2265
        %v2267 = vrot.slane %v2258, %v2266
        %v2268 = vlaneseq
        %v2269 = vshrl.u32 %v2268, 7
        %v2270 = vsub.s32 2, %v2269
        %v2271 = vrot.slane %v2258, %v2270
        %v2272 = vlaneseq
        %v2273 = vshrl.u32 %v2272, 7
        %v2274 = vsub.s32 3, %v2273
        %v2275 = vrot.slane %v2258, %v2274
        %vm2280 = vcmask 261120
        %v2282 = vsel %vm2280, %v1985, 0
        %2284 = vmatprep.subr.mxu0 %v1987
        %2285 = vmatpush1.msra.mxu0 %v1986
        %2286 = vmatprep.subr.mxu0 %v1991
        %2287 = vmatpush1.msra.mxu0 %v1990
        %2288 = vmatprep.subr.mxu0 %v1995
        %2289 = vmatpush1.msra.mxu0 %v1994
        %2290 = vmatprep.subr.mxu0 %v1999
        %2291 = vmatpush1.msra.mxu0 %v1998
        %2292 = vmatprep.subr.mxu0 %v2003
        %2293 = vmatpush1.msra.mxu0 %v2002
        %2294 = vmatprep.subr.mxu0 %v2007
        %2295 = vmatpush1.msra.mxu0 %v2006
        %2296 = vmatprep.subr.mxu0 %v2011
        %2297 = vmatpush1.msra.mxu0 %v2010
        %2298 = vmatprep.subr.mxu0 %v2015
        %2299 = vmatpush1.msra.mxu0 %v2014
        %2300 = vmatprep.subr.mxu0 %v2019
        %2301 = vmatpush1.msra.mxu0 %v2018
        %2302 = vmatprep.subr.mxu0 %v2023
        %2303 = vmatpush1.msra.mxu0 %v2022
        %2304 = vmatprep.subr.mxu0 %v2027
        %2305 = vmatpush1.msra.mxu0 %v2026
        %2306 = vmatprep.subr.mxu0 %v2031
        %2307 = vmatpush1.msra.mxu0 %v2030
        %2308 = vmatprep.subr.mxu0 %v2035
        %2309 = vmatpush1.msra.mxu0 %v2034
        %2310 = vmatprep.subr.mxu0 %v2039
        %2311 = vmatpush1.msra.mxu0 %v2038
        %2312 = vmatprep.subr.mxu0 %v2043
        %2313 = vmatpush1.msra.mxu0 %v2042
        %2314 = vmatprep.subr.mxu0 %v2047
        %2315 = vmatpush1.msra.mxu0 %v2046
        %2316 = vmatprep.subr.mxu0 %v2051
        %2317 = vmatpush1.msra.mxu0 %v2050
        %2318 = vmatprep.subr.mxu0 %v2055
        %2319 = vmatpush1.msra.mxu0 %v2054
        %2320 = vmatprep.subr.mxu0 %v2059
        %2321 = vmatpush1.msra.mxu0 %v2058
        %2322 = vmatprep.subr.mxu0 %v2063
        %2323 = vmatpush1.msra.mxu0 %v2062
        %2324 = vmatprep.subr.mxu0 %v2067
        %2325 = vmatpush1.msra.mxu0 %v2066
        %2326 = vmatprep.subr.mxu0 %v2071
        %2327 = vmatpush1.msra.mxu0 %v2070
        %2328 = vmatprep.subr.mxu0 %v2075
        %2329 = vmatpush1.msra.mxu0 %v2074
        %2330 = vmatprep.subr.mxu0 %v2079
        %2331 = vmatpush1.msra.mxu0 %v2078
        %2332 = vmatprep.subr.mxu0 %v2083
        %2333 = vmatpush1.msra.mxu0 %v2082
        %2334 = vmatprep.subr.mxu0 %v2087
        %2335 = vmatpush1.msra.mxu0 %v2086
        %2336 = vmatprep.subr.mxu0 %v2091
        %2337 = vmatpush1.msra.mxu0 %v2090
        %2338 = vmatprep.subr.mxu0 %v2095
        %2339 = vmatpush1.msra.mxu0 %v2094
        %2340 = vmatprep.subr.mxu0 %v2099
        %2341 = vmatpush1.msra.mxu0 %v2098
        %2342 = vmatprep.subr.mxu0 %v2103
        %2343 = vmatpush1.msra.mxu0 %v2102
        %2344 = vmatprep.subr.mxu0 %v2107
        %2345 = vmatpush1.msra.mxu0 %v2106
        %2346 = vmatprep.subr.mxu0 %v2111
        %2347 = vmatpush1.msra.mxu0 %v2110
        %2348 = vmatprep.mubr.f32.mxu0 %v1982
        %2349 = vmatmul.mubr.f32.gmra.mrb[0].mxu0 %v1981
        %v2350 = vpop.f32.mrb[0].mxu0
        %v2351 = vadd.f32 %v2263, %v2350
        %v2352 = vpop.f32.mrb[0].mxu0
        %v2353 = vadd.f32 %v2267, %v2352
        %2354 = vdwg.mxu0
        %2355 = vmatprep.subr.mxu0 %v2115
        %2356 = vmatpush1.msra.mxu0 %v2114
        %2357 = vmatprep.subr.mxu0 %v2119
        %2358 = vmatpush1.msra.mxu0 %v2118
        %2359 = vmatprep.subr.mxu0 %v2123
        %2360 = vmatpush1.msra.mxu0 %v2122
        %2361 = vmatprep.subr.mxu0 %v2127
        %2362 = vmatpush1.msra.mxu0 %v2126
        %2363 = vmatprep.subr.mxu0 %v2131
        %2364 = vmatpush1.msra.mxu0 %v2130
        %2365 = vmatprep.subr.mxu0 %v2135
        %2366 = vmatpush1.msra.mxu0 %v2134
        %2367 = vmatprep.subr.mxu0 %v2139
        %2368 = vmatpush1.msra.mxu0 %v2138
        %2369 = vmatprep.subr.mxu0 %v2143
        %2370 = vmatpush1.msra.mxu0 %v2142
        %2371 = vmatprep.subr.mxu0 %v2147
        %2372 = vmatpush1.msra.mxu0 %v2146
        %2373 = vmatprep.subr.mxu0 %v2151
        %2374 = vmatpush1.msra.mxu0 %v2150
        %2375 = vmatprep.subr.mxu0 %v2155
        %2376 = vmatpush1.msra.mxu0 %v2154
        %2377 = vmatprep.subr.mxu0 %v2159
        %2378 = vmatpush1.msra.mxu0 %v2158
        %2379 = vmatprep.subr.mxu0 %v2163
        %2380 = vmatpush1.msra.mxu0 %v2162
        %2381 = vmatprep.subr.mxu0 %v2167
        %2382 = vmatpush1.msra.mxu0 %v2166
        %2383 = vmatprep.subr.mxu0 %v2171
        %2384 = vmatpush1.msra.mxu0 %v2170
        %2385 = vmatprep.subr.mxu0 %v2175
        %2386 = vmatpush1.msra.mxu0 %v2174
        %2387 = vmatprep.subr.mxu0 %v2179
        %2388 = vmatpush1.msra.mxu0 %v2178
        %2389 = vmatprep.subr.mxu0 %v2183
        %2390 = vmatpush1.msra.mxu0 %v2182
        %2391 = vmatprep.subr.mxu0 %v2187
        %2392 = vmatpush1.msra.mxu0 %v2186
        %2393 = vmatprep.subr.mxu0 %v2191
        %2394 = vmatpush1.msra.mxu0 %v2190
        %2395 = vmatprep.subr.mxu0 %v2195
        %2396 = vmatpush1.msra.mxu0 %v2194
        %2397 = vmatprep.subr.mxu0 %v2199
        %2398 = vmatpush1.msra.mxu0 %v2198
        %2399 = vmatprep.subr.mxu0 %v2203
        %2400 = vmatpush1.msra.mxu0 %v2202
        %2401 = vmatprep.subr.mxu0 %v2207
        %2402 = vmatpush1.msra.mxu0 %v2206
        %2403 = vmatprep.subr.mxu0 %v2211
        %2404 = vmatpush1.msra.mxu0 %v2210
        %2405 = vmatprep.subr.mxu0 %v2215
        %2406 = vmatpush1.msra.mxu0 %v2214
        %2407 = vmatprep.subr.mxu0 %v2219
        %2408 = vmatpush1.msra.mxu0 %v2218
        %2409 = vmatprep.subr.mxu0 %v2223
        %2410 = vmatpush1.msra.mxu0 %v2222
        %2411 = vmatprep.subr.mxu0 %v2227
        %2412 = vmatpush1.msra.mxu0 %v2226
        %2413 = vmatprep.subr.mxu0 %v2231
        %2414 = vmatpush1.msra.mxu0 %v2230
        %2415 = vmatprep.subr.mxu0 %v2235
        %2416 = vmatpush1.msra.mxu0 %v2234
        %2417 = vmatprep.subr.mxu0 %v2239
        %2418 = vmatpush1.msra.mxu0 %v2238
        %2419 = vmatprep.mubr.f32.mxu0 %v1984
        %2420 = vmatmul.mubr.f32.gmra.mrb[0].mxu0 %v1983
        %v2421 = vpop.f32.mrb[0].mxu0
        %v2422 = vadd.f32 %v2351, %v2421
        %v2423 = vpop.f32.mrb[0].mxu0
        %v2424 = vadd.f32 %v2353, %v2423
        %2425 = vdwg.mxu0
        %2426 = vmatprep.subr.mxu0 %v2243
        %2427 = vmatpush1.msra.mxu0 %v2242
        %2428 = vmatprep.subr.mxu0 %v2247
        %2429 = vmatpush1.msra.mxu0 %v2246
        %2430 = vmatprep.subr.mxu0 %v2251
        %2431 = vmatpush1.msra.mxu0 %v2250
        %2432 = vmatprep.subr.mxu0 %v2255
        %2433 = vmatpush1.msra.mxu0 %v2254
        %2434 = vmatprep.subr.mxu0 0.0
        %2435 = vmatpush1.msra.mxu0 0.0
        %2436 = vmatprep.subr.mxu0 0.0
        %2437 = vmatpush1.msra.mxu0 0.0
        %2438 = vmatprep.subr.mxu0 0.0
        %2439 = vmatpush1.msra.mxu0 0.0
        %2440 = vmatprep.subr.mxu0 0.0
        %2441 = vmatpush1.msra.mxu0 0.0
        %2442 = vmatprep.subr.mxu0 0.0
        %2443 = vmatpush1.msra.mxu0 0.0
        %2444 = vmatprep.subr.mxu0 0.0
        %2445 = vmatpush1.msra.mxu0 0.0
        %2446 = vmatprep.subr.mxu0 0.0
        %2447 = vmatpush1.msra.mxu0 0.0
        %2448 = vmatprep.subr.mxu0 0.0
        %2449 = vmatpush1.msra.mxu0 0.0
        %2450 = vmatprep.subr.mxu0 0.0
        %2451 = vmatpush1.msra.mxu0 0.0
        %2452 = vmatprep.subr.mxu0 0.0
        %2453 = vmatpush1.msra.mxu0 0.0
        %2454 = vmatprep.subr.mxu0 0.0
        %2455 = vmatpush1.msra.mxu0 0.0
        %2456 = vmatprep.subr.mxu0 0.0
        %2457 = vmatpush1.msra.mxu0 0.0
        %2458 = vmatprep.subr.mxu0 0.0
        %2459 = vmatpush1.msra.mxu0 0.0
        %2460 = vmatprep.subr.mxu0 0.0
        %2461 = vmatpush1.msra.mxu0 0.0
        %2462 = vmatprep.subr.mxu0 0.0
        %2463 = vmatpush1.msra.mxu0 0.0
        %2464 = vmatprep.subr.mxu0 0.0
        %2465 = vmatpush1.msra.mxu0 0.0
        %2466 = vmatprep.subr.mxu0 0.0
        %2467 = vmatpush1.msra.mxu0 0.0
        %2468 = vmatprep.subr.mxu0 0.0
        %2469 = vmatpush1.msra.mxu0 0.0
        %2470 = vmatprep.subr.mxu0 0.0
        %2471 = vmatpush1.msra.mxu0 0.0
        %2472 = vmatprep.subr.mxu0 0.0
        %2473 = vmatpush1.msra.mxu0 0.0
        %2474 = vmatprep.subr.mxu0 0.0
        %2475 = vmatpush1.msra.mxu0 0.0
        %2476 = vmatprep.subr.mxu0 0.0
        %2477 = vmatpush1.msra.mxu0 0.0
        %2478 = vmatprep.subr.mxu0 0.0
        %2479 = vmatpush1.msra.mxu0 0.0
        %2480 = vmatprep.subr.mxu0 0.0
        %2481 = vmatpush1.msra.mxu0 0.0
        %2482 = vmatprep.subr.mxu0 0.0
        %2483 = vmatpush1.msra.mxu0 0.0
        %2484 = vmatprep.subr.mxu0 0.0
        %2485 = vmatpush1.msra.mxu0 0.0
        %2486 = vmatprep.subr.mxu0 0.0
        %2487 = vmatpush1.msra.mxu0 0.0
        %2488 = vmatprep.subr.mxu0 0.0
        %2489 = vmatpush1.msra.mxu0 0.0
        %2490 = vmatprep.mubr.f32.mxu0 0.0
        %2491 = vmatmul.mubr.f32.gmra.mrb[0].mxu0 %v2282
        %v2492 = vpop.f32.mrb[0].mxu0
        %v2493 = vadd.f32 %v2422, %v2492
        %v2494 = vpop.f32.mrb[0].mxu0
        %v2495 = vadd.f32 %v2424, %v2494
        %2496 = vdwg.mxu0
        %2497 = vmatprep.subr.mxu0 %v1989
        %2498 = vmatpush1.msra.mxu0 %v1988
        %2499 = vmatprep.subr.mxu0 %v1993
        %2500 = vmatpush1.msra.mxu0 %v1992
        %2501 = vmatprep.subr.mxu0 %v1997
        %2502 = vmatpush1.msra.mxu0 %v1996
        %2503 = vmatprep.subr.mxu0 %v2001
        %2504 = vmatpush1.msra.mxu0 %v2000
        %2505 = vmatprep.subr.mxu0 %v2005
        %2506 = vmatpush1.msra.mxu0 %v2004
        %2507 = vmatprep.subr.mxu0 %v2009
        %2508 = vmatpush1.msra.mxu0 %v2008
        %2509 = vmatprep.subr.mxu0 %v2013
        %2510 = vmatpush1.msra.mxu0 %v2012
        %2511 = vmatprep.subr.mxu0 %v2017
        %2512 = vmatpush1.msra.mxu0 %v2016
        %2513 = vmatprep.subr.mxu0 %v2021
        %2514 = vmatpush1.msra.mxu0 %v2020
        %2515 = vmatprep.subr.mxu0 %v2025
        %2516 = vmatpush1.msra.mxu0 %v2024
        %2517 = vmatprep.subr.mxu0 %v2029
        %2518 = vmatpush1.msra.mxu0 %v2028
        %2519 = vmatprep.subr.mxu0 %v2033
        %2520 = vmatpush1.msra.mxu0 %v2032
        %2521 = vmatprep.subr.mxu0 %v2037
        %2522 = vmatpush1.msra.mxu0 %v2036
        %2523 = vmatprep.subr.mxu0 %v2041
        %2524 = vmatpush1.msra.mxu0 %v2040
        %2525 = vmatprep.subr.mxu0 %v2045
        %2526 = vmatpush1.msra.mxu0 %v2044
        %2527 = vmatprep.subr.mxu0 %v2049
        %2528 = vmatpush1.msra.mxu0 %v2048
        %2529 = vmatprep.subr.mxu0 %v2053
        %2530 = vmatpush1.msra.mxu0 %v2052
        %2531 = vmatprep.subr.mxu0 %v2057
        %2532 = vmatpush1.msra.mxu0 %v2056
        %2533 = vmatprep.subr.mxu0 %v2061
        %2534 = vmatpush1.msra.mxu0 %v2060
        %2535 = vmatprep.subr.mxu0 %v2065
        %2536 = vmatpush1.msra.mxu0 %v2064
        %2537 = vmatprep.subr.mxu0 %v2069
        %2538 = vmatpush1.msra.mxu0 %v2068
        %2539 = vmatprep.subr.mxu0 %v2073
        %2540 = vmatpush1.msra.mxu0 %v2072
        %2541 = vmatprep.subr.mxu0 %v2077
        %2542 = vmatpush1.msra.mxu0 %v2076
        %2543 = vmatprep.subr.mxu0 %v2081
        %2544 = vmatpush1.msra.mxu0 %v2080
        %2545 = vmatprep.subr.mxu0 %v2085
        %2546 = vmatpush1.msra.mxu0 %v2084
        %2547 = vmatprep.subr.mxu0 %v2089
        %2548 = vmatpush1.msra.mxu0 %v2088
        %2549 = vmatprep.subr.mxu0 %v2093
        %2550 = vmatpush1.msra.mxu0 %v2092
        %2551 = vmatprep.subr.mxu0 %v2097
        %2552 = vmatpush1.msra.mxu0 %v2096
        %2553 = vmatprep.subr.mxu0 %v2101
        %2554 = vmatpush1.msra.mxu0 %v2100
        %2555 = vmatprep.subr.mxu0 %v2105
        %2556 = vmatpush1.msra.mxu0 %v2104
        %2557 = vmatprep.subr.mxu0 %v2109
        %2558 = vmatpush1.msra.mxu0 %v2108
        %2559 = vmatprep.subr.mxu0 %v2113
        %2560 = vmatpush1.msra.mxu0 %v2112
        %2561 = vmatprep.mubr.f32.mxu0 %v1982
        %2562 = vmatmul.mubr.f32.gmra.mrb[0].mxu0 %v1981
        %v2563 = vpop.f32.mrb[0].mxu0
        %v2564 = vadd.f32 %v2271, %v2563
        %v2565 = vpop.f32.mrb[0].mxu0
        %v2566 = vadd.f32 %v2275, %v2565
        %2567 = vdwg.mxu0
        %2568 = vmatprep.subr.mxu0 %v2117
        %2569 = vmatpush1.msra.mxu0 %v2116
        %2570 = vmatprep.subr.mxu0 %v2121
        %2571 = vmatpush1.msra.mxu0 %v2120
        %2572 = vmatprep.subr.mxu0 %v2125
        %2573 = vmatpush1.msra.mxu0 %v2124
        %2574 = vmatprep.subr.mxu0 %v2129
        %2575 = vmatpush1.msra.mxu0 %v2128
        %2576 = vmatprep.subr.mxu0 %v2133
        %2577 = vmatpush1.msra.mxu0 %v2132
        %2578 = vmatprep.subr.mxu0 %v2137
        %2579 = vmatpush1.msra.mxu0 %v2136
        %2580 = vmatprep.subr.mxu0 %v2141
        %2581 = vmatpush1.msra.mxu0 %v2140
        %2582 = vmatprep.subr.mxu0 %v2145
        %2583 = vmatpush1.msra.mxu0 %v2144
        %2584 = vmatprep.subr.mxu0 %v2149
        %2585 = vmatpush1.msra.mxu0 %v2148
        %2586 = vmatprep.subr.mxu0 %v2153
        %2587 = vmatpush1.msra.mxu0 %v2152
        %2588 = vmatprep.subr.mxu0 %v2157
        %2589 = vmatpush1.msra.mxu0 %v2156
        %2590 = vmatprep.subr.mxu0 %v2161
        %2591 = vmatpush1.msra.mxu0 %v2160
        %2592 = vmatprep.subr.mxu0 %v2165
        %2593 = vmatpush1.msra.mxu0 %v2164
        %2594 = vmatprep.subr.mxu0 %v2169
        %2595 = vmatpush1.msra.mxu0 %v2168
        %2596 = vmatprep.subr.mxu0 %v2173
        %2597 = vmatpush1.msra.mxu0 %v2172
        %2598 = vmatprep.subr.mxu0 %v2177
        %2599 = vmatpush1.msra.mxu0 %v2176
        %2600 = vmatprep.subr.mxu0 %v2181
        %2601 = vmatpush1.msra.mxu0 %v2180
        %2602 = vmatprep.subr.mxu0 %v2185
        %2603 = vmatpush1.msra.mxu0 %v2184
        %2604 = vmatprep.subr.mxu0 %v2189
        %2605 = vmatpush1.msra.mxu0 %v2188
        %2606 = vmatprep.subr.mxu0 %v2193
        %2607 = vmatpush1.msra.mxu0 %v2192
        %2608 = vmatprep.subr.mxu0 %v2197
        %2609 = vmatpush1.msra.mxu0 %v2196
        %2610 = vmatprep.subr.mxu0 %v2201
        %2611 = vmatpush1.msra.mxu0 %v2200
        %2612 = vmatprep.subr.mxu0 %v2205
        %2613 = vmatpush1.msra.mxu0 %v2204
        %2614 = vmatprep.subr.mxu0 %v2209
        %2615 = vmatpush1.msra.mxu0 %v2208
        %2616 = vmatprep.subr.mxu0 %v2213
        %2617 = vmatpush1.msra.mxu0 %v2212
        %2618 = vmatprep.subr.mxu0 %v2217
        %2619 = vmatpush1.msra.mxu0 %v2216
        %2620 = vmatprep.subr.mxu0 %v2221
        %2621 = vmatpush1.msra.mxu0 %v2220
        %2622 = vmatprep.subr.mxu0 %v2225
        %2623 = vmatpush1.msra.mxu0 %v2224
        %2624 = vmatprep.subr.mxu0 %v2229
        %2625 = vmatpush1.msra.mxu0 %v2228
        %2626 = vmatprep.subr.mxu0 %v2233
        %2627 = vmatpush1.msra.mxu0 %v2232
        %2628 = vmatprep.subr.mxu0 %v2237
        %2629 = vmatpush1.msra.mxu0 %v2236
        %2630 = vmatprep.subr.mxu0 %v2241
        %2631 = vmatpush1.msra.mxu0 %v2240
        %2632 = vmatprep.mubr.f32.mxu0 %v1984
        %2633 = vmatmul.mubr.f32.gmra.mrb[0].mxu0 %v1983
        %v2634 = vpop.f32.mrb[0].mxu0
        %v2635 = vadd.f32 %v2564, %v2634
        %v2636 = vpop.f32.mrb[0].mxu0
        %v2637 = vadd.f32 %v2566, %v2636
        %2638 = vdwg.mxu0
        %2639 = vmatprep.subr.mxu0 %v2245
        %2640 = vmatpush1.msra.mxu0 %v2244
        %2641 = vmatprep.subr.mxu0 %v2249
        %2642 = vmatpush1.msra.mxu0 %v2248
        %2643 = vmatprep.subr.mxu0 %v2253
        %2644 = vmatpush1.msra.mxu0 %v2252
        %2645 = vmatprep.subr.mxu0 %v2257
        %2646 = vmatpush1.msra.mxu0 %v2256
        %2647 = vmatprep.subr.mxu0 0.0
        %2648 = vmatpush1.msra.mxu0 0.0
        %2649 = vmatprep.subr.mxu0 0.0
        %2650 = vmatpush1.msra.mxu0 0.0
        %2651 = vmatprep.subr.mxu0 0.0
        %2652 = vmatpush1.msra.mxu0 0.0
        %2653 = vmatprep.subr.mxu0 0.0
        %2654 = vmatpush1.msra.mxu0 0.0
        %2655 = vmatprep.subr.mxu0 0.0
        %2656 = vmatpush1.msra.mxu0 0.0
        %2657 = vmatprep.subr.mxu0 0.0
        %2658 = vmatpush1.msra.mxu0 0.0
        %2659 = vmatprep.subr.mxu0 0.0
        %2660 = vmatpush1.msra.mxu0 0.0
        %2661 = vmatprep.subr.mxu0 0.0
        %2662 = vmatpush1.msra.mxu0 0.0
        %2663 = vmatprep.subr.mxu0 0.0
        %2664 = vmatpush1.msra.mxu0 0.0
        %2665 = vmatprep.subr.mxu0 0.0
        %2666 = vmatpush1.msra.mxu0 0.0
        %2667 = vmatprep.subr.mxu0 0.0
        %2668 = vmatpush1.msra.mxu0 0.0
        %2669 = vmatprep.subr.mxu0 0.0
        %2670 = vmatpush1.msra.mxu0 0.0
        %2671 = vmatprep.subr.mxu0 0.0
        %2672 = vmatpush1.msra.mxu0 0.0
        %2673 = vmatprep.subr.mxu0 0.0
        %2674 = vmatpush1.msra.mxu0 0.0
        %2675 = vmatprep.subr.mxu0 0.0
        %2676 = vmatpush1.msra.mxu0 0.0
        %2677 = vmatprep.subr.mxu0 0.0
        %2678 = vmatpush1.msra.mxu0 0.0
        %2679 = vmatprep.subr.mxu0 0.0
        %2680 = vmatpush1.msra.mxu0 0.0
        %2681 = vmatprep.subr.mxu0 0.0
        %2682 = vmatpush1.msra.mxu0 0.0
        %2683 = vmatprep.subr.mxu0 0.0
        %2684 = vmatpush1.msra.mxu0 0.0
        %2685 = vmatprep.subr.mxu0 0.0
        %2686 = vmatpush1.msra.mxu0 0.0
        %2687 = vmatprep.subr.mxu0 0.0
        %2688 = vmatpush1.msra.mxu0 0.0
        %2689 = vmatprep.subr.mxu0 0.0
        %2690 = vmatpush1.msra.mxu0 0.0
        %2691 = vmatprep.subr.mxu0 0.0
        %2692 = vmatpush1.msra.mxu0 0.0
        %2693 = vmatprep.subr.mxu0 0.0
        %2694 = vmatpush1.msra.mxu0 0.0
        %2695 = vmatprep.subr.mxu0 0.0
        %2696 = vmatpush1.msra.mxu0 0.0
        %2697 = vmatprep.subr.mxu0 0.0
        %2698 = vmatpush1.msra.mxu0 0.0
        %2699 = vmatprep.subr.mxu0 0.0
        %2700 = vmatpush1.msra.mxu0 0.0
        %2701 = vmatprep.subr.mxu0 0.0
        %2702 = vmatpush1.msra.mxu0 0.0
        %2703 = vmatprep.mubr.f32.mxu0 0.0
        %2704 = vmatmul.mubr.f32.gmra.mrb[0].mxu0 %v2282
        %v2705 = vpop.f32.mrb[0].mxu0
        %v2706 = vadd.f32 %v2635, %v2705
        %v2707 = vpop.f32.mrb[0].mxu0
        %v2708 = vadd.f32 %v2637, %v2707
        %2709 = vdwg.mxu0
        %2714 = vrot.lane.b32.xlu0 %v2493, 96
        %v2715 = vpop.permute.xlu0 %2714
        %2716 = vrot.lane.b32.xlu0 %v2495, 96
        %v2717 = vpop.permute.xlu0 %2716
        %2718 = vrot.lane.b32.xlu0 %v2706, 96
        %v2719 = vpop.permute.xlu0 %2718
        %2720 = vrot.lane.b32.xlu0 %v2708, 96
        %v2721 = vpop.permute.xlu0 %2720
        %vm2722 = vcmask 785408
        %v2723 = vsel %vm2722, %v2715, %v2717
        %v2724 = vsel %vm2722, %v2717, %v2719
        %v2725 = vsel %vm2722, %v2719, %v2721
        %v2730 = vmax.f32 %v2493, %v2723
        %v2731 = vmax.f32 %v2495, %v2724
        %v2732 = vmax.f32 %v2706, %v2725
        %v2733 = vmax.f32 %v2708, %v2721
        %v2734 = vld [vmem:[#allocation14] sm:$0xff]
        %v2735 = vld [vmem:[#allocation14 + $0x8] sm:$0xff]
        %v2736 = vld [vmem:[#allocation14 + $0x10] sm:$0xff]
        %v2737 = vld [vmem:[#allocation14 + $0x18] sm:$0xff]
        %v2738 = vld [vmem:[#allocation14 + $0x20] sm:$0xff]
        %v2739 = vld [vmem:[#allocation14 + $0x28] sm:$0xff]
        %v2740 = vld [vmem:[#allocation14 + $0x30] sm:$0xff]
        %v2741 = vld [vmem:[#allocation14 + $0x38] sm:$0xff]
        %v2742 = vld [vmem:[#allocation14 + $0x40] sm:$0xff]
        %v2743 = vld [vmem:[#allocation14 + $0x48] sm:$0xff]
        %v2744 = vld [vmem:[#allocation14 + $0x50] sm:$0xff]
        %v2745 = vld [vmem:[#allocation14 + $0x58] sm:$0xff]
        %v2746 = vld [vmem:[#allocation14 + $0x60] sm:$0xff]
        %v2747 = vld [vmem:[#allocation14 + $0x68] sm:$0xff]
        %v2748 = vld [vmem:[#allocation14 + $0x70] sm:$0xff]
        %v2749 = vld [vmem:[#allocation14 + $0x78] sm:$0xff]
        %v2750 = vld [vmem:[#allocation14 + $0x80] sm:$0xff]
        %v2751 = vld [vmem:[#allocation14 + $0x88] sm:$0xff]
        %v2752 = vld [vmem:[#allocation14 + $0x90] sm:$0xff]
        %v2753 = vld [vmem:[#allocation14 + $0x98] sm:$0xff]
        %v2754 = vld [vmem:[#allocation14 + $0xa0] sm:$0xff]
        %v2755 = vld [vmem:[#allocation14 + $0xa8] sm:$0xff]
        %v2756 = vld [vmem:[#allocation14 + $0xb0] sm:$0xff]
        %v2757 = vld [vmem:[#allocation14 + $0xb8] sm:$0xff]
        %v2758 = vld [vmem:[#allocation14 + $0xc0] sm:$0xff]
        %v2759 = vld [vmem:[#allocation14 + $0xc8] sm:$0xff]
        %v2760 = vld [vmem:[#allocation14 + $0xd0] sm:$0xff]
        %v2761 = vld [vmem:[#allocation14 + $0xd8] sm:$0xff]
        %v2762 = vld [vmem:[#allocation14 + $0xe0] sm:$0xff]
        %v2763 = vld [vmem:[#allocation14 + $0xe8] sm:$0xff]
        %v2764 = vld [vmem:[#allocation14 + $0xf0] sm:$0xff]
        %v2765 = vld [vmem:[#allocation14 + $0xf8] sm:$0xff]
        %v2766 = vld [vmem:[#allocation14 + $0x100] sm:$0xff]
        %v2767 = vld [vmem:[#allocation14 + $0x108] sm:$0xff]
        %v2768 = vld [vmem:[#allocation14 + $0x110] sm:$0xff]
        %v2769 = vld [vmem:[#allocation14 + $0x118] sm:$0xff]
        %v2770 = vld [vmem:[#allocation14 + $0x120] sm:$0xff]
        %v2771 = vld [vmem:[#allocation14 + $0x128] sm:$0xff]
        %v2772 = vld [vmem:[#allocation14 + $0x130] sm:$0xff]
        %v2773 = vld [vmem:[#allocation14 + $0x138] sm:$0xff]
        %v2774 = vld [vmem:[#allocation14 + $0x140] sm:$0xff]
        %v2775 = vld [vmem:[#allocation14 + $0x148] sm:$0xff]
        %v2776 = vld [vmem:[#allocation14 + $0x150] sm:$0xff]
        %v2777 = vld [vmem:[#allocation14 + $0x158] sm:$0xff]
        %v2778 = vld [vmem:[#allocation14 + $0x160] sm:$0xff]
        %v2779 = vld [vmem:[#allocation14 + $0x168] sm:$0xff]
        %v2780 = vld [vmem:[#allocation14 + $0x170] sm:$0xff]
        %v2781 = vld [vmem:[#allocation14 + $0x178] sm:$0xff]
        %v2782 = vld [vmem:[#allocation14 + $0x180] sm:$0xff]
        %v2783 = vld [vmem:[#allocation14 + $0x188] sm:$0xff]
        %v2784 = vld [vmem:[#allocation14 + $0x190] sm:$0xff]
        %v2785 = vld [vmem:[#allocation14 + $0x198] sm:$0xff]
        %v2786 = vld [vmem:[#allocation14 + $0x1a0] sm:$0xff]
        %v2787 = vld [vmem:[#allocation14 + $0x1a8] sm:$0xff]
        %v2788 = vld [vmem:[#allocation14 + $0x1b0] sm:$0xff]
        %v2789 = vld [vmem:[#allocation14 + $0x1b8] sm:$0xff]
        %v2790 = vld [vmem:[#allocation14 + $0x1c0] sm:$0xff]
        %v2791 = vld [vmem:[#allocation14 + $0x1c8] sm:$0xff]
        %v2792 = vld [vmem:[#allocation14 + $0x1d0] sm:$0xff]
        %v2793 = vld [vmem:[#allocation14 + $0x1d8] sm:$0xff]
        %v2794 = vld [vmem:[#allocation16] sm:$0x1]
        %v2796 = vlaneseq
        %v2797 = vshrl.u32 %v2796, 7
        %v2798 = vsub.s32 0, %v2797
        %v2799 = vrot.slane %v2794, %v2798
        %v2802 = vsel %vm2722, %v2733, 0
        %2804 = vmatprep.subr.mxu0 0.0
        %2805 = vmatpush1.msra.mxu0 %v2734
        %2806 = vmatprep.subr.mxu0 0.0
        %2807 = vmatpush1.msra.mxu0 %v2735
        %2808 = vmatprep.subr.mxu0 0.0
        %2809 = vmatpush1.msra.mxu0 %v2736
        %2810 = vmatprep.subr.mxu0 0.0
        %2811 = vmatpush1.msra.mxu0 %v2737
        %2812 = vmatprep.subr.mxu0 0.0
        %2813 = vmatpush1.msra.mxu0 %v2738
        %2814 = vmatprep.subr.mxu0 0.0
        %2815 = vmatpush1.msra.mxu0 %v2739
        %2816 = vmatprep.subr.mxu0 0.0
        %2817 = vmatpush1.msra.mxu0 %v2740
        %2818 = vmatprep.subr.mxu0 0.0
        %2819 = vmatpush1.msra.mxu0 %v2741
        %2820 = vmatprep.subr.mxu0 0.0
        %2821 = vmatpush1.msra.mxu0 %v2742
        %2822 = vmatprep.subr.mxu0 0.0
        %2823 = vmatpush1.msra.mxu0 %v2743
        %2824 = vmatprep.subr.mxu0 0.0
        %2825 = vmatpush1.msra.mxu0 %v2744
        %2826 = vmatprep.subr.mxu0 0.0
        %2827 = vmatpush1.msra.mxu0 %v2745
        %2828 = vmatprep.subr.mxu0 0.0
        %2829 = vmatpush1.msra.mxu0 %v2746
        %2830 = vmatprep.subr.mxu0 0.0
        %2831 = vmatpush1.msra.mxu0 %v2747
        %2832 = vmatprep.subr.mxu0 0.0
        %2833 = vmatpush1.msra.mxu0 %v2748
        %2834 = vmatprep.subr.mxu0 0.0
        %2835 = vmatpush1.msra.mxu0 %v2749
        %2836 = vmatprep.subr.mxu0 0.0
        %2837 = vmatpush1.msra.mxu0 %v2750
        %2838 = vmatprep.subr.mxu0 0.0
        %2839 = vmatpush1.msra.mxu0 %v2751
        %2840 = vmatprep.subr.mxu0 0.0
        %2841 = vmatpush1.msra.mxu0 %v2752
        %2842 = vmatprep.subr.mxu0 0.0
        %2843 = vmatpush1.msra.mxu0 %v2753
        %2844 = vmatprep.subr.mxu0 0.0
        %2845 = vmatpush1.msra.mxu0 %v2754
        %2846 = vmatprep.subr.mxu0 0.0
        %2847 = vmatpush1.msra.mxu0 %v2755
        %2848 = vmatprep.subr.mxu0 0.0
        %2849 = vmatpush1.msra.mxu0 %v2756
        %2850 = vmatprep.subr.mxu0 0.0
        %2851 = vmatpush1.msra.mxu0 %v2757
        %2852 = vmatprep.subr.mxu0 0.0
        %2853 = vmatpush1.msra.mxu0 %v2758
        %2854 = vmatprep.subr.mxu0 0.0
        %2855 = vmatpush1.msra.mxu0 %v2759
        %2856 = vmatprep.subr.mxu0 0.0
        %2857 = vmatpush1.msra.mxu0 %v2760
        %2858 = vmatprep.subr.mxu0 0.0
        %2859 = vmatpush1.msra.mxu0 %v2761
        %2860 = vmatprep.subr.mxu0 0.0
        %2861 = vmatpush1.msra.mxu0 %v2762
        %2862 = vmatprep.subr.mxu0 0.0
        %2863 = vmatpush1.msra.mxu0 %v2763
        %2864 = vmatprep.subr.mxu0 0.0
        %2865 = vmatpush1.msra.mxu0 %v2764
        %2866 = vmatprep.subr.mxu0 0.0
        %2867 = vmatpush1.msra.mxu0 %v2765
        %2868 = vmatprep.mubr.f32.mxu0 %v2731
        %2869 = vmatmul.mubr.f32.gmra.mrb[0].mxu0 %v2730
        %v2870 = vpop.f32.mrb[0].mxu0
        %v2871 = vadd.f32 %v2799, %v2870
        %v2872 = vpop.f32.mrb[0].mxu0
        %2873 = vdwg.mxu0
        %2874 = vmatprep.subr.mxu0 0.0
        %2875 = vmatpush1.msra.mxu0 %v2766
        %2876 = vmatprep.subr.mxu0 0.0
        %2877 = vmatpush1.msra.mxu0 %v2767
        %2878 = vmatprep.subr.mxu0 0.0
        %2879 = vmatpush1.msra.mxu0 %v2768
        %2880 = vmatprep.subr.mxu0 0.0
        %2881 = vmatpush1.msra.mxu0 %v2769
        %2882 = vmatprep.subr.mxu0 0.0
        %2883 = vmatpush1.msra.mxu0 %v2770
        %2884 = vmatprep.subr.mxu0 0.0
        %2885 = vmatpush1.msra.mxu0 %v2771
        %2886 = vmatprep.subr.mxu0 0.0
        %2887 = vmatpush1.msra.mxu0 %v2772
        %2888 = vmatprep.subr.mxu0 0.0
        %2889 = vmatpush1.msra.mxu0 %v2773
        %2890 = vmatprep.subr.mxu0 0.0
        %2891 = vmatpush1.msra.mxu0 %v2774
        %2892 = vmatprep.subr.mxu0 0.0
        %2893 = vmatpush1.msra.mxu0 %v2775
        %2894 = vmatprep.subr.mxu0 0.0
        %2895 = vmatpush1.msra.mxu0 %v2776
        %2896 = vmatprep.subr.mxu0 0.0
        %2897 = vmatpush1.msra.mxu0 %v2777
        %2898 = vmatprep.subr.mxu0 0.0
        %2899 = vmatpush1.msra.mxu0 %v2778
        %2900 = vmatprep.subr.mxu0 0.0
        %2901 = vmatpush1.msra.mxu0 %v2779
        %2902 = vmatprep.subr.mxu0 0.0
        %2903 = vmatpush1.msra.mxu0 %v2780
        %2904 = vmatprep.subr.mxu0 0.0
        %2905 = vmatpush1.msra.mxu0 %v2781
        %2906 = vmatprep.subr.mxu0 0.0
        %2907 = vmatpush1.msra.mxu0 %v2782
        %2908 = vmatprep.subr.mxu0 0.0
        %2909 = vmatpush1.msra.mxu0 %v2783
        %2910 = vmatprep.subr.mxu0 0.0
        %2911 = vmatpush1.msra.mxu0 %v2784
        %2912 = vmatprep.subr.mxu0 0.0
        %2913 = vmatpush1.msra.mxu0 %v2785
        %2914 = vmatprep.subr.mxu0 0.0
        %2915 = vmatpush1.msra.mxu0 %v2786
        %2916 = vmatprep.subr.mxu0 0.0
        %2917 = vmatpush1.msra.mxu0 %v2787
        %2918 = vmatprep.subr.mxu0 0.0
        %2919 = vmatpush1.msra.mxu0 %v2788
        %2920 = vmatprep.subr.mxu0 0.0
        %2921 = vmatpush1.msra.mxu0 %v2789
        %2922 = vmatprep.subr.mxu0 0.0
        %2923 = vmatpush1.msra.mxu0 %v2790
        %2924 = vmatprep.subr.mxu0 0.0
        %2925 = vmatpush1.msra.mxu0 %v2791
        %2926 = vmatprep.subr.mxu0 0.0
        %2927 = vmatpush1.msra.mxu0 %v2792
        %2928 = vmatprep.subr.mxu0 0.0
        %2929 = vmatpush1.msra.mxu0 %v2793
        %2930 = vmatprep.subr.mxu0 0.0
        %2931 = vmatpush1.msra.mxu0 0.0
        %2932 = vmatprep.subr.mxu0 0.0
        %2933 = vmatpush1.msra.mxu0 0.0
        %2934 = vmatprep.subr.mxu0 0.0
        %2935 = vmatpush1.msra.mxu0 0.0
        %2936 = vmatprep.subr.mxu0 0.0
        %2937 = vmatpush1.msra.mxu0 0.0
        %2938 = vmatprep.mubr.f32.mxu0 %v2802
        %2939 = vmatmul.mubr.f32.gmra.mrb[0].mxu0 %v2732
        %v2940 = vpop.f32.mrb[0].mxu0
        %v2941 = vadd.f32 %v2871, %v2940
        %v2942 = vpop.f32.mrb[0].mxu0
        %2943 = vdwg.mxu0
        %v2944 = vmax.f32 %v2941, 0.0
        %v2945 = vld [vmem:[%s9] sm:$0xff]
        %v2946 = vld [vmem:[%s9 + $0x8] sm:$0xff]
        %v2947 = vld [vmem:[%s9 + $0x10] sm:$0xff]
        %v2948 = vld [vmem:[%s9 + $0x18] sm:$0xff]
        %v2949 = vld [vmem:[%s9 + $0x20] sm:$0xff]
        %v2950 = vld [vmem:[%s9 + $0x28] sm:$0xff]
        %v2951 = vld [vmem:[%s9 + $0x30] sm:$0xff]
        %v2952 = vld [vmem:[%s9 + $0x38] sm:$0xff]
        %v2953 = vld [vmem:[%s9 + $0x40] sm:$0xff]
        %v2954 = vld [vmem:[%s9 + $0x48] sm:$0xff]
        %v2955 = vld [vmem:[%s9 + $0x50] sm:$0xff]
        %v2956 = vld [vmem:[%s9 + $0x58] sm:$0xff]
        %v2957 = vld [vmem:[%s9 + $0x60] sm:$0xff]
        %v2958 = vld [vmem:[%s9 + $0x68] sm:$0xff]
        %v2959 = vld [vmem:[%s9 + $0x70] sm:$0xff]
        %v2960 = vld [vmem:[%s9 + $0x78] sm:$0xff]
        %v2961 = vld [vmem:[#allocation17] sm:$0x1]
        %v2963 = vlaneseq
        %v2964 = vshrl.u32 %v2963, 7
        %v2965 = vsub.s32 0, %v2964
        %v2966 = vrot.slane %v2961, %v2965
        %2968 = vmatprep.subr.mxu0 0.0
        %2969 = vmatpush1.msra.mxu0 %v2945
        %2970 = vmatprep.subr.mxu0 0.0
        %2971 = vmatpush1.msra.mxu0 %v2946
        %2972 = vmatprep.subr.mxu0 0.0
        %2973 = vmatpush1.msra.mxu0 %v2947
        %2974 = vmatprep.subr.mxu0 0.0
        %2975 = vmatpush1.msra.mxu0 %v2948
        %2976 = vmatprep.subr.mxu0 0.0
        %2977 = vmatpush1.msra.mxu0 %v2949
        %2978 = vmatprep.subr.mxu0 0.0
        %2979 = vmatpush1.msra.mxu0 %v2950
        %2980 = vmatprep.subr.mxu0 0.0
        %2981 = vmatpush1.msra.mxu0 %v2951
        %2982 = vmatprep.subr.mxu0 0.0
        %2983 = vmatpush1.msra.mxu0 %v2952
        %2984 = vmatprep.subr.mxu0 0.0
        %2985 = vmatpush1.msra.mxu0 %v2953
        %2986 = vmatprep.subr.mxu0 0.0
        %2987 = vmatpush1.msra.mxu0 %v2954
        %2988 = vmatprep.subr.mxu0 0.0
        %2989 = vmatpush1.msra.mxu0 %v2955
        %2990 = vmatprep.subr.mxu0 0.0
        %2991 = vmatpush1.msra.mxu0 %v2956
        %2992 = vmatprep.subr.mxu0 0.0
        %2993 = vmatpush1.msra.mxu0 %v2957
        %2994 = vmatprep.subr.mxu0 0.0
        %2995 = vmatpush1.msra.mxu0 %v2958
        %2996 = vmatprep.subr.mxu0 0.0
        %2997 = vmatpush1.msra.mxu0 %v2959
        %2998 = vmatprep.subr.mxu0 0.0
        %2999 = vmatpush1.msra.mxu0 %v2960
        %3000 = vmatprep.subr.mxu0 0.0
        %3001 = vmatpush1.msra.mxu0 0.0
        %3002 = vmatprep.subr.mxu0 0.0
        %3003 = vmatpush1.msra.mxu0 0.0
        %3004 = vmatprep.subr.mxu0 0.0
        %3005 = vmatpush1.msra.mxu0 0.0
        %3006 = vmatprep.subr.mxu0 0.0
        %3007 = vmatpush1.msra.mxu0 0.0
        %3008 = vmatprep.subr.mxu0 0.0
        %3009 = vmatpush1.msra.mxu0 0.0
        %3010 = vmatprep.subr.mxu0 0.0
        %3011 = vmatpush1.msra.mxu0 0.0
        %3012 = vmatprep.subr.mxu0 0.0
        %3013 = vmatpush1.msra.mxu0 0.0
        %3014 = vmatprep.subr.mxu0 0.0
        %3015 = vmatpush1.msra.mxu0 0.0
        %3016 = vmatprep.subr.mxu0 0.0
        %3017 = vmatpush1.msra.mxu0 0.0
        %3018 = vmatprep.subr.mxu0 0.0
        %3019 = vmatpush1.msra.mxu0 0.0
        %3020 = vmatprep.subr.mxu0 0.0
        %3021 = vmatpush1.msra.mxu0 0.0
        %3022 = vmatprep.subr.mxu0 0.0
        %3023 = vmatpush1.msra.mxu0 0.0
        %3024 = vmatprep.subr.mxu0 0.0
        %3025 = vmatpush1.msra.mxu0 0.0
        %3026 = vmatprep.subr.mxu0 0.0
        %3027 = vmatpush1.msra.mxu0 0.0
        %3028 = vmatprep.subr.mxu0 0.0
        %3029 = vmatpush1.msra.mxu0 0.0
        %3030 = vmatprep.subr.mxu0 0.0
        %3031 = vmatpush1.msra.mxu0 0.0
        %3032 = vmatprep.mubr.f32.mxu0 0.0
        %3033 = vmatmul.mubr.f32.gmra.mrb[0].mxu0 %v2944
        %v3034 = vpop.f32.mrb[0].mxu0
        %v3035 = vadd.f32 %v2966, %v3034
        %v3036 = vpop.f32.mrb[0].mxu0
        %3037 = vdwg.mxu0
        %v3038 = vmax.f32 %v3035, 0.0
        %v3039 = vld [vmem:[#allocation19] sm:$0xff]
        %v3040 = vld [vmem:[#allocation19 + $0x8] sm:$0xff]
        %v3041 = vld [vmem:[#allocation19 + $0x10] sm:$0xff]
        %v3042 = vld [vmem:[#allocation19 + $0x18] sm:$0xff]
        %v3043 = vld [vmem:[#allocation19 + $0x20] sm:$0xff]
        %v3044 = vld [vmem:[#allocation19 + $0x28] sm:$0xff]
        %v3045 = vld [vmem:[#allocation19 + $0x30] sm:$0xff]
        %v3046 = vld [vmem:[#allocation19 + $0x38] sm:$0xff]
        %v3047 = vld [vmem:[#allocation20] sm:$0x1]
        %v3049 = vlaneseq
        %v3050 = vshrl.u32 %v3049, 7
        %v3051 = vsub.s32 0, %v3050
        %v3052 = vrot.slane %v3047, %v3051
        %vm3054 = vcmask 523264
        %v3056 = vsel %vm3054, %v3038, 0
        %3058 = vmatprep.subr.mxu0 0.0
        %3059 = vmatpush1.msra.mxu0 %v3039
        %3060 = vmatprep.subr.mxu0 0.0
        %3061 = vmatpush1.msra.mxu0 %v3040
        %3062 = vmatprep.subr.mxu0 0.0
        %3063 = vmatpush1.msra.mxu0 %v3041
        %3064 = vmatprep.subr.mxu0 0.0
        %3065 = vmatpush1.msra.mxu0 %v3042
        %3066 = vmatprep.subr.mxu0 0.0
        %3067 = vmatpush1.msra.mxu0 %v3043
        %3068 = vmatprep.subr.mxu0 0.0
        %3069 = vmatpush1.msra.mxu0 %v3044
        %3070 = vmatprep.subr.mxu0 0.0
        %3071 = vmatpush1.msra.mxu0 %v3045
        %3072 = vmatprep.subr.mxu0 0.0
        %3073 = vmatpush1.msra.mxu0 %v3046
        %3074 = vmatprep.subr.mxu0 0.0
        %3075 = vmatpush1.msra.mxu0 0.0
        %3076 = vmatprep.subr.mxu0 0.0
        %3077 = vmatpush1.msra.mxu0 0.0
        %3078 = vmatprep.subr.mxu0 0.0
        %3079 = vmatpush1.msra.mxu0 0.0
        %3080 = vmatprep.subr.mxu0 0.0
        %3081 = vmatpush1.msra.mxu0 0.0
        %3082 = vmatprep.subr.mxu0 0.0
        %3083 = vmatpush1.msra.mxu0 0.0
        %3084 = vmatprep.subr.mxu0 0.0
        %3085 = vmatpush1.msra.mxu0 0.0
        %3086 = vmatprep.subr.mxu0 0.0
        %3087 = vmatpush1.msra.mxu0 0.0
        %3088 = vmatprep.subr.mxu0 0.0
        %3089 = vmatpush1.msra.mxu0 0.0
        %3090 = vmatprep.subr.mxu0 0.0
        %3091 = vmatpush1.msra.mxu0 0.0
        %3092 = vmatprep.subr.mxu0 0.0
        %3093 = vmatpush1.msra.mxu0 0.0
        %3094 = vmatprep.subr.mxu0 0.0
        %3095 = vmatpush1.msra.mxu0 0.0
        %3096 = vmatprep.subr.mxu0 0.0
        %3097 = vmatpush1.msra.mxu0 0.0
        %3098 = vmatprep.subr.mxu0 0.0
        %3099 = vmatpush1.msra.mxu0 0.0
        %3100 = vmatprep.subr.mxu0 0.0
        %3101 = vmatpush1.msra.mxu0 0.0
        %3102 = vmatprep.subr.mxu0 0.0
        %3103 = vmatpush1.msra.mxu0 0.0
        %3104 = vmatprep.subr.mxu0 0.0
        %3105 = vmatpush1.msra.mxu0 0.0
        %3106 = vmatprep.subr.mxu0 0.0
        %3107 = vmatpush1.msra.mxu0 0.0
        %3108 = vmatprep.subr.mxu0 0.0
        %3109 = vmatpush1.msra.mxu0 0.0
        %3110 = vmatprep.subr.mxu0 0.0
        %3111 = vmatpush1.msra.mxu0 0.0
        %3112 = vmatprep.subr.mxu0 0.0
        %3113 = vmatpush1.msra.mxu0 0.0
        %3114 = vmatprep.subr.mxu0 0.0
        %3115 = vmatpush1.msra.mxu0 0.0
        %3116 = vmatprep.subr.mxu0 0.0
        %3117 = vmatpush1.msra.mxu0 0.0
        %3118 = vmatprep.subr.mxu0 0.0
        %3119 = vmatpush1.msra.mxu0 0.0
        %3120 = vmatprep.subr.mxu0 0.0
        %3121 = vmatpush1.msra.mxu0 0.0
        %3122 = vmatprep.mubr.f32.mxu0 0.0
        %3123 = vmatmul.mubr.f32.gmra.mrb[0].mxu0 %v3056
        %v3124 = vpop.f32.mrb[0].mxu0
        %v3125 = vadd.f32 %v3052, %v3124
        %v3126 = vpop.f32.mrb[0].mxu0
        %3127 = vdwg.mxu0
        %3128 = vmax.xlane.f32.xlu0 %v3125
        %v3129 = vpop.xlane.xlu0 %3128
        %v3130 = vsub.f32 %v3125, %v3129
        %v3131 = vmul.f32 %v3130, 1.442695
        %v3132 = vpow.pop %v3131
        %3133 = vadd.xlane.f32.xlu0 %v3132
        %v3134 = vpop.xlane.xlu0 %3133
        %v3135 = vrcp.pop %v3134
        %v3136 = vmul.f32 %v3132, %v3135
        %3137 = vst [vmem:[%s603] sm:$0xff] %v3136
        %s3138 = sand.u32 %s322, 1
        %s3139 = scalar_lea.sflag [#allocation4], %s3138
        %s3140 = sand.u32 %s322, 1
        %s3141 = smul.addr %s3140, 8
        %s3142 = scalar_lea.vmem [#allocation22], %s3141
        // Predicated region
        $region121: #{tpu_custom_call.1} parent=71 // pred_check
          %p3143 = pneg %p332
        $region122: #{tpu_custom_call.1} parent=71 // pred_check_branch
          %3145 = sbr.rel (%p3143) target = $region124
        $region123: #{tpu_custom_call.1} parent=71 // pred_region
          %s3147 = ssub.s32 128, 128
          %3148 = vsyncadd %s3139, %s3147
          %s3149 = smul.addr %s36, 128
          %s3150 = scalar_lea.hbm %s13, %s3149
          %s3152 = sshll.u32 %s3142, 4
          %s3153 = int_to_ptr.vmem [resolvable:$true] %s3152
          %3155 = dma.vmem_to_hbm [thread:$0]  %s3153, 128, %s3150, %s3139
        $region124: #{tpu_custom_call.1} parent=71 // pred_fallthru
          _
      $region72: #{tpu_custom_call.1} parent=5 // pred_fallthru
        _
      %p3156 = scmp.le.s32.totalorder 2, %s31
      // Predicated region
      $region125: #{tpu_custom_call.1} parent=5 // pred_check
        %p3157 = pneg %p3156
      $region126: #{tpu_custom_call.1} parent=5 // pred_check_branch
        %3159 = sbr.rel (%p3157) target = $region128
      $region127: #{tpu_custom_call.1} parent=5 // pred_region
        %s3160 = ssub.s32 %s31, 2
        // Predicated region
        $region129: #{tpu_custom_call.1} parent=127 // pred_check
          %p3161 = pneg %p338
        $region130: #{tpu_custom_call.1} parent=127 // pred_check_branch
          %3163 = sbr.rel (%p3161) target = $region132
        $region131: #{tpu_custom_call.1} parent=127 // pred_region
          %s3164 = sand.u32 %s323, 1
          %s3165 = scalar_lea.sflag [#allocation4], %s3164
          %s3166 = sand.u32 %s323, 1
          %s3167 = smul.addr %s3166, 8
          %s3168 = scalar_lea.vmem [#allocation22], %s3167
          %3169 = dma.done %s3165, 128
        $region132: #{tpu_custom_call.1} parent=127 // pred_fallthru
          _
      $region128: #{tpu_custom_call.1} parent=5 // pred_fallthru
        _
    $region6: #{tpu_custom_call.1} parent=1 // loop_footer
      %s35 = sadd.s32 1, %s31
    $region7: #{tpu_custom_call.1} parent=1 // loop_footer_branch
      %30 = sbr.rel target = $region3
    $region8: #{tpu_custom_call.1} parent=1 // loop_exit
      _
    %3170 = vsyncpa [#allocation3], 1
    %s3171 = scalar_lea.sflag [#allocation3], 1
    %3172 = vsyncpa %s3171, 1
    %3173 = vsyncpa [#allocation6], 1
    %3174 = vsyncpa [#allocation9], 1
    %3175 = vsyncpa [#allocation12], 1
    %3176 = vsyncpa [#allocation15], 1
    %3177 = vsyncpa [#allocation18], 1
    %3178 = vsyncpa [#allocation21], 1
    %3179 = vsyncpa [#allocation4], 1
    %s3180 = scalar_lea.sflag [#allocation4], 1
    %3181 = vsyncpa %s3180, 1

</llo_original>
